<compile_context>
chip_gen: v7x
topology: tpu7x:2x2x1
jax: 0.10.0
libtpu: 0.0.40
codegen_flags: <defaults>
</compile_context>

<pallas_src>
import jax
import jax.numpy as jnp
from jax.experimental import pallas as pl
from jax.experimental.pallas import tpu as pltpu


_VMEM = pl.BlockSpec(memory_space=pltpu.MemorySpace.VMEM)


# ----------------------------- Pallas kernel --------------------------------

def _make_fused_kernel(S, B, H, n_layers):
    """Build the fused bidirectional-LSTM + FC kernel for static (S, B, H, L)."""
    G = 4 * H  # per-direction gate width

    def kernel(*refs):
        # refs = x, (wih_l, whh_l, b_l) * n_layers, fc_w, fc_b,   # inputs
        #        logits,                                          # output
        #        xg_sc, seqf_sc, seqb_sc                          # scratch
        x_ref = refs[0]
        layer_refs = refs[1:1 + 3 * n_layers]
        fcw_ref = refs[1 + 3 * n_layers]
        fcb_ref = refs[2 + 3 * n_layers]
        logits_ref = refs[3 + 3 * n_layers]
        xg_sc = refs[4 + 3 * n_layers]
        seqf_sc = refs[5 + 3 * n_layers]
        seqb_sc = refs[6 + 3 * n_layers]

        h_cat = jnp.zeros((B, 2 * H), jnp.float32)
        c_cat = jnp.zeros((B, 2 * H), jnp.float32)

        for layer in range(n_layers):
            wih_ref = layer_refs[3 * layer]
            whh_ref = layer_refs[3 * layer + 1]
            b_ref = layer_refs[3 * layer + 2]
            is_last = layer == n_layers - 1

            if layer == 0:
                x_in = x_ref[...]                                    # (S, B, E)
            else:
                # previous layer's per-time outputs, forward||backward
                x_in = jnp.concatenate([seqf_sc[...], seqb_sc[...]], axis=-1)
            D = x_in.shape[-1]

            # Hoisted input projection + bias for all timesteps, both directions:
            # one big MXU pass instead of 2*S small ones inside the recurrence.
            xg = jnp.dot(x_in.reshape(S * B, D), wih_ref[...],
                         preferred_element_type=jnp.float32) + b_ref[...]
            xg_sc[...] = xg.reshape(S, B, 2 * G)

            def step(s, carry):
                h, c = carry
                # Single 256-lane block-diagonal recurrent matmul for both dirs.
                hg = jnp.dot(h, whh_ref[...],
                             preferred_element_type=jnp.float32)    # (B, 8H)
                xrow_f = xg_sc[s]                                    # (B, 8H)
                xrow_b = xg_sc[S - 1 - s]                            # (B, 8H)
                gf = hg[:, :G] + xrow_f[:, :G]       # fwd gates, 128-lane aligned
                gb = hg[:, G:] + xrow_b[:, G:]       # bwd gates, 128-lane aligned

                i_f = jax.nn.sigmoid(gf[:, 0:H])
                f_f = jax.nn.sigmoid(gf[:, H:2 * H])
                g_f = jnp.tanh(gf[:, 2 * H:3 * H])
                o_f = jax.nn.sigmoid(gf[:, 3 * H:4 * H])
                i_b = jax.nn.sigmoid(gb[:, 0:H])
                f_b = jax.nn.sigmoid(gb[:, H:2 * H])
                g_b = jnp.tanh(gb[:, 2 * H:3 * H])
                o_b = jax.nn.sigmoid(gb[:, 3 * H:4 * H])

                c_f = f_f * c[:, :H] + i_f * g_f
                c_b = f_b * c[:, H:] + i_b * g_b
                h_f = o_f * jnp.tanh(c_f)
                h_b = o_b * jnp.tanh(c_b)

                if not is_last:
                    # Full-row stores into VMEM scratch (no inter-layer HBM trip).
                    seqf_sc[s] = h_f
                    seqb_sc[S - 1 - s] = h_b

                return (jnp.concatenate([h_f, h_b], axis=1),
                        jnp.concatenate([c_f, c_b], axis=1))

            h_cat = jnp.zeros((B, 2 * H), jnp.float32)
            c_cat = jnp.zeros((B, 2 * H), jnp.float32)
            # Fully unrolled: S is small & static, lets the scheduler interleave
            # MXU / EUP / VPU work across adjacent steps.
            h_cat, c_cat = jax.lax.fori_loop(0, S, step, (h_cat, c_cat),
                                             unroll=True)

        # Fused FC head: hidden[-2] || hidden[-1] == final h_cat of last layer.
        logits = jnp.dot(h_cat, fcw_ref[...],
                         preferred_element_type=jnp.float32) + fcb_ref[...]
        logits_ref[...] = logits.astype(logits_ref.dtype)

    return kernel


# ----------------------------- Python wrappers -------------------------------

def _fuse_direction_weights(w_ih_f, w_hh_f, b_f, w_ih_b, w_hh_b, b_b):
    """Pack per-direction weights into the fused layout used by the kernel."""
    D, G = w_ih_f.shape
    H = w_hh_f.shape[0]
    wih = jnp.concatenate([w_ih_f, w_ih_b], axis=1)             # (D, 8H)
    whh = jnp.zeros((2 * H, 2 * G), w_hh_f.dtype)
    whh = whh.at[:H, :G].set(w_hh_f)                            # block-diagonal
    whh = whh.at[H:, G:].set(w_hh_b)
    b = jnp.concatenate([b_f.reshape(1, -1), b_b.reshape(1, -1)], axis=1)
    return wih, whh, b


def init_params(key, vocab_size, embedding_dim, hidden_dim, output_dim,
                n_layers, pad_idx):
    """Deterministic parameter init mirroring the torch module's shapes."""
    keys = iter(jax.random.split(key, 4 + n_layers * 2 * 4))
    params = {}

    emb = jax.random.normal(next(keys), (vocab_size, embedding_dim), jnp.float32)
    emb = emb.at[pad_idx].set(0.0)  # padding_idx row is zero
    params["embedding"] = emb

    k = 1.0 / jnp.sqrt(hidden_dim)
    lstm = []
    for layer in range(n_layers):
        in_dim = embedding_dim if layer == 0 else 2 * hidden_dim
        dirs = []
        for _ in range(2):  # forward, backward
            w_ih = jax.random.uniform(next(keys), (in_dim, 4 * hidden_dim),
                                      jnp.float32, -k, k)
            w_hh = jax.random.uniform(next(keys), (hidden_dim, 4 * hidden_dim),
                                      jnp.float32, -k, k)
            b_ih = jax.random.uniform(next(keys), (4 * hidden_dim,),
                                      jnp.float32, -k, k)
            b_hh = jax.random.uniform(next(keys), (4 * hidden_dim,),
                                      jnp.float32, -k, k)
            dirs.append((w_ih, w_hh, b_ih + b_hh))
        (wf, hf, bf), (wb, hb, bb) = dirs
        lstm.append(_fuse_direction_weights(wf, hf, bf, wb, hb, bb))
    params["lstm"] = lstm

    kf = 1.0 / jnp.sqrt(2.0 * hidden_dim)
    params["fc_w"] = jax.random.uniform(next(keys), (2 * hidden_dim, output_dim),
                                        jnp.float32, -kf, kf)
    params["fc_b"] = jax.random.uniform(next(keys), (1, output_dim),
                                        jnp.float32, -kf, kf)
    return params


@jax.jit
def rnn_movie_forward(params, text):
    """Forward pass of RNN_MOVIE (eval mode: dropout = identity).

    text: (seq, batch) int32 token ids.
    returns: (batch, output_dim) logits.
    """
    S, B = text.shape
    layers = params["lstm"]
    n_layers = len(layers)
    H = layers[0][1].shape[0] // 2
    out_dim = params["fc_w"].shape[1]

    # Embedding lookup (glue: gather stays in plain JAX; table is tiny).
    x = jnp.take(params["embedding"], text, axis=0)              # (S, B, E)

    flat_weights = []
    for wih, whh, b in layers:
        flat_weights += [wih, whh, b]

    kernel = _make_fused_kernel(S, B, H, n_layers)
    n_inputs = 1 + len(flat_weights) + 2

    logits = pl.pallas_call(
        kernel,
        out_shape=jax.ShapeDtypeStruct((B, out_dim), jnp.float32),
        in_specs=[_VMEM] * n_inputs,
        out_specs=_VMEM,
        scratch_shapes=[
            pltpu.VMEM((S, B, 8 * H), jnp.float32),  # precomputed X@W_ih + b
            pltpu.VMEM((S, B, H), jnp.float32),      # fwd seq output (inter-layer)
            pltpu.VMEM((S, B, H), jnp.float32),      # bwd seq output (inter-layer)
        ],
    )(x, *flat_weights, params["fc_w"], params["fc_b"])
    return logits


# ----------------------------------- main ------------------------------------

if __name__ == "__main__":
    VOCAB = 50
    EMB = 32
    HID = 32
    OUT = 1
    N_LAYERS = 2
    PAD_IDX = 1
    SEQ = 8
    BATCH = 8

    key = jax.random.PRNGKey(0)
    k_param, k_text = jax.random.split(key)

    params = init_params(k_param, VOCAB, EMB, HID, OUT, N_LAYERS, PAD_IDX)
    text = jax.random.randint(k_text, (SEQ, BATCH), 0, VOCAB, dtype=jnp.int32)

    logits = rnn_movie_forward(params, text)
    jax.block_until_ready(logits)

    assert logits.shape == (BATCH, OUT), logits.shape
    assert jnp.all(jnp.isfinite(logits))
    print("KERNEL_OK")
</pallas_src>

<mosaic_0001>
module attributes {stable_mosaic.version = 11 : i64} {
  func.func @kernel(%arg0: memref<8x8x32xf32, #tpu.memory_space<vmem>>, %arg1: memref<32x256xf32, #tpu.memory_space<vmem>>, %arg2: memref<64x256xf32, #tpu.memory_space<vmem>>, %arg3: memref<1x256xf32, #tpu.memory_space<vmem>>, %arg4: memref<64x256xf32, #tpu.memory_space<vmem>>, %arg5: memref<64x256xf32, #tpu.memory_space<vmem>>, %arg6: memref<1x256xf32, #tpu.memory_space<vmem>>, %arg7: memref<64x1xf32, #tpu.memory_space<vmem>>, %arg8: memref<1x1xf32, #tpu.memory_space<vmem>>, %arg9: memref<8x1xf32, #tpu.memory_space<vmem>>, %arg10: memref<8x8x256xf32, #tpu.memory_space<vmem>>, %arg11: memref<8x8x32xf32, #tpu.memory_space<vmem>>, %arg12: memref<8x8x32xf32, #tpu.memory_space<vmem>>) attributes {dimension_semantics = [], scalar_prefetch = 0 : i64, scratch_operands = 3 : i64, tpu.core_type = #tpu.core_type<tc>} {
    %c0 = arith.constant 0 : index
    %c0_0 = arith.constant 0 : index
    %c0_1 = arith.constant 0 : index
    %0 = vector.load %arg0[%c0, %c0_0, %c0_1] : memref<8x8x32xf32, #tpu.memory_space<vmem>>, vector<8x8x32xf32>
    %1 = vector.shape_cast %0 : vector<8x8x32xf32> to vector<64x32xf32>
    %c0_2 = arith.constant 0 : index
    %c0_3 = arith.constant 0 : index
    %2 = vector.load %arg1[%c0_2, %c0_3] : memref<32x256xf32, #tpu.memory_space<vmem>>, vector<32x256xf32>
    %cst = arith.constant dense<0.000000e+00> : vector<64x256xf32>
    %3 = tpu.matmul %1, %2, %cst {dimension_numbers = #tpu.dot_dimension_numbers<[1], [0], [0], [1], [0, 0, 1, 1], [], []>} : vector<64x32xf32>, vector<32x256xf32>, vector<64x256xf32> -> vector<64x256xf32>
    %c0_4 = arith.constant 0 : index
    %c0_5 = arith.constant 0 : index
    %4 = vector.load %arg3[%c0_4, %c0_5] : memref<1x256xf32, #tpu.memory_space<vmem>>, vector<1x256xf32>
    %5 = vector.broadcast %4 : vector<1x256xf32> to vector<64x256xf32>
    %6 = arith.addf %3, %5 : vector<64x256xf32>
    %7 = vector.shape_cast %6 : vector<64x256xf32> to vector<8x8x256xf32>
    %c0_6 = arith.constant 0 : index
    %c0_7 = arith.constant 0 : index
    %c0_8 = arith.constant 0 : index
    %8 = vector.load %arg10[%c0_6, %c0_7, %c0_8] : memref<8x8x256xf32, #tpu.memory_space<vmem>>, vector<8x8x256xf32>
    tpu.vector_store %arg10[%c0_6, %c0_7, %c0_8], %7 {strides = array<i32>} : memref<8x8x256xf32, #tpu.memory_space<vmem>>, vector<8x8x256xf32>,
    %cst_9 = arith.constant 0.000000e+00 : f32
    %9 = vector.broadcast %cst_9 : f32 to vector<8x64xf32>
    %cst_10 = arith.constant 0.000000e+00 : f32
    %10 = vector.broadcast %cst_10 : f32 to vector<8x64xf32>
    %c0_i32 = arith.constant 0 : i32
    %c0_11 = arith.constant 0 : index
    %c0_12 = arith.constant 0 : index
    %11 = vector.load %arg2[%c0_11, %c0_12] : memref<64x256xf32, #tpu.memory_space<vmem>>, vector<64x256xf32>
    %cst_13 = arith.constant dense<0.000000e+00> : vector<8x256xf32>
    %12 = tpu.matmul %9, %11, %cst_13 {dimension_numbers = #tpu.dot_dimension_numbers<[1], [0], [0], [1], [0, 0, 1, 1], [], []>} : vector<8x64xf32>, vector<64x256xf32>, vector<8x256xf32> -> vector<8x256xf32>
    %13 = arith.index_cast %c0_i32 : i32 to index
    %c0_14 = arith.constant 0 : index
    %c0_15 = arith.constant 0 : index
    %14 = vector.load %arg10[%13, %c0_14, %c0_15] : memref<8x8x256xf32, #tpu.memory_space<vmem>>, vector<1x8x256xf32>
    %15 = vector.shape_cast %14 : vector<1x8x256xf32> to vector<8x256xf32>
    %c7_i32 = arith.constant 7 : i32
    %16 = arith.subi %c7_i32, %c0_i32 : i32
    %17 = arith.index_cast %16 : i32 to index
    %c0_16 = arith.constant 0 : index
    %c0_17 = arith.constant 0 : index
    %18 = vector.load %arg10[%17, %c0_16, %c0_17] : memref<8x8x256xf32, #tpu.memory_space<vmem>>, vector<1x8x256xf32>
    %19 = vector.shape_cast %18 : vector<1x8x256xf32> to vector<8x256xf32>
    %20 = vector.extract_strided_slice %12 {offsets = [0, 0], sizes = [8, 128], strides = [1, 1]} : vector<8x256xf32> to vector<8x128xf32>
    %21 = vector.extract_strided_slice %15 {offsets = [0, 0], sizes = [8, 128], strides = [1, 1]} : vector<8x256xf32> to vector<8x128xf32>
    %22 = arith.addf %20, %21 : vector<8x128xf32>
    %23 = vector.extract_strided_slice %12 {offsets = [0, 128], sizes = [8, 128], strides = [1, 1]} : vector<8x256xf32> to vector<8x128xf32>
    %24 = vector.extract_strided_slice %19 {offsets = [0, 128], sizes = [8, 128], strides = [1, 1]} : vector<8x256xf32> to vector<8x128xf32>
    %25 = arith.addf %23, %24 : vector<8x128xf32>
    %26 = vector.extract_strided_slice %22 {offsets = [0, 0], sizes = [8, 32], strides = [1, 1]} : vector<8x128xf32> to vector<8x32xf32>
    %27 = arith.negf %26 : vector<8x32xf32>
    %28 = math.exp %27 : vector<8x32xf32>
    %cst_18 = arith.constant 1.000000e+00 : f32
    %29 = vector.broadcast %cst_18 : f32 to vector<8x32xf32>
    %30 = arith.addf %29, %28 : vector<8x32xf32>
    %31 = arith.divf %29, %30 : vector<8x32xf32>
    %32 = vector.extract_strided_slice %22 {offsets = [0, 32], sizes = [8, 32], strides = [1, 1]} : vector<8x128xf32> to vector<8x32xf32>
    %33 = arith.negf %32 : vector<8x32xf32>
    %34 = math.exp %33 : vector<8x32xf32>
    %cst_19 = arith.constant 1.000000e+00 : f32
    %35 = vector.broadcast %cst_19 : f32 to vector<8x32xf32>
    %36 = arith.addf %35, %34 : vector<8x32xf32>
    %37 = arith.divf %35, %36 : vector<8x32xf32>
    %38 = vector.extract_strided_slice %22 {offsets = [0, 64], sizes = [8, 32], strides = [1, 1]} : vector<8x128xf32> to vector<8x32xf32>
    %39 = math.tanh %38 : vector<8x32xf32>
    %40 = vector.extract_strided_slice %22 {offsets = [0, 96], sizes = [8, 32], strides = [1, 1]} : vector<8x128xf32> to vector<8x32xf32>
    %41 = arith.negf %40 : vector<8x32xf32>
    %42 = math.exp %41 : vector<8x32xf32>
    %cst_20 = arith.constant 1.000000e+00 : f32
    %43 = vector.broadcast %cst_20 : f32 to vector<8x32xf32>
    %44 = arith.addf %43, %42 : vector<8x32xf32>
    %45 = arith.divf %43, %44 : vector<8x32xf32>
    %46 = vector.extract_strided_slice %25 {offsets = [0, 0], sizes = [8, 32], strides = [1, 1]} : vector<8x128xf32> to vector<8x32xf32>
    %47 = arith.negf %46 : vector<8x32xf32>
    %48 = math.exp %47 : vector<8x32xf32>
    %cst_21 = arith.constant 1.000000e+00 : f32
    %49 = vector.broadcast %cst_21 : f32 to vector<8x32xf32>
    %50 = arith.addf %49, %48 : vector<8x32xf32>
    %51 = arith.divf %49, %50 : vector<8x32xf32>
    %52 = vector.extract_strided_slice %25 {offsets = [0, 32], sizes = [8, 32], strides = [1, 1]} : vector<8x128xf32> to vector<8x32xf32>
    %53 = arith.negf %52 : vector<8x32xf32>
    %54 = math.exp %53 : vector<8x32xf32>
    %cst_22 = arith.constant 1.000000e+00 : f32
    %55 = vector.broadcast %cst_22 : f32 to vector<8x32xf32>
    %56 = arith.addf %55, %54 : vector<8x32xf32>
    %57 = arith.divf %55, %56 : vector<8x32xf32>
    %58 = vector.extract_strided_slice %25 {offsets = [0, 64], sizes = [8, 32], strides = [1, 1]} : vector<8x128xf32> to vector<8x32xf32>
    %59 = math.tanh %58 : vector<8x32xf32>
    %60 = vector.extract_strided_slice %25 {offsets = [0, 96], sizes = [8, 32], strides = [1, 1]} : vector<8x128xf32> to vector<8x32xf32>
    %61 = arith.negf %60 : vector<8x32xf32>
    %62 = math.exp %61 : vector<8x32xf32>
    %cst_23 = arith.constant 1.000000e+00 : f32
    %63 = vector.broadcast %cst_23 : f32 to vector<8x32xf32>
    %64 = arith.addf %63, %62 : vector<8x32xf32>
    %65 = arith.divf %63, %64 : vector<8x32xf32>
    %66 = vector.extract_strided_slice %10 {offsets = [0, 0], sizes = [8, 32], strides = [1, 1]} : vector<8x64xf32> to vector<8x32xf32>
    %67 = arith.mulf %37, %66 : vector<8x32xf32>
    %68 = arith.mulf %31, %39 : vector<8x32xf32>
    %69 = arith.addf %67, %68 : vector<8x32xf32>
    %70 = vector.extract_strided_slice %10 {offsets = [0, 32], sizes = [8, 32], strides = [1, 1]} : vector<8x64xf32> to vector<8x32xf32>
    %71 = arith.mulf %57, %70 : vector<8x32xf32>
    %72 = arith.mulf %51, %59 : vector<8x32xf32>
    %73 = arith.addf %71, %72 : vector<8x32xf32>
    %74 = math.tanh %69 : vector<8x32xf32>
    %75 = arith.mulf %45, %74 : vector<8x32xf32>
    %76 = math.tanh %73 : vector<8x32xf32>
    %77 = arith.mulf %65, %76 : vector<8x32xf32>
    %78 = arith.index_cast %c0_i32 : i32 to index
    %c0_24 = arith.constant 0 : index
    %c0_25 = arith.constant 0 : index
    %79 = vector.load %arg11[%78, %c0_24, %c0_25] : memref<8x8x32xf32, #tpu.memory_space<vmem>>, vector<1x8x32xf32>
    %80 = vector.shape_cast %79 : vector<1x8x32xf32> to vector<8x32xf32>
    %81 = vector.shape_cast %75 : vector<8x32xf32> to vector<1x8x32xf32>
    tpu.vector_store %arg11[%78, %c0_24, %c0_25], %81 {strides = array<i32>} : memref<8x8x32xf32, #tpu.memory_space<vmem>>, vector<1x8x32xf32>,
    %c7_i32_26 = arith.constant 7 : i32
    %82 = arith.subi %c7_i32_26, %c0_i32 : i32
    %83 = arith.index_cast %82 : i32 to index
    %c0_27 = arith.constant 0 : index
    %c0_28 = arith.constant 0 : index
    %84 = vector.load %arg12[%83, %c0_27, %c0_28] : memref<8x8x32xf32, #tpu.memory_space<vmem>>, vector<1x8x32xf32>
    %85 = vector.shape_cast %84 : vector<1x8x32xf32> to vector<8x32xf32>
    %86 = vector.shape_cast %77 : vector<8x32xf32> to vector<1x8x32xf32>
    tpu.vector_store %arg12[%83, %c0_27, %c0_28], %86 {strides = array<i32>} : memref<8x8x32xf32, #tpu.memory_space<vmem>>, vector<1x8x32xf32>,
    %87 = tpu.concatenate %75, %77 in 1 : vector<8x32xf32>, vector<8x32xf32> -> vector<8x64xf32>
    %88 = tpu.concatenate %69, %73 in 1 : vector<8x32xf32>, vector<8x32xf32> -> vector<8x64xf32>
    %c1_i32 = arith.constant 1 : i32
    %c0_29 = arith.constant 0 : index
    %c0_30 = arith.constant 0 : index
    %89 = vector.load %arg2[%c0_29, %c0_30] : memref<64x256xf32, #tpu.memory_space<vmem>>, vector<64x256xf32>
    %cst_31 = arith.constant dense<0.000000e+00> : vector<8x256xf32>
    %90 = tpu.matmul %87, %89, %cst_31 {dimension_numbers = #tpu.dot_dimension_numbers<[1], [0], [0], [1], [0, 0, 1, 1], [], []>} : vector<8x64xf32>, vector<64x256xf32>, vector<8x256xf32> -> vector<8x256xf32>
    %91 = arith.index_cast %c1_i32 : i32 to index
    %c0_32 = arith.constant 0 : index
    %c0_33 = arith.constant 0 : index
    %92 = vector.load %arg10[%91, %c0_32, %c0_33] : memref<8x8x256xf32, #tpu.memory_space<vmem>>, vector<1x8x256xf32>
    %93 = vector.shape_cast %92 : vector<1x8x256xf32> to vector<8x256xf32>
    %c7_i32_34 = arith.constant 7 : i32
    %94 = arith.subi %c7_i32_34, %c1_i32 : i32
    %95 = arith.index_cast %94 : i32 to index
    %c0_35 = arith.constant 0 : index
    %c0_36 = arith.constant 0 : index
    %96 = vector.load %arg10[%95, %c0_35, %c0_36] : memref<8x8x256xf32, #tpu.memory_space<vmem>>, vector<1x8x256xf32>
    %97 = vector.shape_cast %96 : vector<1x8x256xf32> to vector<8x256xf32>
    %98 = vector.extract_strided_slice %90 {offsets = [0, 0], sizes = [8, 128], strides = [1, 1]} : vector<8x256xf32> to vector<8x128xf32>
    %99 = vector.extract_strided_slice %93 {offsets = [0, 0], sizes = [8, 128], strides = [1, 1]} : vector<8x256xf32> to vector<8x128xf32>
    %100 = arith.addf %98, %99 : vector<8x128xf32>
    %101 = vector.extract_strided_slice %90 {offsets = [0, 128], sizes = [8, 128], strides = [1, 1]} : vector<8x256xf32> to vector<8x128xf32>
    %102 = vector.extract_strided_slice %97 {offsets = [0, 128], sizes = [8, 128], strides = [1, 1]} : vector<8x256xf32> to vector<8x128xf32>
    %103 = arith.addf %101, %102 : vector<8x128xf32>
    %104 = vector.extract_strided_slice %100 {offsets = [0, 0], sizes = [8, 32], strides = [1, 1]} : vector<8x128xf32> to vector<8x32xf32>
    %105 = arith.negf %104 : vector<8x32xf32>
    %106 = math.exp %105 : vector<8x32xf32>
    %cst_37 = arith.constant 1.000000e+00 : f32
    %107 = vector.broadcast %cst_37 : f32 to vector<8x32xf32>
    %108 = arith.addf %107, %106 : vector<8x32xf32>
    %109 = arith.divf %107, %108 : vector<8x32xf32>
    %110 = vector.extract_strided_slice %100 {offsets = [0, 32], sizes = [8, 32], strides = [1, 1]} : vector<8x128xf32> to vector<8x32xf32>
    %111 = arith.negf %110 : vector<8x32xf32>
    %112 = math.exp %111 : vector<8x32xf32>
    %cst_38 = arith.constant 1.000000e+00 : f32
    %113 = vector.broadcast %cst_38 : f32 to vector<8x32xf32>
    %114 = arith.addf %113, %112 : vector<8x32xf32>
    %115 = arith.divf %113, %114 : vector<8x32xf32>
    %116 = vector.extract_strided_slice %100 {offsets = [0, 64], sizes = [8, 32], strides = [1, 1]} : vector<8x128xf32> to vector<8x32xf32>
    %117 = math.tanh %116 : vector<8x32xf32>
    %118 = vector.extract_strided_slice %100 {offsets = [0, 96], sizes = [8, 32], strides = [1, 1]} : vector<8x128xf32> to vector<8x32xf32>
    %119 = arith.negf %118 : vector<8x32xf32>
    %120 = math.exp %119 : vector<8x32xf32>
    %cst_39 = arith.constant 1.000000e+00 : f32
    %121 = vector.broadcast %cst_39 : f32 to vector<8x32xf32>
    %122 = arith.addf %121, %120 : vector<8x32xf32>
    %123 = arith.divf %121, %122 : vector<8x32xf32>
    %124 = vector.extract_strided_slice %103 {offsets = [0, 0], sizes = [8, 32], strides = [1, 1]} : vector<8x128xf32> to vector<8x32xf32>
    %125 = arith.negf %124 : vector<8x32xf32>
    %126 = math.exp %125 : vector<8x32xf32>
    %cst_40 = arith.constant 1.000000e+00 : f32
    %127 = vector.broadcast %cst_40 : f32 to vector<8x32xf32>
    %128 = arith.addf %127, %126 : vector<8x32xf32>
    %129 = arith.divf %127, %128 : vector<8x32xf32>
    %130 = vector.extract_strided_slice %103 {offsets = [0, 32], sizes = [8, 32], strides = [1, 1]} : vector<8x128xf32> to vector<8x32xf32>
    %131 = arith.negf %130 : vector<8x32xf32>
    %132 = math.exp %131 : vector<8x32xf32>
    %cst_41 = arith.constant 1.000000e+00 : f32
    %133 = vector.broadcast %cst_41 : f32 to vector<8x32xf32>
    %134 = arith.addf %133, %132 : vector<8x32xf32>
    %135 = arith.divf %133, %134 : vector<8x32xf32>
    %136 = vector.extract_strided_slice %103 {offsets = [0, 64], sizes = [8, 32], strides = [1, 1]} : vector<8x128xf32> to vector<8x32xf32>
    %137 = math.tanh %136 : vector<8x32xf32>
    %138 = vector.extract_strided_slice %103 {offsets = [0, 96], sizes = [8, 32], strides = [1, 1]} : vector<8x128xf32> to vector<8x32xf32>
    %139 = arith.negf %138 : vector<8x32xf32>
    %140 = math.exp %139 : vector<8x32xf32>
    %cst_42 = arith.constant 1.000000e+00 : f32
    %141 = vector.broadcast %cst_42 : f32 to vector<8x32xf32>
    %142 = arith.addf %141, %140 : vector<8x32xf32>
    %143 = arith.divf %141, %142 : vector<8x32xf32>
    %144 = vector.extract_strided_slice %88 {offsets = [0, 0], sizes = [8, 32], strides = [1, 1]} : vector<8x64xf32> to vector<8x32xf32>
    %145 = arith.mulf %115, %144 : vector<8x32xf32>
    %146 = arith.mulf %109, %117 : vector<8x32xf32>
    %147 = arith.addf %145, %146 : vector<8x32xf32>
    %148 = vector.extract_strided_slice %88 {offsets = [0, 32], sizes = [8, 32], strides = [1, 1]} : vector<8x64xf32> to vector<8x32xf32>
    %149 = arith.mulf %135, %148 : vector<8x32xf32>
    %150 = arith.mulf %129, %137 : vector<8x32xf32>
    %151 = arith.addf %149, %150 : vector<8x32xf32>
    %152 = math.tanh %147 : vector<8x32xf32>
    %153 = arith.mulf %123, %152 : vector<8x32xf32>
    %154 = math.tanh %151 : vector<8x32xf32>
    %155 = arith.mulf %143, %154 : vector<8x32xf32>
    %156 = arith.index_cast %c1_i32 : i32 to index
    %c0_43 = arith.constant 0 : index
    %c0_44 = arith.constant 0 : index
    %157 = vector.load %arg11[%156, %c0_43, %c0_44] : memref<8x8x32xf32, #tpu.memory_space<vmem>>, vector<1x8x32xf32>
    %158 = vector.shape_cast %157 : vector<1x8x32xf32> to vector<8x32xf32>
    %159 = vector.shape_cast %153 : vector<8x32xf32> to vector<1x8x32xf32>
    tpu.vector_store %arg11[%156, %c0_43, %c0_44], %159 {strides = array<i32>} : memref<8x8x32xf32, #tpu.memory_space<vmem>>, vector<1x8x32xf32>,
    %c7_i32_45 = arith.constant 7 : i32
    %160 = arith.subi %c7_i32_45, %c1_i32 : i32
    %161 = arith.index_cast %160 : i32 to index
    %c0_46 = arith.constant 0 : index
    %c0_47 = arith.constant 0 : index
    %162 = vector.load %arg12[%161, %c0_46, %c0_47] : memref<8x8x32xf32, #tpu.memory_space<vmem>>, vector<1x8x32xf32>
    %163 = vector.shape_cast %162 : vector<1x8x32xf32> to vector<8x32xf32>
    %164 = vector.shape_cast %155 : vector<8x32xf32> to vector<1x8x32xf32>
    tpu.vector_store %arg12[%161, %c0_46, %c0_47], %164 {strides = array<i32>} : memref<8x8x32xf32, #tpu.memory_space<vmem>>, vector<1x8x32xf32>,
    %165 = tpu.concatenate %153, %155 in 1 : vector<8x32xf32>, vector<8x32xf32> -> vector<8x64xf32>
    %166 = tpu.concatenate %147, %151 in 1 : vector<8x32xf32>, vector<8x32xf32> -> vector<8x64xf32>
    %c2_i32 = arith.constant 2 : i32
    %c0_48 = arith.constant 0 : index
    %c0_49 = arith.constant 0 : index
    %167 = vector.load %arg2[%c0_48, %c0_49] : memref<64x256xf32, #tpu.memory_space<vmem>>, vector<64x256xf32>
    %cst_50 = arith.constant dense<0.000000e+00> : vector<8x256xf32>
    %168 = tpu.matmul %165, %167, %cst_50 {dimension_numbers = #tpu.dot_dimension_numbers<[1], [0], [0], [1], [0, 0, 1, 1], [], []>} : vector<8x64xf32>, vector<64x256xf32>, vector<8x256xf32> -> vector<8x256xf32>
    %169 = arith.index_cast %c2_i32 : i32 to index
    %c0_51 = arith.constant 0 : index
    %c0_52 = arith.constant 0 : index
    %170 = vector.load %arg10[%169, %c0_51, %c0_52] : memref<8x8x256xf32, #tpu.memory_space<vmem>>, vector<1x8x256xf32>
    %171 = vector.shape_cast %170 : vector<1x8x256xf32> to vector<8x256xf32>
    %c7_i32_53 = arith.constant 7 : i32
    %172 = arith.subi %c7_i32_53, %c2_i32 : i32
    %173 = arith.index_cast %172 : i32 to index
    %c0_54 = arith.constant 0 : index
    %c0_55 = arith.constant 0 : index
    %174 = vector.load %arg10[%173, %c0_54, %c0_55] : memref<8x8x256xf32, #tpu.memory_space<vmem>>, vector<1x8x256xf32>
    %175 = vector.shape_cast %174 : vector<1x8x256xf32> to vector<8x256xf32>
    %176 = vector.extract_strided_slice %168 {offsets = [0, 0], sizes = [8, 128], strides = [1, 1]} : vector<8x256xf32> to vector<8x128xf32>
    %177 = vector.extract_strided_slice %171 {offsets = [0, 0], sizes = [8, 128], strides = [1, 1]} : vector<8x256xf32> to vector<8x128xf32>
    %178 = arith.addf %176, %177 : vector<8x128xf32>
    %179 = vector.extract_strided_slice %168 {offsets = [0, 128], sizes = [8, 128], strides = [1, 1]} : vector<8x256xf32> to vector<8x128xf32>
    %180 = vector.extract_strided_slice %175 {offsets = [0, 128], sizes = [8, 128], strides = [1, 1]} : vector<8x256xf32> to vector<8x128xf32>
    %181 = arith.addf %179, %180 : vector<8x128xf32>
    %182 = vector.extract_strided_slice %178 {offsets = [0, 0], sizes = [8, 32], strides = [1, 1]} : vector<8x128xf32> to vector<8x32xf32>
    %183 = arith.negf %182 : vector<8x32xf32>
    %184 = math.exp %183 : vector<8x32xf32>
    %cst_56 = arith.constant 1.000000e+00 : f32
    %185 = vector.broadcast %cst_56 : f32 to vector<8x32xf32>
    %186 = arith.addf %185, %184 : vector<8x32xf32>
    %187 = arith.divf %185, %186 : vector<8x32xf32>
    %188 = vector.extract_strided_slice %178 {offsets = [0, 32], sizes = [8, 32], strides = [1, 1]} : vector<8x128xf32> to vector<8x32xf32>
    %189 = arith.negf %188 : vector<8x32xf32>
    %190 = math.exp %189 : vector<8x32xf32>
    %cst_57 = arith.constant 1.000000e+00 : f32
    %191 = vector.broadcast %cst_57 : f32 to vector<8x32xf32>
    %192 = arith.addf %191, %190 : vector<8x32xf32>
    %193 = arith.divf %191, %192 : vector<8x32xf32>
    %194 = vector.extract_strided_slice %178 {offsets = [0, 64], sizes = [8, 32], strides = [1, 1]} : vector<8x128xf32> to vector<8x32xf32>
    %195 = math.tanh %194 : vector<8x32xf32>
    %196 = vector.extract_strided_slice %178 {offsets = [0, 96], sizes = [8, 32], strides = [1, 1]} : vector<8x128xf32> to vector<8x32xf32>
    %197 = arith.negf %196 : vector<8x32xf32>
    %198 = math.exp %197 : vector<8x32xf32>
    %cst_58 = arith.constant 1.000000e+00 : f32
    %199 = vector.broadcast %cst_58 : f32 to vector<8x32xf32>
    %200 = arith.addf %199, %198 : vector<8x32xf32>
    %201 = arith.divf %199, %200 : vector<8x32xf32>
    %202 = vector.extract_strided_slice %181 {offsets = [0, 0], sizes = [8, 32], strides = [1, 1]} : vector<8x128xf32> to vector<8x32xf32>
    %203 = arith.negf %202 : vector<8x32xf32>
    %204 = math.exp %203 : vector<8x32xf32>
    %cst_59 = arith.constant 1.000000e+00 : f32
    %205 = vector.broadcast %cst_59 : f32 to vector<8x32xf32>
    %206 = arith.addf %205, %204 : vector<8x32xf32>
    %207 = arith.divf %205, %206 : vector<8x32xf32>
    %208 = vector.extract_strided_slice %181 {offsets = [0, 32], sizes = [8, 32], strides = [1, 1]} : vector<8x128xf32> to vector<8x32xf32>
    %209 = arith.negf %208 : vector<8x32xf32>
    %210 = math.exp %209 : vector<8x32xf32>
    %cst_60 = arith.constant 1.000000e+00 : f32
    %211 = vector.broadcast %cst_60 : f32 to vector<8x32xf32>
    %212 = arith.addf %211, %210 : vector<8x32xf32>
    %213 = arith.divf %211, %212 : vector<8x32xf32>
    %214 = vector.extract_strided_slice %181 {offsets = [0, 64], sizes = [8, 32], strides = [1, 1]} : vector<8x128xf32> to vector<8x32xf32>
    %215 = math.tanh %214 : vector<8x32xf32>
    %216 = vector.extract_strided_slice %181 {offsets = [0, 96], sizes = [8, 32], strides = [1, 1]} : vector<8x128xf32> to vector<8x32xf32>
    %217 = arith.negf %216 : vector<8x32xf32>
    %218 = math.exp %217 : vector<8x32xf32>
    %cst_61 = arith.constant 1.000000e+00 : f32
    %219 = vector.broadcast %cst_61 : f32 to vector<8x32xf32>
    %220 = arith.addf %219, %218 : vector<8x32xf32>
    %221 = arith.divf %219, %220 : vector<8x32xf32>
    %222 = vector.extract_strided_slice %166 {offsets = [0, 0], sizes = [8, 32], strides = [1, 1]} : vector<8x64xf32> to vector<8x32xf32>
    %223 = arith.mulf %193, %222 : vector<8x32xf32>
    %224 = arith.mulf %187, %195 : vector<8x32xf32>
    %225 = arith.addf %223, %224 : vector<8x32xf32>
    %226 = vector.extract_strided_slice %166 {offsets = [0, 32], sizes = [8, 32], strides = [1, 1]} : vector<8x64xf32> to vector<8x32xf32>
    %227 = arith.mulf %213, %226 : vector<8x32xf32>
    %228 = arith.mulf %207, %215 : vector<8x32xf32>
    %229 = arith.addf %227, %228 : vector<8x32xf32>
    %230 = math.tanh %225 : vector<8x32xf32>
    %231 = arith.mulf %201, %230 : vector<8x32xf32>
    %232 = math.tanh %229 : vector<8x32xf32>
    %233 = arith.mulf %221, %232 : vector<8x32xf32>
    %234 = arith.index_cast %c2_i32 : i32 to index
    %c0_62 = arith.constant 0 : index
    %c0_63 = arith.constant 0 : index
    %235 = vector.load %arg11[%234, %c0_62, %c0_63] : memref<8x8x32xf32, #tpu.memory_space<vmem>>, vector<1x8x32xf32>
    %236 = vector.shape_cast %235 : vector<1x8x32xf32> to vector<8x32xf32>
    %237 = vector.shape_cast %231 : vector<8x32xf32> to vector<1x8x32xf32>
    tpu.vector_store %arg11[%234, %c0_62, %c0_63], %237 {strides = array<i32>} : memref<8x8x32xf32, #tpu.memory_space<vmem>>, vector<1x8x32xf32>,
    %c7_i32_64 = arith.constant 7 : i32
    %238 = arith.subi %c7_i32_64, %c2_i32 : i32
    %239 = arith.index_cast %238 : i32 to index
    %c0_65 = arith.constant 0 : index
    %c0_66 = arith.constant 0 : index
    %240 = vector.load %arg12[%239, %c0_65, %c0_66] : memref<8x8x32xf32, #tpu.memory_space<vmem>>, vector<1x8x32xf32>
    %241 = vector.shape_cast %240 : vector<1x8x32xf32> to vector<8x32xf32>
    %242 = vector.shape_cast %233 : vector<8x32xf32> to vector<1x8x32xf32>
    tpu.vector_store %arg12[%239, %c0_65, %c0_66], %242 {strides = array<i32>} : memref<8x8x32xf32, #tpu.memory_space<vmem>>, vector<1x8x32xf32>,
    %243 = tpu.concatenate %231, %233 in 1 : vector<8x32xf32>, vector<8x32xf32> -> vector<8x64xf32>
    %244 = tpu.concatenate %225, %229 in 1 : vector<8x32xf32>, vector<8x32xf32> -> vector<8x64xf32>
    %c3_i32 = arith.constant 3 : i32
    %c0_67 = arith.constant 0 : index
    %c0_68 = arith.constant 0 : index
    %245 = vector.load %arg2[%c0_67, %c0_68] : memref<64x256xf32, #tpu.memory_space<vmem>>, vector<64x256xf32>
    %cst_69 = arith.constant dense<0.000000e+00> : vector<8x256xf32>
    %246 = tpu.matmul %243, %245, %cst_69 {dimension_numbers = #tpu.dot_dimension_numbers<[1], [0], [0], [1], [0, 0, 1, 1], [], []>} : vector<8x64xf32>, vector<64x256xf32>, vector<8x256xf32> -> vector<8x256xf32>
    %247 = arith.index_cast %c3_i32 : i32 to index
    %c0_70 = arith.constant 0 : index
    %c0_71 = arith.constant 0 : index
    %248 = vector.load %arg10[%247, %c0_70, %c0_71] : memref<8x8x256xf32, #tpu.memory_space<vmem>>, vector<1x8x256xf32>
    %249 = vector.shape_cast %248 : vector<1x8x256xf32> to vector<8x256xf32>
    %c7_i32_72 = arith.constant 7 : i32
    %250 = arith.subi %c7_i32_72, %c3_i32 : i32
    %251 = arith.index_cast %250 : i32 to index
    %c0_73 = arith.constant 0 : index
    %c0_74 = arith.constant 0 : index
    %252 = vector.load %arg10[%251, %c0_73, %c0_74] : memref<8x8x256xf32, #tpu.memory_space<vmem>>, vector<1x8x256xf32>
    %253 = vector.shape_cast %252 : vector<1x8x256xf32> to vector<8x256xf32>
    %254 = vector.extract_strided_slice %246 {offsets = [0, 0], sizes = [8, 128], strides = [1, 1]} : vector<8x256xf32> to vector<8x128xf32>
    %255 = vector.extract_strided_slice %249 {offsets = [0, 0], sizes = [8, 128], strides = [1, 1]} : vector<8x256xf32> to vector<8x128xf32>
    %256 = arith.addf %254, %255 : vector<8x128xf32>
    %257 = vector.extract_strided_slice %246 {offsets = [0, 128], sizes = [8, 128], strides = [1, 1]} : vector<8x256xf32> to vector<8x128xf32>
    %258 = vector.extract_strided_slice %253 {offsets = [0, 128], sizes = [8, 128], strides = [1, 1]} : vector<8x256xf32> to vector<8x128xf32>
    %259 = arith.addf %257, %258 : vector<8x128xf32>
    %260 = vector.extract_strided_slice %256 {offsets = [0, 0], sizes = [8, 32], strides = [1, 1]} : vector<8x128xf32> to vector<8x32xf32>
    %261 = arith.negf %260 : vector<8x32xf32>
    %262 = math.exp %261 : vector<8x32xf32>
    %cst_75 = arith.constant 1.000000e+00 : f32
    %263 = vector.broadcast %cst_75 : f32 to vector<8x32xf32>
    %264 = arith.addf %263, %262 : vector<8x32xf32>
    %265 = arith.divf %263, %264 : vector<8x32xf32>
    %266 = vector.extract_strided_slice %256 {offsets = [0, 32], sizes = [8, 32], strides = [1, 1]} : vector<8x128xf32> to vector<8x32xf32>
    %267 = arith.negf %266 : vector<8x32xf32>
    %268 = math.exp %267 : vector<8x32xf32>
    %cst_76 = arith.constant 1.000000e+00 : f32
    %269 = vector.broadcast %cst_76 : f32 to vector<8x32xf32>
    %270 = arith.addf %269, %268 : vector<8x32xf32>
    %271 = arith.divf %269, %270 : vector<8x32xf32>
    %272 = vector.extract_strided_slice %256 {offsets = [0, 64], sizes = [8, 32], strides = [1, 1]} : vector<8x128xf32> to vector<8x32xf32>
    %273 = math.tanh %272 : vector<8x32xf32>
    %274 = vector.extract_strided_slice %256 {offsets = [0, 96], sizes = [8, 32], strides = [1, 1]} : vector<8x128xf32> to vector<8x32xf32>
    %275 = arith.negf %274 : vector<8x32xf32>
    %276 = math.exp %275 : vector<8x32xf32>
    %cst_77 = arith.constant 1.000000e+00 : f32
    %277 = vector.broadcast %cst_77 : f32 to vector<8x32xf32>
    %278 = arith.addf %277, %276 : vector<8x32xf32>
    %279 = arith.divf %277, %278 : vector<8x32xf32>
    %280 = vector.extract_strided_slice %259 {offsets = [0, 0], sizes = [8, 32], strides = [1, 1]} : vector<8x128xf32> to vector<8x32xf32>
    %281 = arith.negf %280 : vector<8x32xf32>
    %282 = math.exp %281 : vector<8x32xf32>
    %cst_78 = arith.constant 1.000000e+00 : f32
    %283 = vector.broadcast %cst_78 : f32 to vector<8x32xf32>
    %284 = arith.addf %283, %282 : vector<8x32xf32>
    %285 = arith.divf %283, %284 : vector<8x32xf32>
    %286 = vector.extract_strided_slice %259 {offsets = [0, 32], sizes = [8, 32], strides = [1, 1]} : vector<8x128xf32> to vector<8x32xf32>
    %287 = arith.negf %286 : vector<8x32xf32>
    %288 = math.exp %287 : vector<8x32xf32>
    %cst_79 = arith.constant 1.000000e+00 : f32
    %289 = vector.broadcast %cst_79 : f32 to vector<8x32xf32>
    %290 = arith.addf %289, %288 : vector<8x32xf32>
    %291 = arith.divf %289, %290 : vector<8x32xf32>
    %292 = vector.extract_strided_slice %259 {offsets = [0, 64], sizes = [8, 32], strides = [1, 1]} : vector<8x128xf32> to vector<8x32xf32>
    %293 = math.tanh %292 : vector<8x32xf32>
    %294 = vector.extract_strided_slice %259 {offsets = [0, 96], sizes = [8, 32], strides = [1, 1]} : vector<8x128xf32> to vector<8x32xf32>
    %295 = arith.negf %294 : vector<8x32xf32>
    %296 = math.exp %295 : vector<8x32xf32>
    %cst_80 = arith.constant 1.000000e+00 : f32
    %297 = vector.broadcast %cst_80 : f32 to vector<8x32xf32>
    %298 = arith.addf %297, %296 : vector<8x32xf32>
    %299 = arith.divf %297, %298 : vector<8x32xf32>
    %300 = vector.extract_strided_slice %244 {offsets = [0, 0], sizes = [8, 32], strides = [1, 1]} : vector<8x64xf32> to vector<8x32xf32>
    %301 = arith.mulf %271, %300 : vector<8x32xf32>
    %302 = arith.mulf %265, %273 : vector<8x32xf32>
    %303 = arith.addf %301, %302 : vector<8x32xf32>
    %304 = vector.extract_strided_slice %244 {offsets = [0, 32], sizes = [8, 32], strides = [1, 1]} : vector<8x64xf32> to vector<8x32xf32>
    %305 = arith.mulf %291, %304 : vector<8x32xf32>
    %306 = arith.mulf %285, %293 : vector<8x32xf32>
    %307 = arith.addf %305, %306 : vector<8x32xf32>
    %308 = math.tanh %303 : vector<8x32xf32>
    %309 = arith.mulf %279, %308 : vector<8x32xf32>
    %310 = math.tanh %307 : vector<8x32xf32>
    %311 = arith.mulf %299, %310 : vector<8x32xf32>
    %312 = arith.index_cast %c3_i32 : i32 to index
    %c0_81 = arith.constant 0 : index
    %c0_82 = arith.constant 0 : index
    %313 = vector.load %arg11[%312, %c0_81, %c0_82] : memref<8x8x32xf32, #tpu.memory_space<vmem>>, vector<1x8x32xf32>
    %314 = vector.shape_cast %313 : vector<1x8x32xf32> to vector<8x32xf32>
    %315 = vector.shape_cast %309 : vector<8x32xf32> to vector<1x8x32xf32>
    tpu.vector_store %arg11[%312, %c0_81, %c0_82], %315 {strides = array<i32>} : memref<8x8x32xf32, #tpu.memory_space<vmem>>, vector<1x8x32xf32>,
    %c7_i32_83 = arith.constant 7 : i32
    %316 = arith.subi %c7_i32_83, %c3_i32 : i32
    %317 = arith.index_cast %316 : i32 to index
    %c0_84 = arith.constant 0 : index
    %c0_85 = arith.constant 0 : index
    %318 = vector.load %arg12[%317, %c0_84, %c0_85] : memref<8x8x32xf32, #tpu.memory_space<vmem>>, vector<1x8x32xf32>
    %319 = vector.shape_cast %318 : vector<1x8x32xf32> to vector<8x32xf32>
    %320 = vector.shape_cast %311 : vector<8x32xf32> to vector<1x8x32xf32>
    tpu.vector_store %arg12[%317, %c0_84, %c0_85], %320 {strides = array<i32>} : memref<8x8x32xf32, #tpu.memory_space<vmem>>, vector<1x8x32xf32>,
    %321 = tpu.concatenate %309, %311 in 1 : vector<8x32xf32>, vector<8x32xf32> -> vector<8x64xf32>
    %322 = tpu.concatenate %303, %307 in 1 : vector<8x32xf32>, vector<8x32xf32> -> vector<8x64xf32>
    %c4_i32 = arith.constant 4 : i32
    %c0_86 = arith.constant 0 : index
    %c0_87 = arith.constant 0 : index
    %323 = vector.load %arg2[%c0_86, %c0_87] : memref<64x256xf32, #tpu.memory_space<vmem>>, vector<64x256xf32>
    %cst_88 = arith.constant dense<0.000000e+00> : vector<8x256xf32>
    %324 = tpu.matmul %321, %323, %cst_88 {dimension_numbers = #tpu.dot_dimension_numbers<[1], [0], [0], [1], [0, 0, 1, 1], [], []>} : vector<8x64xf32>, vector<64x256xf32>, vector<8x256xf32> -> vector<8x256xf32>
    %325 = arith.index_cast %c4_i32 : i32 to index
    %c0_89 = arith.constant 0 : index
    %c0_90 = arith.constant 0 : index
    %326 = vector.load %arg10[%325, %c0_89, %c0_90] : memref<8x8x256xf32, #tpu.memory_space<vmem>>, vector<1x8x256xf32>
    %327 = vector.shape_cast %326 : vector<1x8x256xf32> to vector<8x256xf32>
    %c7_i32_91 = arith.constant 7 : i32
    %328 = arith.subi %c7_i32_91, %c4_i32 : i32
    %329 = arith.index_cast %328 : i32 to index
    %c0_92 = arith.constant 0 : index
    %c0_93 = arith.constant 0 : index
    %330 = vector.load %arg10[%329, %c0_92, %c0_93] : memref<8x8x256xf32, #tpu.memory_space<vmem>>, vector<1x8x256xf32>
    %331 = vector.shape_cast %330 : vector<1x8x256xf32> to vector<8x256xf32>
    %332 = vector.extract_strided_slice %324 {offsets = [0, 0], sizes = [8, 128], strides = [1, 1]} : vector<8x256xf32> to vector<8x128xf32>
    %333 = vector.extract_strided_slice %327 {offsets = [0, 0], sizes = [8, 128], strides = [1, 1]} : vector<8x256xf32> to vector<8x128xf32>
    %334 = arith.addf %332, %333 : vector<8x128xf32>
    %335 = vector.extract_strided_slice %324 {offsets = [0, 128], sizes = [8, 128], strides = [1, 1]} : vector<8x256xf32> to vector<8x128xf32>
    %336 = vector.extract_strided_slice %331 {offsets = [0, 128], sizes = [8, 128], strides = [1, 1]} : vector<8x256xf32> to vector<8x128xf32>
    %337 = arith.addf %335, %336 : vector<8x128xf32>
    %338 = vector.extract_strided_slice %334 {offsets = [0, 0], sizes = [8, 32], strides = [1, 1]} : vector<8x128xf32> to vector<8x32xf32>
    %339 = arith.negf %338 : vector<8x32xf32>
    %340 = math.exp %339 : vector<8x32xf32>
    %cst_94 = arith.constant 1.000000e+00 : f32
    %341 = vector.broadcast %cst_94 : f32 to vector<8x32xf32>
    %342 = arith.addf %341, %340 : vector<8x32xf32>
    %343 = arith.divf %341, %342 : vector<8x32xf32>
    %344 = vector.extract_strided_slice %334 {offsets = [0, 32], sizes = [8, 32], strides = [1, 1]} : vector<8x128xf32> to vector<8x32xf32>
    %345 = arith.negf %344 : vector<8x32xf32>
    %346 = math.exp %345 : vector<8x32xf32>
    %cst_95 = arith.constant 1.000000e+00 : f32
    %347 = vector.broadcast %cst_95 : f32 to vector<8x32xf32>
    %348 = arith.addf %347, %346 : vector<8x32xf32>
    %349 = arith.divf %347, %348 : vector<8x32xf32>
    %350 = vector.extract_strided_slice %334 {offsets = [0, 64], sizes = [8, 32], strides = [1, 1]} : vector<8x128xf32> to vector<8x32xf32>
    %351 = math.tanh %350 : vector<8x32xf32>
    %352 = vector.extract_strided_slice %334 {offsets = [0, 96], sizes = [8, 32], strides = [1, 1]} : vector<8x128xf32> to vector<8x32xf32>
    %353 = arith.negf %352 : vector<8x32xf32>
    %354 = math.exp %353 : vector<8x32xf32>
    %cst_96 = arith.constant 1.000000e+00 : f32
    %355 = vector.broadcast %cst_96 : f32 to vector<8x32xf32>
    %356 = arith.addf %355, %354 : vector<8x32xf32>
    %357 = arith.divf %355, %356 : vector<8x32xf32>
    %358 = vector.extract_strided_slice %337 {offsets = [0, 0], sizes = [8, 32], strides = [1, 1]} : vector<8x128xf32> to vector<8x32xf32>
    %359 = arith.negf %358 : vector<8x32xf32>
    %360 = math.exp %359 : vector<8x32xf32>
    %cst_97 = arith.constant 1.000000e+00 : f32
    %361 = vector.broadcast %cst_97 : f32 to vector<8x32xf32>
    %362 = arith.addf %361, %360 : vector<8x32xf32>
    %363 = arith.divf %361, %362 : vector<8x32xf32>
    %364 = vector.extract_strided_slice %337 {offsets = [0, 32], sizes = [8, 32], strides = [1, 1]} : vector<8x128xf32> to vector<8x32xf32>
    %365 = arith.negf %364 : vector<8x32xf32>
    %366 = math.exp %365 : vector<8x32xf32>
    %cst_98 = arith.constant 1.000000e+00 : f32
    %367 = vector.broadcast %cst_98 : f32 to vector<8x32xf32>
    %368 = arith.addf %367, %366 : vector<8x32xf32>
    %369 = arith.divf %367, %368 : vector<8x32xf32>
    %370 = vector.extract_strided_slice %337 {offsets = [0, 64], sizes = [8, 32], strides = [1, 1]} : vector<8x128xf32> to vector<8x32xf32>
    %371 = math.tanh %370 : vector<8x32xf32>
    %372 = vector.extract_strided_slice %337 {offsets = [0, 96], sizes = [8, 32], strides = [1, 1]} : vector<8x128xf32> to vector<8x32xf32>
    %373 = arith.negf %372 : vector<8x32xf32>
    %374 = math.exp %373 : vector<8x32xf32>
    %cst_99 = arith.constant 1.000000e+00 : f32
    %375 = vector.broadcast %cst_99 : f32 to vector<8x32xf32>
    %376 = arith.addf %375, %374 : vector<8x32xf32>
    %377 = arith.divf %375, %376 : vector<8x32xf32>
    %378 = vector.extract_strided_slice %322 {offsets = [0, 0], sizes = [8, 32], strides = [1, 1]} : vector<8x64xf32> to vector<8x32xf32>
    %379 = arith.mulf %349, %378 : vector<8x32xf32>
    %380 = arith.mulf %343, %351 : vector<8x32xf32>
    %381 = arith.addf %379, %380 : vector<8x32xf32>
    %382 = vector.extract_strided_slice %322 {offsets = [0, 32], sizes = [8, 32], strides = [1, 1]} : vector<8x64xf32> to vector<8x32xf32>
    %383 = arith.mulf %369, %382 : vector<8x32xf32>
    %384 = arith.mulf %363, %371 : vector<8x32xf32>
    %385 = arith.addf %383, %384 : vector<8x32xf32>
    %386 = math.tanh %381 : vector<8x32xf32>
    %387 = arith.mulf %357, %386 : vector<8x32xf32>
    %388 = math.tanh %385 : vector<8x32xf32>
    %389 = arith.mulf %377, %388 : vector<8x32xf32>
    %390 = arith.index_cast %c4_i32 : i32 to index
    %c0_100 = arith.constant 0 : index
    %c0_101 = arith.constant 0 : index
    %391 = vector.load %arg11[%390, %c0_100, %c0_101] : memref<8x8x32xf32, #tpu.memory_space<vmem>>, vector<1x8x32xf32>
    %392 = vector.shape_cast %391 : vector<1x8x32xf32> to vector<8x32xf32>
    %393 = vector.shape_cast %387 : vector<8x32xf32> to vector<1x8x32xf32>
    tpu.vector_store %arg11[%390, %c0_100, %c0_101], %393 {strides = array<i32>} : memref<8x8x32xf32, #tpu.memory_space<vmem>>, vector<1x8x32xf32>,
    %c7_i32_102 = arith.constant 7 : i32
    %394 = arith.subi %c7_i32_102, %c4_i32 : i32
    %395 = arith.index_cast %394 : i32 to index
    %c0_103 = arith.constant 0 : index
    %c0_104 = arith.constant 0 : index
    %396 = vector.load %arg12[%395, %c0_103, %c0_104] : memref<8x8x32xf32, #tpu.memory_space<vmem>>, vector<1x8x32xf32>
    %397 = vector.shape_cast %396 : vector<1x8x32xf32> to vector<8x32xf32>
    %398 = vector.shape_cast %389 : vector<8x32xf32> to vector<1x8x32xf32>
    tpu.vector_store %arg12[%395, %c0_103, %c0_104], %398 {strides = array<i32>} : memref<8x8x32xf32, #tpu.memory_space<vmem>>, vector<1x8x32xf32>,
    %399 = tpu.concatenate %387, %389 in 1 : vector<8x32xf32>, vector<8x32xf32> -> vector<8x64xf32>
    %400 = tpu.concatenate %381, %385 in 1 : vector<8x32xf32>, vector<8x32xf32> -> vector<8x64xf32>
    %c5_i32 = arith.constant 5 : i32
    %c0_105 = arith.constant 0 : index
    %c0_106 = arith.constant 0 : index
    %401 = vector.load %arg2[%c0_105, %c0_106] : memref<64x256xf32, #tpu.memory_space<vmem>>, vector<64x256xf32>
    %cst_107 = arith.constant dense<0.000000e+00> : vector<8x256xf32>
    %402 = tpu.matmul %399, %401, %cst_107 {dimension_numbers = #tpu.dot_dimension_numbers<[1], [0], [0], [1], [0, 0, 1, 1], [], []>} : vector<8x64xf32>, vector<64x256xf32>, vector<8x256xf32> -> vector<8x256xf32>
    %403 = arith.index_cast %c5_i32 : i32 to index
    %c0_108 = arith.constant 0 : index
    %c0_109 = arith.constant 0 : index
    %404 = vector.load %arg10[%403, %c0_108, %c0_109] : memref<8x8x256xf32, #tpu.memory_space<vmem>>, vector<1x8x256xf32>
    %405 = vector.shape_cast %404 : vector<1x8x256xf32> to vector<8x256xf32>
    %c7_i32_110 = arith.constant 7 : i32
    %406 = arith.subi %c7_i32_110, %c5_i32 : i32
    %407 = arith.index_cast %406 : i32 to index
    %c0_111 = arith.constant 0 : index
    %c0_112 = arith.constant 0 : index
    %408 = vector.load %arg10[%407, %c0_111, %c0_112] : memref<8x8x256xf32, #tpu.memory_space<vmem>>, vector<1x8x256xf32>
    %409 = vector.shape_cast %408 : vector<1x8x256xf32> to vector<8x256xf32>
    %410 = vector.extract_strided_slice %402 {offsets = [0, 0], sizes = [8, 128], strides = [1, 1]} : vector<8x256xf32> to vector<8x128xf32>
    %411 = vector.extract_strided_slice %405 {offsets = [0, 0], sizes = [8, 128], strides = [1, 1]} : vector<8x256xf32> to vector<8x128xf32>
    %412 = arith.addf %410, %411 : vector<8x128xf32>
    %413 = vector.extract_strided_slice %402 {offsets = [0, 128], sizes = [8, 128], strides = [1, 1]} : vector<8x256xf32> to vector<8x128xf32>
    %414 = vector.extract_strided_slice %409 {offsets = [0, 128], sizes = [8, 128], strides = [1, 1]} : vector<8x256xf32> to vector<8x128xf32>
    %415 = arith.addf %413, %414 : vector<8x128xf32>
    %416 = vector.extract_strided_slice %412 {offsets = [0, 0], sizes = [8, 32], strides = [1, 1]} : vector<8x128xf32> to vector<8x32xf32>
    %417 = arith.negf %416 : vector<8x32xf32>
    %418 = math.exp %417 : vector<8x32xf32>
    %cst_113 = arith.constant 1.000000e+00 : f32
    %419 = vector.broadcast %cst_113 : f32 to vector<8x32xf32>
    %420 = arith.addf %419, %418 : vector<8x32xf32>
    %421 = arith.divf %419, %420 : vector<8x32xf32>
    %422 = vector.extract_strided_slice %412 {offsets = [0, 32], sizes = [8, 32], strides = [1, 1]} : vector<8x128xf32> to vector<8x32xf32>
    %423 = arith.negf %422 : vector<8x32xf32>
    %424 = math.exp %423 : vector<8x32xf32>
    %cst_114 = arith.constant 1.000000e+00 : f32
    %425 = vector.broadcast %cst_114 : f32 to vector<8x32xf32>
    %426 = arith.addf %425, %424 : vector<8x32xf32>
    %427 = arith.divf %425, %426 : vector<8x32xf32>
    %428 = vector.extract_strided_slice %412 {offsets = [0, 64], sizes = [8, 32], strides = [1, 1]} : vector<8x128xf32> to vector<8x32xf32>
    %429 = math.tanh %428 : vector<8x32xf32>
    %430 = vector.extract_strided_slice %412 {offsets = [0, 96], sizes = [8, 32], strides = [1, 1]} : vector<8x128xf32> to vector<8x32xf32>
    %431 = arith.negf %430 : vector<8x32xf32>
    %432 = math.exp %431 : vector<8x32xf32>
    %cst_115 = arith.constant 1.000000e+00 : f32
    %433 = vector.broadcast %cst_115 : f32 to vector<8x32xf32>
    %434 = arith.addf %433, %432 : vector<8x32xf32>
    %435 = arith.divf %433, %434 : vector<8x32xf32>
    %436 = vector.extract_strided_slice %415 {offsets = [0, 0], sizes = [8, 32], strides = [1, 1]} : vector<8x128xf32> to vector<8x32xf32>
    %437 = arith.negf %436 : vector<8x32xf32>
    %438 = math.exp %437 : vector<8x32xf32>
    %cst_116 = arith.constant 1.000000e+00 : f32
    %439 = vector.broadcast %cst_116 : f32 to vector<8x32xf32>
    %440 = arith.addf %439, %438 : vector<8x32xf32>
    %441 = arith.divf %439, %440 : vector<8x32xf32>
    %442 = vector.extract_strided_slice %415 {offsets = [0, 32], sizes = [8, 32], strides = [1, 1]} : vector<8x128xf32> to vector<8x32xf32>
    %443 = arith.negf %442 : vector<8x32xf32>
    %444 = math.exp %443 : vector<8x32xf32>
    %cst_117 = arith.constant 1.000000e+00 : f32
    %445 = vector.broadcast %cst_117 : f32 to vector<8x32xf32>
    %446 = arith.addf %445, %444 : vector<8x32xf32>
    %447 = arith.divf %445, %446 : vector<8x32xf32>
    %448 = vector.extract_strided_slice %415 {offsets = [0, 64], sizes = [8, 32], strides = [1, 1]} : vector<8x128xf32> to vector<8x32xf32>
    %449 = math.tanh %448 : vector<8x32xf32>
    %450 = vector.extract_strided_slice %415 {offsets = [0, 96], sizes = [8, 32], strides = [1, 1]} : vector<8x128xf32> to vector<8x32xf32>
    %451 = arith.negf %450 : vector<8x32xf32>
    %452 = math.exp %451 : vector<8x32xf32>
    %cst_118 = arith.constant 1.000000e+00 : f32
    %453 = vector.broadcast %cst_118 : f32 to vector<8x32xf32>
    %454 = arith.addf %453, %452 : vector<8x32xf32>
    %455 = arith.divf %453, %454 : vector<8x32xf32>
    %456 = vector.extract_strided_slice %400 {offsets = [0, 0], sizes = [8, 32], strides = [1, 1]} : vector<8x64xf32> to vector<8x32xf32>
    %457 = arith.mulf %427, %456 : vector<8x32xf32>
    %458 = arith.mulf %421, %429 : vector<8x32xf32>
    %459 = arith.addf %457, %458 : vector<8x32xf32>
    %460 = vector.extract_strided_slice %400 {offsets = [0, 32], sizes = [8, 32], strides = [1, 1]} : vector<8x64xf32> to vector<8x32xf32>
    %461 = arith.mulf %447, %460 : vector<8x32xf32>
    %462 = arith.mulf %441, %449 : vector<8x32xf32>
    %463 = arith.addf %461, %462 : vector<8x32xf32>
    %464 = math.tanh %459 : vector<8x32xf32>
    %465 = arith.mulf %435, %464 : vector<8x32xf32>
    %466 = math.tanh %463 : vector<8x32xf32>
    %467 = arith.mulf %455, %466 : vector<8x32xf32>
    %468 = arith.index_cast %c5_i32 : i32 to index
    %c0_119 = arith.constant 0 : index
    %c0_120 = arith.constant 0 : index
    %469 = vector.load %arg11[%468, %c0_119, %c0_120] : memref<8x8x32xf32, #tpu.memory_space<vmem>>, vector<1x8x32xf32>
    %470 = vector.shape_cast %469 : vector<1x8x32xf32> to vector<8x32xf32>
    %471 = vector.shape_cast %465 : vector<8x32xf32> to vector<1x8x32xf32>
    tpu.vector_store %arg11[%468, %c0_119, %c0_120], %471 {strides = array<i32>} : memref<8x8x32xf32, #tpu.memory_space<vmem>>, vector<1x8x32xf32>,
    %c7_i32_121 = arith.constant 7 : i32
    %472 = arith.subi %c7_i32_121, %c5_i32 : i32
    %473 = arith.index_cast %472 : i32 to index
    %c0_122 = arith.constant 0 : index
    %c0_123 = arith.constant 0 : index
    %474 = vector.load %arg12[%473, %c0_122, %c0_123] : memref<8x8x32xf32, #tpu.memory_space<vmem>>, vector<1x8x32xf32>
    %475 = vector.shape_cast %474 : vector<1x8x32xf32> to vector<8x32xf32>
    %476 = vector.shape_cast %467 : vector<8x32xf32> to vector<1x8x32xf32>
    tpu.vector_store %arg12[%473, %c0_122, %c0_123], %476 {strides = array<i32>} : memref<8x8x32xf32, #tpu.memory_space<vmem>>, vector<1x8x32xf32>,
    %477 = tpu.concatenate %465, %467 in 1 : vector<8x32xf32>, vector<8x32xf32> -> vector<8x64xf32>
    %478 = tpu.concatenate %459, %463 in 1 : vector<8x32xf32>, vector<8x32xf32> -> vector<8x64xf32>
    %c6_i32 = arith.constant 6 : i32
    %c0_124 = arith.constant 0 : index
    %c0_125 = arith.constant 0 : index
    %479 = vector.load %arg2[%c0_124, %c0_125] : memref<64x256xf32, #tpu.memory_space<vmem>>, vector<64x256xf32>
    %cst_126 = arith.constant dense<0.000000e+00> : vector<8x256xf32>
    %480 = tpu.matmul %477, %479, %cst_126 {dimension_numbers = #tpu.dot_dimension_numbers<[1], [0], [0], [1], [0, 0, 1, 1], [], []>} : vector<8x64xf32>, vector<64x256xf32>, vector<8x256xf32> -> vector<8x256xf32>
    %481 = arith.index_cast %c6_i32 : i32 to index
    %c0_127 = arith.constant 0 : index
    %c0_128 = arith.constant 0 : index
    %482 = vector.load %arg10[%481, %c0_127, %c0_128] : memref<8x8x256xf32, #tpu.memory_space<vmem>>, vector<1x8x256xf32>
    %483 = vector.shape_cast %482 : vector<1x8x256xf32> to vector<8x256xf32>
    %c7_i32_129 = arith.constant 7 : i32
    %484 = arith.subi %c7_i32_129, %c6_i32 : i32
    %485 = arith.index_cast %484 : i32 to index
    %c0_130 = arith.constant 0 : index
    %c0_131 = arith.constant 0 : index
    %486 = vector.load %arg10[%485, %c0_130, %c0_131] : memref<8x8x256xf32, #tpu.memory_space<vmem>>, vector<1x8x256xf32>
    %487 = vector.shape_cast %486 : vector<1x8x256xf32> to vector<8x256xf32>
    %488 = vector.extract_strided_slice %480 {offsets = [0, 0], sizes = [8, 128], strides = [1, 1]} : vector<8x256xf32> to vector<8x128xf32>
    %489 = vector.extract_strided_slice %483 {offsets = [0, 0], sizes = [8, 128], strides = [1, 1]} : vector<8x256xf32> to vector<8x128xf32>
    %490 = arith.addf %488, %489 : vector<8x128xf32>
    %491 = vector.extract_strided_slice %480 {offsets = [0, 128], sizes = [8, 128], strides = [1, 1]} : vector<8x256xf32> to vector<8x128xf32>
    %492 = vector.extract_strided_slice %487 {offsets = [0, 128], sizes = [8, 128], strides = [1, 1]} : vector<8x256xf32> to vector<8x128xf32>
    %493 = arith.addf %491, %492 : vector<8x128xf32>
    %494 = vector.extract_strided_slice %490 {offsets = [0, 0], sizes = [8, 32], strides = [1, 1]} : vector<8x128xf32> to vector<8x32xf32>
    %495 = arith.negf %494 : vector<8x32xf32>
    %496 = math.exp %495 : vector<8x32xf32>
    %cst_132 = arith.constant 1.000000e+00 : f32
    %497 = vector.broadcast %cst_132 : f32 to vector<8x32xf32>
    %498 = arith.addf %497, %496 : vector<8x32xf32>
    %499 = arith.divf %497, %498 : vector<8x32xf32>
    %500 = vector.extract_strided_slice %490 {offsets = [0, 32], sizes = [8, 32], strides = [1, 1]} : vector<8x128xf32> to vector<8x32xf32>
    %501 = arith.negf %500 : vector<8x32xf32>
    %502 = math.exp %501 : vector<8x32xf32>
    %cst_133 = arith.constant 1.000000e+00 : f32
    %503 = vector.broadcast %cst_133 : f32 to vector<8x32xf32>
    %504 = arith.addf %503, %502 : vector<8x32xf32>
    %505 = arith.divf %503, %504 : vector<8x32xf32>
    %506 = vector.extract_strided_slice %490 {offsets = [0, 64], sizes = [8, 32], strides = [1, 1]} : vector<8x128xf32> to vector<8x32xf32>
    %507 = math.tanh %506 : vector<8x32xf32>
    %508 = vector.extract_strided_slice %490 {offsets = [0, 96], sizes = [8, 32], strides = [1, 1]} : vector<8x128xf32> to vector<8x32xf32>
    %509 = arith.negf %508 : vector<8x32xf32>
    %510 = math.exp %509 : vector<8x32xf32>
    %cst_134 = arith.constant 1.000000e+00 : f32
    %511 = vector.broadcast %cst_134 : f32 to vector<8x32xf32>
    %512 = arith.addf %511, %510 : vector<8x32xf32>
    %513 = arith.divf %511, %512 : vector<8x32xf32>
    %514 = vector.extract_strided_slice %493 {offsets = [0, 0], sizes = [8, 32], strides = [1, 1]} : vector<8x128xf32> to vector<8x32xf32>
    %515 = arith.negf %514 : vector<8x32xf32>
    %516 = math.exp %515 : vector<8x32xf32>
    %cst_135 = arith.constant 1.000000e+00 : f32
    %517 = vector.broadcast %cst_135 : f32 to vector<8x32xf32>
    %518 = arith.addf %517, %516 : vector<8x32xf32>
    %519 = arith.divf %517, %518 : vector<8x32xf32>
    %520 = vector.extract_strided_slice %493 {offsets = [0, 32], sizes = [8, 32], strides = [1, 1]} : vector<8x128xf32> to vector<8x32xf32>
    %521 = arith.negf %520 : vector<8x32xf32>
    %522 = math.exp %521 : vector<8x32xf32>
    %cst_136 = arith.constant 1.000000e+00 : f32
    %523 = vector.broadcast %cst_136 : f32 to vector<8x32xf32>
    %524 = arith.addf %523, %522 : vector<8x32xf32>
    %525 = arith.divf %523, %524 : vector<8x32xf32>
    %526 = vector.extract_strided_slice %493 {offsets = [0, 64], sizes = [8, 32], strides = [1, 1]} : vector<8x128xf32> to vector<8x32xf32>
    %527 = math.tanh %526 : vector<8x32xf32>
    %528 = vector.extract_strided_slice %493 {offsets = [0, 96], sizes = [8, 32], strides = [1, 1]} : vector<8x128xf32> to vector<8x32xf32>
    %529 = arith.negf %528 : vector<8x32xf32>
    %530 = math.exp %529 : vector<8x32xf32>
    %cst_137 = arith.constant 1.000000e+00 : f32
    %531 = vector.broadcast %cst_137 : f32 to vector<8x32xf32>
    %532 = arith.addf %531, %530 : vector<8x32xf32>
    %533 = arith.divf %531, %532 : vector<8x32xf32>
    %534 = vector.extract_strided_slice %478 {offsets = [0, 0], sizes = [8, 32], strides = [1, 1]} : vector<8x64xf32> to vector<8x32xf32>
    %535 = arith.mulf %505, %534 : vector<8x32xf32>
    %536 = arith.mulf %499, %507 : vector<8x32xf32>
    %537 = arith.addf %535, %536 : vector<8x32xf32>
    %538 = vector.extract_strided_slice %478 {offsets = [0, 32], sizes = [8, 32], strides = [1, 1]} : vector<8x64xf32> to vector<8x32xf32>
    %539 = arith.mulf %525, %538 : vector<8x32xf32>
    %540 = arith.mulf %519, %527 : vector<8x32xf32>
    %541 = arith.addf %539, %540 : vector<8x32xf32>
    %542 = math.tanh %537 : vector<8x32xf32>
    %543 = arith.mulf %513, %542 : vector<8x32xf32>
    %544 = math.tanh %541 : vector<8x32xf32>
    %545 = arith.mulf %533, %544 : vector<8x32xf32>
    %546 = arith.index_cast %c6_i32 : i32 to index
    %c0_138 = arith.constant 0 : index
    %c0_139 = arith.constant 0 : index
    %547 = vector.load %arg11[%546, %c0_138, %c0_139] : memref<8x8x32xf32, #tpu.memory_space<vmem>>, vector<1x8x32xf32>
    %548 = vector.shape_cast %547 : vector<1x8x32xf32> to vector<8x32xf32>
    %549 = vector.shape_cast %543 : vector<8x32xf32> to vector<1x8x32xf32>
    tpu.vector_store %arg11[%546, %c0_138, %c0_139], %549 {strides = array<i32>} : memref<8x8x32xf32, #tpu.memory_space<vmem>>, vector<1x8x32xf32>,
    %c7_i32_140 = arith.constant 7 : i32
    %550 = arith.subi %c7_i32_140, %c6_i32 : i32
    %551 = arith.index_cast %550 : i32 to index
    %c0_141 = arith.constant 0 : index
    %c0_142 = arith.constant 0 : index
    %552 = vector.load %arg12[%551, %c0_141, %c0_142] : memref<8x8x32xf32, #tpu.memory_space<vmem>>, vector<1x8x32xf32>
    %553 = vector.shape_cast %552 : vector<1x8x32xf32> to vector<8x32xf32>
    %554 = vector.shape_cast %545 : vector<8x32xf32> to vector<1x8x32xf32>
    tpu.vector_store %arg12[%551, %c0_141, %c0_142], %554 {strides = array<i32>} : memref<8x8x32xf32, #tpu.memory_space<vmem>>, vector<1x8x32xf32>,
    %555 = tpu.concatenate %543, %545 in 1 : vector<8x32xf32>, vector<8x32xf32> -> vector<8x64xf32>
    %556 = tpu.concatenate %537, %541 in 1 : vector<8x32xf32>, vector<8x32xf32> -> vector<8x64xf32>
    %c7_i32_143 = arith.constant 7 : i32
    %c0_144 = arith.constant 0 : index
    %c0_145 = arith.constant 0 : index
    %557 = vector.load %arg2[%c0_144, %c0_145] : memref<64x256xf32, #tpu.memory_space<vmem>>, vector<64x256xf32>
    %cst_146 = arith.constant dense<0.000000e+00> : vector<8x256xf32>
    %558 = tpu.matmul %555, %557, %cst_146 {dimension_numbers = #tpu.dot_dimension_numbers<[1], [0], [0], [1], [0, 0, 1, 1], [], []>} : vector<8x64xf32>, vector<64x256xf32>, vector<8x256xf32> -> vector<8x256xf32>
    %559 = arith.index_cast %c7_i32_143 : i32 to index
    %c0_147 = arith.constant 0 : index
    %c0_148 = arith.constant 0 : index
    %560 = vector.load %arg10[%559, %c0_147, %c0_148] : memref<8x8x256xf32, #tpu.memory_space<vmem>>, vector<1x8x256xf32>
    %561 = vector.shape_cast %560 : vector<1x8x256xf32> to vector<8x256xf32>
    %c7_i32_149 = arith.constant 7 : i32
    %562 = arith.subi %c7_i32_149, %c7_i32_143 : i32
    %563 = arith.index_cast %562 : i32 to index
    %c0_150 = arith.constant 0 : index
    %c0_151 = arith.constant 0 : index
    %564 = vector.load %arg10[%563, %c0_150, %c0_151] : memref<8x8x256xf32, #tpu.memory_space<vmem>>, vector<1x8x256xf32>
    %565 = vector.shape_cast %564 : vector<1x8x256xf32> to vector<8x256xf32>
    %566 = vector.extract_strided_slice %558 {offsets = [0, 0], sizes = [8, 128], strides = [1, 1]} : vector<8x256xf32> to vector<8x128xf32>
    %567 = vector.extract_strided_slice %561 {offsets = [0, 0], sizes = [8, 128], strides = [1, 1]} : vector<8x256xf32> to vector<8x128xf32>
    %568 = arith.addf %566, %567 : vector<8x128xf32>
    %569 = vector.extract_strided_slice %558 {offsets = [0, 128], sizes = [8, 128], strides = [1, 1]} : vector<8x256xf32> to vector<8x128xf32>
    %570 = vector.extract_strided_slice %565 {offsets = [0, 128], sizes = [8, 128], strides = [1, 1]} : vector<8x256xf32> to vector<8x128xf32>
    %571 = arith.addf %569, %570 : vector<8x128xf32>
    %572 = vector.extract_strided_slice %568 {offsets = [0, 0], sizes = [8, 32], strides = [1, 1]} : vector<8x128xf32> to vector<8x32xf32>
    %573 = arith.negf %572 : vector<8x32xf32>
    %574 = math.exp %573 : vector<8x32xf32>
    %cst_152 = arith.constant 1.000000e+00 : f32
    %575 = vector.broadcast %cst_152 : f32 to vector<8x32xf32>
    %576 = arith.addf %575, %574 : vector<8x32xf32>
    %577 = arith.divf %575, %576 : vector<8x32xf32>
    %578 = vector.extract_strided_slice %568 {offsets = [0, 32], sizes = [8, 32], strides = [1, 1]} : vector<8x128xf32> to vector<8x32xf32>
    %579 = arith.negf %578 : vector<8x32xf32>
    %580 = math.exp %579 : vector<8x32xf32>
    %cst_153 = arith.constant 1.000000e+00 : f32
    %581 = vector.broadcast %cst_153 : f32 to vector<8x32xf32>
    %582 = arith.addf %581, %580 : vector<8x32xf32>
    %583 = arith.divf %581, %582 : vector<8x32xf32>
    %584 = vector.extract_strided_slice %568 {offsets = [0, 64], sizes = [8, 32], strides = [1, 1]} : vector<8x128xf32> to vector<8x32xf32>
    %585 = math.tanh %584 : vector<8x32xf32>
    %586 = vector.extract_strided_slice %568 {offsets = [0, 96], sizes = [8, 32], strides = [1, 1]} : vector<8x128xf32> to vector<8x32xf32>
    %587 = arith.negf %586 : vector<8x32xf32>
    %588 = math.exp %587 : vector<8x32xf32>
    %cst_154 = arith.constant 1.000000e+00 : f32
    %589 = vector.broadcast %cst_154 : f32 to vector<8x32xf32>
    %590 = arith.addf %589, %588 : vector<8x32xf32>
    %591 = arith.divf %589, %590 : vector<8x32xf32>
    %592 = vector.extract_strided_slice %571 {offsets = [0, 0], sizes = [8, 32], strides = [1, 1]} : vector<8x128xf32> to vector<8x32xf32>
    %593 = arith.negf %592 : vector<8x32xf32>
    %594 = math.exp %593 : vector<8x32xf32>
    %cst_155 = arith.constant 1.000000e+00 : f32
    %595 = vector.broadcast %cst_155 : f32 to vector<8x32xf32>
    %596 = arith.addf %595, %594 : vector<8x32xf32>
    %597 = arith.divf %595, %596 : vector<8x32xf32>
    %598 = vector.extract_strided_slice %571 {offsets = [0, 32], sizes = [8, 32], strides = [1, 1]} : vector<8x128xf32> to vector<8x32xf32>
    %599 = arith.negf %598 : vector<8x32xf32>
    %600 = math.exp %599 : vector<8x32xf32>
    %cst_156 = arith.constant 1.000000e+00 : f32
    %601 = vector.broadcast %cst_156 : f32 to vector<8x32xf32>
    %602 = arith.addf %601, %600 : vector<8x32xf32>
    %603 = arith.divf %601, %602 : vector<8x32xf32>
    %604 = vector.extract_strided_slice %571 {offsets = [0, 64], sizes = [8, 32], strides = [1, 1]} : vector<8x128xf32> to vector<8x32xf32>
    %605 = math.tanh %604 : vector<8x32xf32>
    %606 = vector.extract_strided_slice %571 {offsets = [0, 96], sizes = [8, 32], strides = [1, 1]} : vector<8x128xf32> to vector<8x32xf32>
    %607 = arith.negf %606 : vector<8x32xf32>
    %608 = math.exp %607 : vector<8x32xf32>
    %cst_157 = arith.constant 1.000000e+00 : f32
    %609 = vector.broadcast %cst_157 : f32 to vector<8x32xf32>
    %610 = arith.addf %609, %608 : vector<8x32xf32>
    %611 = arith.divf %609, %610 : vector<8x32xf32>
    %612 = vector.extract_strided_slice %556 {offsets = [0, 0], sizes = [8, 32], strides = [1, 1]} : vector<8x64xf32> to vector<8x32xf32>
    %613 = arith.mulf %583, %612 : vector<8x32xf32>
    %614 = arith.mulf %577, %585 : vector<8x32xf32>
    %615 = arith.addf %613, %614 : vector<8x32xf32>
    %616 = vector.extract_strided_slice %556 {offsets = [0, 32], sizes = [8, 32], strides = [1, 1]} : vector<8x64xf32> to vector<8x32xf32>
    %617 = arith.mulf %603, %616 : vector<8x32xf32>
    %618 = arith.mulf %597, %605 : vector<8x32xf32>
    %619 = arith.addf %617, %618 : vector<8x32xf32>
    %620 = math.tanh %615 : vector<8x32xf32>
    %621 = arith.mulf %591, %620 : vector<8x32xf32>
    %622 = math.tanh %619 : vector<8x32xf32>
    %623 = arith.mulf %611, %622 : vector<8x32xf32>
    %624 = arith.index_cast %c7_i32_143 : i32 to index
    %c0_158 = arith.constant 0 : index
    %c0_159 = arith.constant 0 : index
    %625 = vector.load %arg11[%624, %c0_158, %c0_159] : memref<8x8x32xf32, #tpu.memory_space<vmem>>, vector<1x8x32xf32>
    %626 = vector.shape_cast %625 : vector<1x8x32xf32> to vector<8x32xf32>
    %627 = vector.shape_cast %621 : vector<8x32xf32> to vector<1x8x32xf32>
    tpu.vector_store %arg11[%624, %c0_158, %c0_159], %627 {strides = array<i32>} : memref<8x8x32xf32, #tpu.memory_space<vmem>>, vector<1x8x32xf32>,
    %c7_i32_160 = arith.constant 7 : i32
    %628 = arith.subi %c7_i32_160, %c7_i32_143 : i32
    %629 = arith.index_cast %628 : i32 to index
    %c0_161 = arith.constant 0 : index
    %c0_162 = arith.constant 0 : index
    %630 = vector.load %arg12[%629, %c0_161, %c0_162] : memref<8x8x32xf32, #tpu.memory_space<vmem>>, vector<1x8x32xf32>
    %631 = vector.shape_cast %630 : vector<1x8x32xf32> to vector<8x32xf32>
    %632 = vector.shape_cast %623 : vector<8x32xf32> to vector<1x8x32xf32>
    tpu.vector_store %arg12[%629, %c0_161, %c0_162], %632 {strides = array<i32>} : memref<8x8x32xf32, #tpu.memory_space<vmem>>, vector<1x8x32xf32>,
    %633 = tpu.concatenate %621, %623 in 1 : vector<8x32xf32>, vector<8x32xf32> -> vector<8x64xf32>
    %634 = tpu.concatenate %615, %619 in 1 : vector<8x32xf32>, vector<8x32xf32> -> vector<8x64xf32>
    %c8_i32 = arith.constant 8 : i32
    %c0_163 = arith.constant 0 : index
    %c0_164 = arith.constant 0 : index
    %c0_165 = arith.constant 0 : index
    %635 = vector.load %arg11[%c0_163, %c0_164, %c0_165] : memref<8x8x32xf32, #tpu.memory_space<vmem>>, vector<8x8x32xf32>
    %c0_166 = arith.constant 0 : index
    %c0_167 = arith.constant 0 : index
    %c0_168 = arith.constant 0 : index
    %636 = vector.load %arg12[%c0_166, %c0_167, %c0_168] : memref<8x8x32xf32, #tpu.memory_space<vmem>>, vector<8x8x32xf32>
    %637 = tpu.concatenate %635, %636 in 2 : vector<8x8x32xf32>, vector<8x8x32xf32> -> vector<8x8x64xf32>
    %638 = vector.shape_cast %637 : vector<8x8x64xf32> to vector<64x64xf32>
    %c0_169 = arith.constant 0 : index
    %c0_170 = arith.constant 0 : index
    %639 = vector.load %arg4[%c0_169, %c0_170] : memref<64x256xf32, #tpu.memory_space<vmem>>, vector<64x256xf32>
    %cst_171 = arith.constant dense<0.000000e+00> : vector<64x256xf32>
    %640 = tpu.matmul %638, %639, %cst_171 {dimension_numbers = #tpu.dot_dimension_numbers<[1], [0], [0], [1], [0, 0, 1, 1], [], []>} : vector<64x64xf32>, vector<64x256xf32>, vector<64x256xf32> -> vector<64x256xf32>
    %c0_172 = arith.constant 0 : index
    %c0_173 = arith.constant 0 : index
    %641 = vector.load %arg6[%c0_172, %c0_173] : memref<1x256xf32, #tpu.memory_space<vmem>>, vector<1x256xf32>
    %642 = vector.broadcast %641 : vector<1x256xf32> to vector<64x256xf32>
    %643 = arith.addf %640, %642 : vector<64x256xf32>
    %644 = vector.shape_cast %643 : vector<64x256xf32> to vector<8x8x256xf32>
    %c0_174 = arith.constant 0 : index
    %c0_175 = arith.constant 0 : index
    %c0_176 = arith.constant 0 : index
    %645 = vector.load %arg10[%c0_174, %c0_175, %c0_176] : memref<8x8x256xf32, #tpu.memory_space<vmem>>, vector<8x8x256xf32>
    tpu.vector_store %arg10[%c0_174, %c0_175, %c0_176], %644 {strides = array<i32>} : memref<8x8x256xf32, #tpu.memory_space<vmem>>, vector<8x8x256xf32>,
    %cst_177 = arith.constant 0.000000e+00 : f32
    %646 = vector.broadcast %cst_177 : f32 to vector<8x64xf32>
    %cst_178 = arith.constant 0.000000e+00 : f32
    %647 = vector.broadcast %cst_178 : f32 to vector<8x64xf32>
    %c0_i32_179 = arith.constant 0 : i32
    %c0_180 = arith.constant 0 : index
    %c0_181 = arith.constant 0 : index
    %648 = vector.load %arg5[%c0_180, %c0_181] : memref<64x256xf32, #tpu.memory_space<vmem>>, vector<64x256xf32>
    %cst_182 = arith.constant dense<0.000000e+00> : vector<8x256xf32>
    %649 = tpu.matmul %646, %648, %cst_182 {dimension_numbers = #tpu.dot_dimension_numbers<[1], [0], [0], [1], [0, 0, 1, 1], [], []>} : vector<8x64xf32>, vector<64x256xf32>, vector<8x256xf32> -> vector<8x256xf32>
    %650 = arith.index_cast %c0_i32_179 : i32 to index
    %c0_183 = arith.constant 0 : index
    %c0_184 = arith.constant 0 : index
    %651 = vector.load %arg10[%650, %c0_183, %c0_184] : memref<8x8x256xf32, #tpu.memory_space<vmem>>, vector<1x8x256xf32>
    %652 = vector.shape_cast %651 : vector<1x8x256xf32> to vector<8x256xf32>
    %c7_i32_185 = arith.constant 7 : i32
    %653 = arith.subi %c7_i32_185, %c0_i32_179 : i32
    %654 = arith.index_cast %653 : i32 to index
    %c0_186 = arith.constant 0 : index
    %c0_187 = arith.constant 0 : index
    %655 = vector.load %arg10[%654, %c0_186, %c0_187] : memref<8x8x256xf32, #tpu.memory_space<vmem>>, vector<1x8x256xf32>
    %656 = vector.shape_cast %655 : vector<1x8x256xf32> to vector<8x256xf32>
    %657 = vector.extract_strided_slice %649 {offsets = [0, 0], sizes = [8, 128], strides = [1, 1]} : vector<8x256xf32> to vector<8x128xf32>
    %658 = vector.extract_strided_slice %652 {offsets = [0, 0], sizes = [8, 128], strides = [1, 1]} : vector<8x256xf32> to vector<8x128xf32>
    %659 = arith.addf %657, %658 : vector<8x128xf32>
    %660 = vector.extract_strided_slice %649 {offsets = [0, 128], sizes = [8, 128], strides = [1, 1]} : vector<8x256xf32> to vector<8x128xf32>
    %661 = vector.extract_strided_slice %656 {offsets = [0, 128], sizes = [8, 128], strides = [1, 1]} : vector<8x256xf32> to vector<8x128xf32>
    %662 = arith.addf %660, %661 : vector<8x128xf32>
    %663 = vector.extract_strided_slice %659 {offsets = [0, 0], sizes = [8, 32], strides = [1, 1]} : vector<8x128xf32> to vector<8x32xf32>
    %664 = arith.negf %663 : vector<8x32xf32>
    %665 = math.exp %664 : vector<8x32xf32>
    %cst_188 = arith.constant 1.000000e+00 : f32
    %666 = vector.broadcast %cst_188 : f32 to vector<8x32xf32>
    %667 = arith.addf %666, %665 : vector<8x32xf32>
    %668 = arith.divf %666, %667 : vector<8x32xf32>
    %669 = vector.extract_strided_slice %659 {offsets = [0, 32], sizes = [8, 32], strides = [1, 1]} : vector<8x128xf32> to vector<8x32xf32>
    %670 = arith.negf %669 : vector<8x32xf32>
    %671 = math.exp %670 : vector<8x32xf32>
    %cst_189 = arith.constant 1.000000e+00 : f32
    %672 = vector.broadcast %cst_189 : f32 to vector<8x32xf32>
    %673 = arith.addf %672, %671 : vector<8x32xf32>
    %674 = arith.divf %672, %673 : vector<8x32xf32>
    %675 = vector.extract_strided_slice %659 {offsets = [0, 64], sizes = [8, 32], strides = [1, 1]} : vector<8x128xf32> to vector<8x32xf32>
    %676 = math.tanh %675 : vector<8x32xf32>
    %677 = vector.extract_strided_slice %659 {offsets = [0, 96], sizes = [8, 32], strides = [1, 1]} : vector<8x128xf32> to vector<8x32xf32>
    %678 = arith.negf %677 : vector<8x32xf32>
    %679 = math.exp %678 : vector<8x32xf32>
    %cst_190 = arith.constant 1.000000e+00 : f32
    %680 = vector.broadcast %cst_190 : f32 to vector<8x32xf32>
    %681 = arith.addf %680, %679 : vector<8x32xf32>
    %682 = arith.divf %680, %681 : vector<8x32xf32>
    %683 = vector.extract_strided_slice %662 {offsets = [0, 0], sizes = [8, 32], strides = [1, 1]} : vector<8x128xf32> to vector<8x32xf32>
    %684 = arith.negf %683 : vector<8x32xf32>
    %685 = math.exp %684 : vector<8x32xf32>
    %cst_191 = arith.constant 1.000000e+00 : f32
    %686 = vector.broadcast %cst_191 : f32 to vector<8x32xf32>
    %687 = arith.addf %686, %685 : vector<8x32xf32>
    %688 = arith.divf %686, %687 : vector<8x32xf32>
    %689 = vector.extract_strided_slice %662 {offsets = [0, 32], sizes = [8, 32], strides = [1, 1]} : vector<8x128xf32> to vector<8x32xf32>
    %690 = arith.negf %689 : vector<8x32xf32>
    %691 = math.exp %690 : vector<8x32xf32>
    %cst_192 = arith.constant 1.000000e+00 : f32
    %692 = vector.broadcast %cst_192 : f32 to vector<8x32xf32>
    %693 = arith.addf %692, %691 : vector<8x32xf32>
    %694 = arith.divf %692, %693 : vector<8x32xf32>
    %695 = vector.extract_strided_slice %662 {offsets = [0, 64], sizes = [8, 32], strides = [1, 1]} : vector<8x128xf32> to vector<8x32xf32>
    %696 = math.tanh %695 : vector<8x32xf32>
    %697 = vector.extract_strided_slice %662 {offsets = [0, 96], sizes = [8, 32], strides = [1, 1]} : vector<8x128xf32> to vector<8x32xf32>
    %698 = arith.negf %697 : vector<8x32xf32>
    %699 = math.exp %698 : vector<8x32xf32>
    %cst_193 = arith.constant 1.000000e+00 : f32
    %700 = vector.broadcast %cst_193 : f32 to vector<8x32xf32>
    %701 = arith.addf %700, %699 : vector<8x32xf32>
    %702 = arith.divf %700, %701 : vector<8x32xf32>
    %703 = vector.extract_strided_slice %647 {offsets = [0, 0], sizes = [8, 32], strides = [1, 1]} : vector<8x64xf32> to vector<8x32xf32>
    %704 = arith.mulf %674, %703 : vector<8x32xf32>
    %705 = arith.mulf %668, %676 : vector<8x32xf32>
    %706 = arith.addf %704, %705 : vector<8x32xf32>
    %707 = vector.extract_strided_slice %647 {offsets = [0, 32], sizes = [8, 32], strides = [1, 1]} : vector<8x64xf32> to vector<8x32xf32>
    %708 = arith.mulf %694, %707 : vector<8x32xf32>
    %709 = arith.mulf %688, %696 : vector<8x32xf32>
    %710 = arith.addf %708, %709 : vector<8x32xf32>
    %711 = math.tanh %706 : vector<8x32xf32>
    %712 = arith.mulf %682, %711 : vector<8x32xf32>
    %713 = math.tanh %710 : vector<8x32xf32>
    %714 = arith.mulf %702, %713 : vector<8x32xf32>
    %715 = tpu.concatenate %712, %714 in 1 : vector<8x32xf32>, vector<8x32xf32> -> vector<8x64xf32>
    %716 = tpu.concatenate %706, %710 in 1 : vector<8x32xf32>, vector<8x32xf32> -> vector<8x64xf32>
    %c1_i32_194 = arith.constant 1 : i32
    %c0_195 = arith.constant 0 : index
    %c0_196 = arith.constant 0 : index
    %717 = vector.load %arg5[%c0_195, %c0_196] : memref<64x256xf32, #tpu.memory_space<vmem>>, vector<64x256xf32>
    %cst_197 = arith.constant dense<0.000000e+00> : vector<8x256xf32>
    %718 = tpu.matmul %715, %717, %cst_197 {dimension_numbers = #tpu.dot_dimension_numbers<[1], [0], [0], [1], [0, 0, 1, 1], [], []>} : vector<8x64xf32>, vector<64x256xf32>, vector<8x256xf32> -> vector<8x256xf32>
    %719 = arith.index_cast %c1_i32_194 : i32 to index
    %c0_198 = arith.constant 0 : index
    %c0_199 = arith.constant 0 : index
    %720 = vector.load %arg10[%719, %c0_198, %c0_199] : memref<8x8x256xf32, #tpu.memory_space<vmem>>, vector<1x8x256xf32>
    %721 = vector.shape_cast %720 : vector<1x8x256xf32> to vector<8x256xf32>
    %c7_i32_200 = arith.constant 7 : i32
    %722 = arith.subi %c7_i32_200, %c1_i32_194 : i32
    %723 = arith.index_cast %722 : i32 to index
    %c0_201 = arith.constant 0 : index
    %c0_202 = arith.constant 0 : index
    %724 = vector.load %arg10[%723, %c0_201, %c0_202] : memref<8x8x256xf32, #tpu.memory_space<vmem>>, vector<1x8x256xf32>
    %725 = vector.shape_cast %724 : vector<1x8x256xf32> to vector<8x256xf32>
    %726 = vector.extract_strided_slice %718 {offsets = [0, 0], sizes = [8, 128], strides = [1, 1]} : vector<8x256xf32> to vector<8x128xf32>
    %727 = vector.extract_strided_slice %721 {offsets = [0, 0], sizes = [8, 128], strides = [1, 1]} : vector<8x256xf32> to vector<8x128xf32>
    %728 = arith.addf %726, %727 : vector<8x128xf32>
    %729 = vector.extract_strided_slice %718 {offsets = [0, 128], sizes = [8, 128], strides = [1, 1]} : vector<8x256xf32> to vector<8x128xf32>
    %730 = vector.extract_strided_slice %725 {offsets = [0, 128], sizes = [8, 128], strides = [1, 1]} : vector<8x256xf32> to vector<8x128xf32>
    %731 = arith.addf %729, %730 : vector<8x128xf32>
    %732 = vector.extract_strided_slice %728 {offsets = [0, 0], sizes = [8, 32], strides = [1, 1]} : vector<8x128xf32> to vector<8x32xf32>
    %733 = arith.negf %732 : vector<8x32xf32>
    %734 = math.exp %733 : vector<8x32xf32>
    %cst_203 = arith.constant 1.000000e+00 : f32
    %735 = vector.broadcast %cst_203 : f32 to vector<8x32xf32>
    %736 = arith.addf %735, %734 : vector<8x32xf32>
    %737 = arith.divf %735, %736 : vector<8x32xf32>
    %738 = vector.extract_strided_slice %728 {offsets = [0, 32], sizes = [8, 32], strides = [1, 1]} : vector<8x128xf32> to vector<8x32xf32>
    %739 = arith.negf %738 : vector<8x32xf32>
    %740 = math.exp %739 : vector<8x32xf32>
    %cst_204 = arith.constant 1.000000e+00 : f32
    %741 = vector.broadcast %cst_204 : f32 to vector<8x32xf32>
    %742 = arith.addf %741, %740 : vector<8x32xf32>
    %743 = arith.divf %741, %742 : vector<8x32xf32>
    %744 = vector.extract_strided_slice %728 {offsets = [0, 64], sizes = [8, 32], strides = [1, 1]} : vector<8x128xf32> to vector<8x32xf32>
    %745 = math.tanh %744 : vector<8x32xf32>
    %746 = vector.extract_strided_slice %728 {offsets = [0, 96], sizes = [8, 32], strides = [1, 1]} : vector<8x128xf32> to vector<8x32xf32>
    %747 = arith.negf %746 : vector<8x32xf32>
    %748 = math.exp %747 : vector<8x32xf32>
    %cst_205 = arith.constant 1.000000e+00 : f32
    %749 = vector.broadcast %cst_205 : f32 to vector<8x32xf32>
    %750 = arith.addf %749, %748 : vector<8x32xf32>
    %751 = arith.divf %749, %750 : vector<8x32xf32>
    %752 = vector.extract_strided_slice %731 {offsets = [0, 0], sizes = [8, 32], strides = [1, 1]} : vector<8x128xf32> to vector<8x32xf32>
    %753 = arith.negf %752 : vector<8x32xf32>
    %754 = math.exp %753 : vector<8x32xf32>
    %cst_206 = arith.constant 1.000000e+00 : f32
    %755 = vector.broadcast %cst_206 : f32 to vector<8x32xf32>
    %756 = arith.addf %755, %754 : vector<8x32xf32>
    %757 = arith.divf %755, %756 : vector<8x32xf32>
    %758 = vector.extract_strided_slice %731 {offsets = [0, 32], sizes = [8, 32], strides = [1, 1]} : vector<8x128xf32> to vector<8x32xf32>
    %759 = arith.negf %758 : vector<8x32xf32>
    %760 = math.exp %759 : vector<8x32xf32>
    %cst_207 = arith.constant 1.000000e+00 : f32
    %761 = vector.broadcast %cst_207 : f32 to vector<8x32xf32>
    %762 = arith.addf %761, %760 : vector<8x32xf32>
    %763 = arith.divf %761, %762 : vector<8x32xf32>
    %764 = vector.extract_strided_slice %731 {offsets = [0, 64], sizes = [8, 32], strides = [1, 1]} : vector<8x128xf32> to vector<8x32xf32>
    %765 = math.tanh %764 : vector<8x32xf32>
    %766 = vector.extract_strided_slice %731 {offsets = [0, 96], sizes = [8, 32], strides = [1, 1]} : vector<8x128xf32> to vector<8x32xf32>
    %767 = arith.negf %766 : vector<8x32xf32>
    %768 = math.exp %767 : vector<8x32xf32>
    %cst_208 = arith.constant 1.000000e+00 : f32
    %769 = vector.broadcast %cst_208 : f32 to vector<8x32xf32>
    %770 = arith.addf %769, %768 : vector<8x32xf32>
    %771 = arith.divf %769, %770 : vector<8x32xf32>
    %772 = vector.extract_strided_slice %716 {offsets = [0, 0], sizes = [8, 32], strides = [1, 1]} : vector<8x64xf32> to vector<8x32xf32>
    %773 = arith.mulf %743, %772 : vector<8x32xf32>
    %774 = arith.mulf %737, %745 : vector<8x32xf32>
    %775 = arith.addf %773, %774 : vector<8x32xf32>
    %776 = vector.extract_strided_slice %716 {offsets = [0, 32], sizes = [8, 32], strides = [1, 1]} : vector<8x64xf32> to vector<8x32xf32>
    %777 = arith.mulf %763, %776 : vector<8x32xf32>
    %778 = arith.mulf %757, %765 : vector<8x32xf32>
    %779 = arith.addf %777, %778 : vector<8x32xf32>
    %780 = math.tanh %775 : vector<8x32xf32>
    %781 = arith.mulf %751, %780 : vector<8x32xf32>
    %782 = math.tanh %779 : vector<8x32xf32>
    %783 = arith.mulf %771, %782 : vector<8x32xf32>
    %784 = tpu.concatenate %781, %783 in 1 : vector<8x32xf32>, vector<8x32xf32> -> vector<8x64xf32>
    %785 = tpu.concatenate %775, %779 in 1 : vector<8x32xf32>, vector<8x32xf32> -> vector<8x64xf32>
    %c2_i32_209 = arith.constant 2 : i32
    %c0_210 = arith.constant 0 : index
    %c0_211 = arith.constant 0 : index
    %786 = vector.load %arg5[%c0_210, %c0_211] : memref<64x256xf32, #tpu.memory_space<vmem>>, vector<64x256xf32>
    %cst_212 = arith.constant dense<0.000000e+00> : vector<8x256xf32>
    %787 = tpu.matmul %784, %786, %cst_212 {dimension_numbers = #tpu.dot_dimension_numbers<[1], [0], [0], [1], [0, 0, 1, 1], [], []>} : vector<8x64xf32>, vector<64x256xf32>, vector<8x256xf32> -> vector<8x256xf32>
    %788 = arith.index_cast %c2_i32_209 : i32 to index
    %c0_213 = arith.constant 0 : index
    %c0_214 = arith.constant 0 : index
    %789 = vector.load %arg10[%788, %c0_213, %c0_214] : memref<8x8x256xf32, #tpu.memory_space<vmem>>, vector<1x8x256xf32>
    %790 = vector.shape_cast %789 : vector<1x8x256xf32> to vector<8x256xf32>
    %c7_i32_215 = arith.constant 7 : i32
    %791 = arith.subi %c7_i32_215, %c2_i32_209 : i32
    %792 = arith.index_cast %791 : i32 to index
    %c0_216 = arith.constant 0 : index
    %c0_217 = arith.constant 0 : index
    %793 = vector.load %arg10[%792, %c0_216, %c0_217] : memref<8x8x256xf32, #tpu.memory_space<vmem>>, vector<1x8x256xf32>
    %794 = vector.shape_cast %793 : vector<1x8x256xf32> to vector<8x256xf32>
    %795 = vector.extract_strided_slice %787 {offsets = [0, 0], sizes = [8, 128], strides = [1, 1]} : vector<8x256xf32> to vector<8x128xf32>
    %796 = vector.extract_strided_slice %790 {offsets = [0, 0], sizes = [8, 128], strides = [1, 1]} : vector<8x256xf32> to vector<8x128xf32>
    %797 = arith.addf %795, %796 : vector<8x128xf32>
    %798 = vector.extract_strided_slice %787 {offsets = [0, 128], sizes = [8, 128], strides = [1, 1]} : vector<8x256xf32> to vector<8x128xf32>
    %799 = vector.extract_strided_slice %794 {offsets = [0, 128], sizes = [8, 128], strides = [1, 1]} : vector<8x256xf32> to vector<8x128xf32>
    %800 = arith.addf %798, %799 : vector<8x128xf32>
    %801 = vector.extract_strided_slice %797 {offsets = [0, 0], sizes = [8, 32], strides = [1, 1]} : vector<8x128xf32> to vector<8x32xf32>
    %802 = arith.negf %801 : vector<8x32xf32>
    %803 = math.exp %802 : vector<8x32xf32>
    %cst_218 = arith.constant 1.000000e+00 : f32
    %804 = vector.broadcast %cst_218 : f32 to vector<8x32xf32>
    %805 = arith.addf %804, %803 : vector<8x32xf32>
    %806 = arith.divf %804, %805 : vector<8x32xf32>
    %807 = vector.extract_strided_slice %797 {offsets = [0, 32], sizes = [8, 32], strides = [1, 1]} : vector<8x128xf32> to vector<8x32xf32>
    %808 = arith.negf %807 : vector<8x32xf32>
    %809 = math.exp %808 : vector<8x32xf32>
    %cst_219 = arith.constant 1.000000e+00 : f32
    %810 = vector.broadcast %cst_219 : f32 to vector<8x32xf32>
    %811 = arith.addf %810, %809 : vector<8x32xf32>
    %812 = arith.divf %810, %811 : vector<8x32xf32>
    %813 = vector.extract_strided_slice %797 {offsets = [0, 64], sizes = [8, 32], strides = [1, 1]} : vector<8x128xf32> to vector<8x32xf32>
    %814 = math.tanh %813 : vector<8x32xf32>
    %815 = vector.extract_strided_slice %797 {offsets = [0, 96], sizes = [8, 32], strides = [1, 1]} : vector<8x128xf32> to vector<8x32xf32>
    %816 = arith.negf %815 : vector<8x32xf32>
    %817 = math.exp %816 : vector<8x32xf32>
    %cst_220 = arith.constant 1.000000e+00 : f32
    %818 = vector.broadcast %cst_220 : f32 to vector<8x32xf32>
    %819 = arith.addf %818, %817 : vector<8x32xf32>
    %820 = arith.divf %818, %819 : vector<8x32xf32>
    %821 = vector.extract_strided_slice %800 {offsets = [0, 0], sizes = [8, 32], strides = [1, 1]} : vector<8x128xf32> to vector<8x32xf32>
    %822 = arith.negf %821 : vector<8x32xf32>
    %823 = math.exp %822 : vector<8x32xf32>
    %cst_221 = arith.constant 1.000000e+00 : f32
    %824 = vector.broadcast %cst_221 : f32 to vector<8x32xf32>
    %825 = arith.addf %824, %823 : vector<8x32xf32>
    %826 = arith.divf %824, %825 : vector<8x32xf32>
    %827 = vector.extract_strided_slice %800 {offsets = [0, 32], sizes = [8, 32], strides = [1, 1]} : vector<8x128xf32> to vector<8x32xf32>
    %828 = arith.negf %827 : vector<8x32xf32>
    %829 = math.exp %828 : vector<8x32xf32>
    %cst_222 = arith.constant 1.000000e+00 : f32
    %830 = vector.broadcast %cst_222 : f32 to vector<8x32xf32>
    %831 = arith.addf %830, %829 : vector<8x32xf32>
    %832 = arith.divf %830, %831 : vector<8x32xf32>
    %833 = vector.extract_strided_slice %800 {offsets = [0, 64], sizes = [8, 32], strides = [1, 1]} : vector<8x128xf32> to vector<8x32xf32>
    %834 = math.tanh %833 : vector<8x32xf32>
    %835 = vector.extract_strided_slice %800 {offsets = [0, 96], sizes = [8, 32], strides = [1, 1]} : vector<8x128xf32> to vector<8x32xf32>
    %836 = arith.negf %835 : vector<8x32xf32>
    %837 = math.exp %836 : vector<8x32xf32>
    %cst_223 = arith.constant 1.000000e+00 : f32
    %838 = vector.broadcast %cst_223 : f32 to vector<8x32xf32>
    %839 = arith.addf %838, %837 : vector<8x32xf32>
    %840 = arith.divf %838, %839 : vector<8x32xf32>
    %841 = vector.extract_strided_slice %785 {offsets = [0, 0], sizes = [8, 32], strides = [1, 1]} : vector<8x64xf32> to vector<8x32xf32>
    %842 = arith.mulf %812, %841 : vector<8x32xf32>
    %843 = arith.mulf %806, %814 : vector<8x32xf32>
    %844 = arith.addf %842, %843 : vector<8x32xf32>
    %845 = vector.extract_strided_slice %785 {offsets = [0, 32], sizes = [8, 32], strides = [1, 1]} : vector<8x64xf32> to vector<8x32xf32>
    %846 = arith.mulf %832, %845 : vector<8x32xf32>
    %847 = arith.mulf %826, %834 : vector<8x32xf32>
    %848 = arith.addf %846, %847 : vector<8x32xf32>
    %849 = math.tanh %844 : vector<8x32xf32>
    %850 = arith.mulf %820, %849 : vector<8x32xf32>
    %851 = math.tanh %848 : vector<8x32xf32>
    %852 = arith.mulf %840, %851 : vector<8x32xf32>
    %853 = tpu.concatenate %850, %852 in 1 : vector<8x32xf32>, vector<8x32xf32> -> vector<8x64xf32>
    %854 = tpu.concatenate %844, %848 in 1 : vector<8x32xf32>, vector<8x32xf32> -> vector<8x64xf32>
    %c3_i32_224 = arith.constant 3 : i32
    %c0_225 = arith.constant 0 : index
    %c0_226 = arith.constant 0 : index
    %855 = vector.load %arg5[%c0_225, %c0_226] : memref<64x256xf32, #tpu.memory_space<vmem>>, vector<64x256xf32>
    %cst_227 = arith.constant dense<0.000000e+00> : vector<8x256xf32>
    %856 = tpu.matmul %853, %855, %cst_227 {dimension_numbers = #tpu.dot_dimension_numbers<[1], [0], [0], [1], [0, 0, 1, 1], [], []>} : vector<8x64xf32>, vector<64x256xf32>, vector<8x256xf32> -> vector<8x256xf32>
    %857 = arith.index_cast %c3_i32_224 : i32 to index
    %c0_228 = arith.constant 0 : index
    %c0_229 = arith.constant 0 : index
    %858 = vector.load %arg10[%857, %c0_228, %c0_229] : memref<8x8x256xf32, #tpu.memory_space<vmem>>, vector<1x8x256xf32>
    %859 = vector.shape_cast %858 : vector<1x8x256xf32> to vector<8x256xf32>
    %c7_i32_230 = arith.constant 7 : i32
    %860 = arith.subi %c7_i32_230, %c3_i32_224 : i32
    %861 = arith.index_cast %860 : i32 to index
    %c0_231 = arith.constant 0 : index
    %c0_232 = arith.constant 0 : index
    %862 = vector.load %arg10[%861, %c0_231, %c0_232] : memref<8x8x256xf32, #tpu.memory_space<vmem>>, vector<1x8x256xf32>
    %863 = vector.shape_cast %862 : vector<1x8x256xf32> to vector<8x256xf32>
    %864 = vector.extract_strided_slice %856 {offsets = [0, 0], sizes = [8, 128], strides = [1, 1]} : vector<8x256xf32> to vector<8x128xf32>
    %865 = vector.extract_strided_slice %859 {offsets = [0, 0], sizes = [8, 128], strides = [1, 1]} : vector<8x256xf32> to vector<8x128xf32>
    %866 = arith.addf %864, %865 : vector<8x128xf32>
    %867 = vector.extract_strided_slice %856 {offsets = [0, 128], sizes = [8, 128], strides = [1, 1]} : vector<8x256xf32> to vector<8x128xf32>
    %868 = vector.extract_strided_slice %863 {offsets = [0, 128], sizes = [8, 128], strides = [1, 1]} : vector<8x256xf32> to vector<8x128xf32>
    %869 = arith.addf %867, %868 : vector<8x128xf32>
    %870 = vector.extract_strided_slice %866 {offsets = [0, 0], sizes = [8, 32], strides = [1, 1]} : vector<8x128xf32> to vector<8x32xf32>
    %871 = arith.negf %870 : vector<8x32xf32>
    %872 = math.exp %871 : vector<8x32xf32>
    %cst_233 = arith.constant 1.000000e+00 : f32
    %873 = vector.broadcast %cst_233 : f32 to vector<8x32xf32>
    %874 = arith.addf %873, %872 : vector<8x32xf32>
    %875 = arith.divf %873, %874 : vector<8x32xf32>
    %876 = vector.extract_strided_slice %866 {offsets = [0, 32], sizes = [8, 32], strides = [1, 1]} : vector<8x128xf32> to vector<8x32xf32>
    %877 = arith.negf %876 : vector<8x32xf32>
    %878 = math.exp %877 : vector<8x32xf32>
    %cst_234 = arith.constant 1.000000e+00 : f32
    %879 = vector.broadcast %cst_234 : f32 to vector<8x32xf32>
    %880 = arith.addf %879, %878 : vector<8x32xf32>
    %881 = arith.divf %879, %880 : vector<8x32xf32>
    %882 = vector.extract_strided_slice %866 {offsets = [0, 64], sizes = [8, 32], strides = [1, 1]} : vector<8x128xf32> to vector<8x32xf32>
    %883 = math.tanh %882 : vector<8x32xf32>
    %884 = vector.extract_strided_slice %866 {offsets = [0, 96], sizes = [8, 32], strides = [1, 1]} : vector<8x128xf32> to vector<8x32xf32>
    %885 = arith.negf %884 : vector<8x32xf32>
    %886 = math.exp %885 : vector<8x32xf32>
    %cst_235 = arith.constant 1.000000e+00 : f32
    %887 = vector.broadcast %cst_235 : f32 to vector<8x32xf32>
    %888 = arith.addf %887, %886 : vector<8x32xf32>
    %889 = arith.divf %887, %888 : vector<8x32xf32>
    %890 = vector.extract_strided_slice %869 {offsets = [0, 0], sizes = [8, 32], strides = [1, 1]} : vector<8x128xf32> to vector<8x32xf32>
    %891 = arith.negf %890 : vector<8x32xf32>
    %892 = math.exp %891 : vector<8x32xf32>
    %cst_236 = arith.constant 1.000000e+00 : f32
    %893 = vector.broadcast %cst_236 : f32 to vector<8x32xf32>
    %894 = arith.addf %893, %892 : vector<8x32xf32>
    %895 = arith.divf %893, %894 : vector<8x32xf32>
    %896 = vector.extract_strided_slice %869 {offsets = [0, 32], sizes = [8, 32], strides = [1, 1]} : vector<8x128xf32> to vector<8x32xf32>
    %897 = arith.negf %896 : vector<8x32xf32>
    %898 = math.exp %897 : vector<8x32xf32>
    %cst_237 = arith.constant 1.000000e+00 : f32
    %899 = vector.broadcast %cst_237 : f32 to vector<8x32xf32>
    %900 = arith.addf %899, %898 : vector<8x32xf32>
    %901 = arith.divf %899, %900 : vector<8x32xf32>
    %902 = vector.extract_strided_slice %869 {offsets = [0, 64], sizes = [8, 32], strides = [1, 1]} : vector<8x128xf32> to vector<8x32xf32>
    %903 = math.tanh %902 : vector<8x32xf32>
    %904 = vector.extract_strided_slice %869 {offsets = [0, 96], sizes = [8, 32], strides = [1, 1]} : vector<8x128xf32> to vector<8x32xf32>
    %905 = arith.negf %904 : vector<8x32xf32>
    %906 = math.exp %905 : vector<8x32xf32>
    %cst_238 = arith.constant 1.000000e+00 : f32
    %907 = vector.broadcast %cst_238 : f32 to vector<8x32xf32>
    %908 = arith.addf %907, %906 : vector<8x32xf32>
    %909 = arith.divf %907, %908 : vector<8x32xf32>
    %910 = vector.extract_strided_slice %854 {offsets = [0, 0], sizes = [8, 32], strides = [1, 1]} : vector<8x64xf32> to vector<8x32xf32>
    %911 = arith.mulf %881, %910 : vector<8x32xf32>
    %912 = arith.mulf %875, %883 : vector<8x32xf32>
    %913 = arith.addf %911, %912 : vector<8x32xf32>
    %914 = vector.extract_strided_slice %854 {offsets = [0, 32], sizes = [8, 32], strides = [1, 1]} : vector<8x64xf32> to vector<8x32xf32>
    %915 = arith.mulf %901, %914 : vector<8x32xf32>
    %916 = arith.mulf %895, %903 : vector<8x32xf32>
    %917 = arith.addf %915, %916 : vector<8x32xf32>
    %918 = math.tanh %913 : vector<8x32xf32>
    %919 = arith.mulf %889, %918 : vector<8x32xf32>
    %920 = math.tanh %917 : vector<8x32xf32>
    %921 = arith.mulf %909, %920 : vector<8x32xf32>
    %922 = tpu.concatenate %919, %921 in 1 : vector<8x32xf32>, vector<8x32xf32> -> vector<8x64xf32>
    %923 = tpu.concatenate %913, %917 in 1 : vector<8x32xf32>, vector<8x32xf32> -> vector<8x64xf32>
    %c4_i32_239 = arith.constant 4 : i32
    %c0_240 = arith.constant 0 : index
    %c0_241 = arith.constant 0 : index
    %924 = vector.load %arg5[%c0_240, %c0_241] : memref<64x256xf32, #tpu.memory_space<vmem>>, vector<64x256xf32>
    %cst_242 = arith.constant dense<0.000000e+00> : vector<8x256xf32>
    %925 = tpu.matmul %922, %924, %cst_242 {dimension_numbers = #tpu.dot_dimension_numbers<[1], [0], [0], [1], [0, 0, 1, 1], [], []>} : vector<8x64xf32>, vector<64x256xf32>, vector<8x256xf32> -> vector<8x256xf32>
    %926 = arith.index_cast %c4_i32_239 : i32 to index
    %c0_243 = arith.constant 0 : index
    %c0_244 = arith.constant 0 : index
    %927 = vector.load %arg10[%926, %c0_243, %c0_244] : memref<8x8x256xf32, #tpu.memory_space<vmem>>, vector<1x8x256xf32>
    %928 = vector.shape_cast %927 : vector<1x8x256xf32> to vector<8x256xf32>
    %c7_i32_245 = arith.constant 7 : i32
    %929 = arith.subi %c7_i32_245, %c4_i32_239 : i32
    %930 = arith.index_cast %929 : i32 to index
    %c0_246 = arith.constant 0 : index
    %c0_247 = arith.constant 0 : index
    %931 = vector.load %arg10[%930, %c0_246, %c0_247] : memref<8x8x256xf32, #tpu.memory_space<vmem>>, vector<1x8x256xf32>
    %932 = vector.shape_cast %931 : vector<1x8x256xf32> to vector<8x256xf32>
    %933 = vector.extract_strided_slice %925 {offsets = [0, 0], sizes = [8, 128], strides = [1, 1]} : vector<8x256xf32> to vector<8x128xf32>
    %934 = vector.extract_strided_slice %928 {offsets = [0, 0], sizes = [8, 128], strides = [1, 1]} : vector<8x256xf32> to vector<8x128xf32>
    %935 = arith.addf %933, %934 : vector<8x128xf32>
    %936 = vector.extract_strided_slice %925 {offsets = [0, 128], sizes = [8, 128], strides = [1, 1]} : vector<8x256xf32> to vector<8x128xf32>
    %937 = vector.extract_strided_slice %932 {offsets = [0, 128], sizes = [8, 128], strides = [1, 1]} : vector<8x256xf32> to vector<8x128xf32>
    %938 = arith.addf %936, %937 : vector<8x128xf32>
    %939 = vector.extract_strided_slice %935 {offsets = [0, 0], sizes = [8, 32], strides = [1, 1]} : vector<8x128xf32> to vector<8x32xf32>
    %940 = arith.negf %939 : vector<8x32xf32>
    %941 = math.exp %940 : vector<8x32xf32>
    %cst_248 = arith.constant 1.000000e+00 : f32
    %942 = vector.broadcast %cst_248 : f32 to vector<8x32xf32>
    %943 = arith.addf %942, %941 : vector<8x32xf32>
    %944 = arith.divf %942, %943 : vector<8x32xf32>
    %945 = vector.extract_strided_slice %935 {offsets = [0, 32], sizes = [8, 32], strides = [1, 1]} : vector<8x128xf32> to vector<8x32xf32>
    %946 = arith.negf %945 : vector<8x32xf32>
    %947 = math.exp %946 : vector<8x32xf32>
    %cst_249 = arith.constant 1.000000e+00 : f32
    %948 = vector.broadcast %cst_249 : f32 to vector<8x32xf32>
    %949 = arith.addf %948, %947 : vector<8x32xf32>
    %950 = arith.divf %948, %949 : vector<8x32xf32>
    %951 = vector.extract_strided_slice %935 {offsets = [0, 64], sizes = [8, 32], strides = [1, 1]} : vector<8x128xf32> to vector<8x32xf32>
    %952 = math.tanh %951 : vector<8x32xf32>
    %953 = vector.extract_strided_slice %935 {offsets = [0, 96], sizes = [8, 32], strides = [1, 1]} : vector<8x128xf32> to vector<8x32xf32>
    %954 = arith.negf %953 : vector<8x32xf32>
    %955 = math.exp %954 : vector<8x32xf32>
    %cst_250 = arith.constant 1.000000e+00 : f32
    %956 = vector.broadcast %cst_250 : f32 to vector<8x32xf32>
    %957 = arith.addf %956, %955 : vector<8x32xf32>
    %958 = arith.divf %956, %957 : vector<8x32xf32>
    %959 = vector.extract_strided_slice %938 {offsets = [0, 0], sizes = [8, 32], strides = [1, 1]} : vector<8x128xf32> to vector<8x32xf32>
    %960 = arith.negf %959 : vector<8x32xf32>
    %961 = math.exp %960 : vector<8x32xf32>
    %cst_251 = arith.constant 1.000000e+00 : f32
    %962 = vector.broadcast %cst_251 : f32 to vector<8x32xf32>
    %963 = arith.addf %962, %961 : vector<8x32xf32>
    %964 = arith.divf %962, %963 : vector<8x32xf32>
    %965 = vector.extract_strided_slice %938 {offsets = [0, 32], sizes = [8, 32], strides = [1, 1]} : vector<8x128xf32> to vector<8x32xf32>
    %966 = arith.negf %965 : vector<8x32xf32>
    %967 = math.exp %966 : vector<8x32xf32>
    %cst_252 = arith.constant 1.000000e+00 : f32
    %968 = vector.broadcast %cst_252 : f32 to vector<8x32xf32>
    %969 = arith.addf %968, %967 : vector<8x32xf32>
    %970 = arith.divf %968, %969 : vector<8x32xf32>
    %971 = vector.extract_strided_slice %938 {offsets = [0, 64], sizes = [8, 32], strides = [1, 1]} : vector<8x128xf32> to vector<8x32xf32>
    %972 = math.tanh %971 : vector<8x32xf32>
    %973 = vector.extract_strided_slice %938 {offsets = [0, 96], sizes = [8, 32], strides = [1, 1]} : vector<8x128xf32> to vector<8x32xf32>
    %974 = arith.negf %973 : vector<8x32xf32>
    %975 = math.exp %974 : vector<8x32xf32>
    %cst_253 = arith.constant 1.000000e+00 : f32
    %976 = vector.broadcast %cst_253 : f32 to vector<8x32xf32>
    %977 = arith.addf %976, %975 : vector<8x32xf32>
    %978 = arith.divf %976, %977 : vector<8x32xf32>
    %979 = vector.extract_strided_slice %923 {offsets = [0, 0], sizes = [8, 32], strides = [1, 1]} : vector<8x64xf32> to vector<8x32xf32>
    %980 = arith.mulf %950, %979 : vector<8x32xf32>
    %981 = arith.mulf %944, %952 : vector<8x32xf32>
    %982 = arith.addf %980, %981 : vector<8x32xf32>
    %983 = vector.extract_strided_slice %923 {offsets = [0, 32], sizes = [8, 32], strides = [1, 1]} : vector<8x64xf32> to vector<8x32xf32>
    %984 = arith.mulf %970, %983 : vector<8x32xf32>
    %985 = arith.mulf %964, %972 : vector<8x32xf32>
    %986 = arith.addf %984, %985 : vector<8x32xf32>
    %987 = math.tanh %982 : vector<8x32xf32>
    %988 = arith.mulf %958, %987 : vector<8x32xf32>
    %989 = math.tanh %986 : vector<8x32xf32>
    %990 = arith.mulf %978, %989 : vector<8x32xf32>
    %991 = tpu.concatenate %988, %990 in 1 : vector<8x32xf32>, vector<8x32xf32> -> vector<8x64xf32>
    %992 = tpu.concatenate %982, %986 in 1 : vector<8x32xf32>, vector<8x32xf32> -> vector<8x64xf32>
    %c5_i32_254 = arith.constant 5 : i32
    %c0_255 = arith.constant 0 : index
    %c0_256 = arith.constant 0 : index
    %993 = vector.load %arg5[%c0_255, %c0_256] : memref<64x256xf32, #tpu.memory_space<vmem>>, vector<64x256xf32>
    %cst_257 = arith.constant dense<0.000000e+00> : vector<8x256xf32>
    %994 = tpu.matmul %991, %993, %cst_257 {dimension_numbers = #tpu.dot_dimension_numbers<[1], [0], [0], [1], [0, 0, 1, 1], [], []>} : vector<8x64xf32>, vector<64x256xf32>, vector<8x256xf32> -> vector<8x256xf32>
    %995 = arith.index_cast %c5_i32_254 : i32 to index
    %c0_258 = arith.constant 0 : index
    %c0_259 = arith.constant 0 : index
    %996 = vector.load %arg10[%995, %c0_258, %c0_259] : memref<8x8x256xf32, #tpu.memory_space<vmem>>, vector<1x8x256xf32>
    %997 = vector.shape_cast %996 : vector<1x8x256xf32> to vector<8x256xf32>
    %c7_i32_260 = arith.constant 7 : i32
    %998 = arith.subi %c7_i32_260, %c5_i32_254 : i32
    %999 = arith.index_cast %998 : i32 to index
    %c0_261 = arith.constant 0 : index
    %c0_262 = arith.constant 0 : index
    %1000 = vector.load %arg10[%999, %c0_261, %c0_262] : memref<8x8x256xf32, #tpu.memory_space<vmem>>, vector<1x8x256xf32>
    %1001 = vector.shape_cast %1000 : vector<1x8x256xf32> to vector<8x256xf32>
    %1002 = vector.extract_strided_slice %994 {offsets = [0, 0], sizes = [8, 128], strides = [1, 1]} : vector<8x256xf32> to vector<8x128xf32>
    %1003 = vector.extract_strided_slice %997 {offsets = [0, 0], sizes = [8, 128], strides = [1, 1]} : vector<8x256xf32> to vector<8x128xf32>
    %1004 = arith.addf %1002, %1003 : vector<8x128xf32>
    %1005 = vector.extract_strided_slice %994 {offsets = [0, 128], sizes = [8, 128], strides = [1, 1]} : vector<8x256xf32> to vector<8x128xf32>
    %1006 = vector.extract_strided_slice %1001 {offsets = [0, 128], sizes = [8, 128], strides = [1, 1]} : vector<8x256xf32> to vector<8x128xf32>
    %1007 = arith.addf %1005, %1006 : vector<8x128xf32>
    %1008 = vector.extract_strided_slice %1004 {offsets = [0, 0], sizes = [8, 32], strides = [1, 1]} : vector<8x128xf32> to vector<8x32xf32>
    %1009 = arith.negf %1008 : vector<8x32xf32>
    %1010 = math.exp %1009 : vector<8x32xf32>
    %cst_263 = arith.constant 1.000000e+00 : f32
    %1011 = vector.broadcast %cst_263 : f32 to vector<8x32xf32>
    %1012 = arith.addf %1011, %1010 : vector<8x32xf32>
    %1013 = arith.divf %1011, %1012 : vector<8x32xf32>
    %1014 = vector.extract_strided_slice %1004 {offsets = [0, 32], sizes = [8, 32], strides = [1, 1]} : vector<8x128xf32> to vector<8x32xf32>
    %1015 = arith.negf %1014 : vector<8x32xf32>
    %1016 = math.exp %1015 : vector<8x32xf32>
    %cst_264 = arith.constant 1.000000e+00 : f32
    %1017 = vector.broadcast %cst_264 : f32 to vector<8x32xf32>
    %1018 = arith.addf %1017, %1016 : vector<8x32xf32>
    %1019 = arith.divf %1017, %1018 : vector<8x32xf32>
    %1020 = vector.extract_strided_slice %1004 {offsets = [0, 64], sizes = [8, 32], strides = [1, 1]} : vector<8x128xf32> to vector<8x32xf32>
    %1021 = math.tanh %1020 : vector<8x32xf32>
    %1022 = vector.extract_strided_slice %1004 {offsets = [0, 96], sizes = [8, 32], strides = [1, 1]} : vector<8x128xf32> to vector<8x32xf32>
    %1023 = arith.negf %1022 : vector<8x32xf32>
    %1024 = math.exp %1023 : vector<8x32xf32>
    %cst_265 = arith.constant 1.000000e+00 : f32
    %1025 = vector.broadcast %cst_265 : f32 to vector<8x32xf32>
    %1026 = arith.addf %1025, %1024 : vector<8x32xf32>
    %1027 = arith.divf %1025, %1026 : vector<8x32xf32>
    %1028 = vector.extract_strided_slice %1007 {offsets = [0, 0], sizes = [8, 32], strides = [1, 1]} : vector<8x128xf32> to vector<8x32xf32>
    %1029 = arith.negf %1028 : vector<8x32xf32>
    %1030 = math.exp %1029 : vector<8x32xf32>
    %cst_266 = arith.constant 1.000000e+00 : f32
    %1031 = vector.broadcast %cst_266 : f32 to vector<8x32xf32>
    %1032 = arith.addf %1031, %1030 : vector<8x32xf32>
    %1033 = arith.divf %1031, %1032 : vector<8x32xf32>
    %1034 = vector.extract_strided_slice %1007 {offsets = [0, 32], sizes = [8, 32], strides = [1, 1]} : vector<8x128xf32> to vector<8x32xf32>
    %1035 = arith.negf %1034 : vector<8x32xf32>
    %1036 = math.exp %1035 : vector<8x32xf32>
    %cst_267 = arith.constant 1.000000e+00 : f32
    %1037 = vector.broadcast %cst_267 : f32 to vector<8x32xf32>
    %1038 = arith.addf %1037, %1036 : vector<8x32xf32>
    %1039 = arith.divf %1037, %1038 : vector<8x32xf32>
    %1040 = vector.extract_strided_slice %1007 {offsets = [0, 64], sizes = [8, 32], strides = [1, 1]} : vector<8x128xf32> to vector<8x32xf32>
    %1041 = math.tanh %1040 : vector<8x32xf32>
    %1042 = vector.extract_strided_slice %1007 {offsets = [0, 96], sizes = [8, 32], strides = [1, 1]} : vector<8x128xf32> to vector<8x32xf32>
    %1043 = arith.negf %1042 : vector<8x32xf32>
    %1044 = math.exp %1043 : vector<8x32xf32>
    %cst_268 = arith.constant 1.000000e+00 : f32
    %1045 = vector.broadcast %cst_268 : f32 to vector<8x32xf32>
    %1046 = arith.addf %1045, %1044 : vector<8x32xf32>
    %1047 = arith.divf %1045, %1046 : vector<8x32xf32>
    %1048 = vector.extract_strided_slice %992 {offsets = [0, 0], sizes = [8, 32], strides = [1, 1]} : vector<8x64xf32> to vector<8x32xf32>
    %1049 = arith.mulf %1019, %1048 : vector<8x32xf32>
    %1050 = arith.mulf %1013, %1021 : vector<8x32xf32>
    %1051 = arith.addf %1049, %1050 : vector<8x32xf32>
    %1052 = vector.extract_strided_slice %992 {offsets = [0, 32], sizes = [8, 32], strides = [1, 1]} : vector<8x64xf32> to vector<8x32xf32>
    %1053 = arith.mulf %1039, %1052 : vector<8x32xf32>
    %1054 = arith.mulf %1033, %1041 : vector<8x32xf32>
    %1055 = arith.addf %1053, %1054 : vector<8x32xf32>
    %1056 = math.tanh %1051 : vector<8x32xf32>
    %1057 = arith.mulf %1027, %1056 : vector<8x32xf32>
    %1058 = math.tanh %1055 : vector<8x32xf32>
    %1059 = arith.mulf %1047, %1058 : vector<8x32xf32>
    %1060 = tpu.concatenate %1057, %1059 in 1 : vector<8x32xf32>, vector<8x32xf32> -> vector<8x64xf32>
    %1061 = tpu.concatenate %1051, %1055 in 1 : vector<8x32xf32>, vector<8x32xf32> -> vector<8x64xf32>
    %c6_i32_269 = arith.constant 6 : i32
    %c0_270 = arith.constant 0 : index
    %c0_271 = arith.constant 0 : index
    %1062 = vector.load %arg5[%c0_270, %c0_271] : memref<64x256xf32, #tpu.memory_space<vmem>>, vector<64x256xf32>
    %cst_272 = arith.constant dense<0.000000e+00> : vector<8x256xf32>
    %1063 = tpu.matmul %1060, %1062, %cst_272 {dimension_numbers = #tpu.dot_dimension_numbers<[1], [0], [0], [1], [0, 0, 1, 1], [], []>} : vector<8x64xf32>, vector<64x256xf32>, vector<8x256xf32> -> vector<8x256xf32>
    %1064 = arith.index_cast %c6_i32_269 : i32 to index
    %c0_273 = arith.constant 0 : index
    %c0_274 = arith.constant 0 : index
    %1065 = vector.load %arg10[%1064, %c0_273, %c0_274] : memref<8x8x256xf32, #tpu.memory_space<vmem>>, vector<1x8x256xf32>
    %1066 = vector.shape_cast %1065 : vector<1x8x256xf32> to vector<8x256xf32>
    %c7_i32_275 = arith.constant 7 : i32
    %1067 = arith.subi %c7_i32_275, %c6_i32_269 : i32
    %1068 = arith.index_cast %1067 : i32 to index
    %c0_276 = arith.constant 0 : index
    %c0_277 = arith.constant 0 : index
    %1069 = vector.load %arg10[%1068, %c0_276, %c0_277] : memref<8x8x256xf32, #tpu.memory_space<vmem>>, vector<1x8x256xf32>
    %1070 = vector.shape_cast %1069 : vector<1x8x256xf32> to vector<8x256xf32>
    %1071 = vector.extract_strided_slice %1063 {offsets = [0, 0], sizes = [8, 128], strides = [1, 1]} : vector<8x256xf32> to vector<8x128xf32>
    %1072 = vector.extract_strided_slice %1066 {offsets = [0, 0], sizes = [8, 128], strides = [1, 1]} : vector<8x256xf32> to vector<8x128xf32>
    %1073 = arith.addf %1071, %1072 : vector<8x128xf32>
    %1074 = vector.extract_strided_slice %1063 {offsets = [0, 128], sizes = [8, 128], strides = [1, 1]} : vector<8x256xf32> to vector<8x128xf32>
    %1075 = vector.extract_strided_slice %1070 {offsets = [0, 128], sizes = [8, 128], strides = [1, 1]} : vector<8x256xf32> to vector<8x128xf32>
    %1076 = arith.addf %1074, %1075 : vector<8x128xf32>
    %1077 = vector.extract_strided_slice %1073 {offsets = [0, 0], sizes = [8, 32], strides = [1, 1]} : vector<8x128xf32> to vector<8x32xf32>
    %1078 = arith.negf %1077 : vector<8x32xf32>
    %1079 = math.exp %1078 : vector<8x32xf32>
    %cst_278 = arith.constant 1.000000e+00 : f32
    %1080 = vector.broadcast %cst_278 : f32 to vector<8x32xf32>
    %1081 = arith.addf %1080, %1079 : vector<8x32xf32>
    %1082 = arith.divf %1080, %1081 : vector<8x32xf32>
    %1083 = vector.extract_strided_slice %1073 {offsets = [0, 32], sizes = [8, 32], strides = [1, 1]} : vector<8x128xf32> to vector<8x32xf32>
    %1084 = arith.negf %1083 : vector<8x32xf32>
    %1085 = math.exp %1084 : vector<8x32xf32>
    %cst_279 = arith.constant 1.000000e+00 : f32
    %1086 = vector.broadcast %cst_279 : f32 to vector<8x32xf32>
    %1087 = arith.addf %1086, %1085 : vector<8x32xf32>
    %1088 = arith.divf %1086, %1087 : vector<8x32xf32>
    %1089 = vector.extract_strided_slice %1073 {offsets = [0, 64], sizes = [8, 32], strides = [1, 1]} : vector<8x128xf32> to vector<8x32xf32>
    %1090 = math.tanh %1089 : vector<8x32xf32>
    %1091 = vector.extract_strided_slice %1073 {offsets = [0, 96], sizes = [8, 32], strides = [1, 1]} : vector<8x128xf32> to vector<8x32xf32>
    %1092 = arith.negf %1091 : vector<8x32xf32>
    %1093 = math.exp %1092 : vector<8x32xf32>
    %cst_280 = arith.constant 1.000000e+00 : f32
    %1094 = vector.broadcast %cst_280 : f32 to vector<8x32xf32>
    %1095 = arith.addf %1094, %1093 : vector<8x32xf32>
    %1096 = arith.divf %1094, %1095 : vector<8x32xf32>
    %1097 = vector.extract_strided_slice %1076 {offsets = [0, 0], sizes = [8, 32], strides = [1, 1]} : vector<8x128xf32> to vector<8x32xf32>
    %1098 = arith.negf %1097 : vector<8x32xf32>
    %1099 = math.exp %1098 : vector<8x32xf32>
    %cst_281 = arith.constant 1.000000e+00 : f32
    %1100 = vector.broadcast %cst_281 : f32 to vector<8x32xf32>
    %1101 = arith.addf %1100, %1099 : vector<8x32xf32>
    %1102 = arith.divf %1100, %1101 : vector<8x32xf32>
    %1103 = vector.extract_strided_slice %1076 {offsets = [0, 32], sizes = [8, 32], strides = [1, 1]} : vector<8x128xf32> to vector<8x32xf32>
    %1104 = arith.negf %1103 : vector<8x32xf32>
    %1105 = math.exp %1104 : vector<8x32xf32>
    %cst_282 = arith.constant 1.000000e+00 : f32
    %1106 = vector.broadcast %cst_282 : f32 to vector<8x32xf32>
    %1107 = arith.addf %1106, %1105 : vector<8x32xf32>
    %1108 = arith.divf %1106, %1107 : vector<8x32xf32>
    %1109 = vector.extract_strided_slice %1076 {offsets = [0, 64], sizes = [8, 32], strides = [1, 1]} : vector<8x128xf32> to vector<8x32xf32>
    %1110 = math.tanh %1109 : vector<8x32xf32>
    %1111 = vector.extract_strided_slice %1076 {offsets = [0, 96], sizes = [8, 32], strides = [1, 1]} : vector<8x128xf32> to vector<8x32xf32>
    %1112 = arith.negf %1111 : vector<8x32xf32>
    %1113 = math.exp %1112 : vector<8x32xf32>
    %cst_283 = arith.constant 1.000000e+00 : f32
    %1114 = vector.broadcast %cst_283 : f32 to vector<8x32xf32>
    %1115 = arith.addf %1114, %1113 : vector<8x32xf32>
    %1116 = arith.divf %1114, %1115 : vector<8x32xf32>
    %1117 = vector.extract_strided_slice %1061 {offsets = [0, 0], sizes = [8, 32], strides = [1, 1]} : vector<8x64xf32> to vector<8x32xf32>
    %1118 = arith.mulf %1088, %1117 : vector<8x32xf32>
    %1119 = arith.mulf %1082, %1090 : vector<8x32xf32>
    %1120 = arith.addf %1118, %1119 : vector<8x32xf32>
    %1121 = vector.extract_strided_slice %1061 {offsets = [0, 32], sizes = [8, 32], strides = [1, 1]} : vector<8x64xf32> to vector<8x32xf32>
    %1122 = arith.mulf %1108, %1121 : vector<8x32xf32>
    %1123 = arith.mulf %1102, %1110 : vector<8x32xf32>
    %1124 = arith.addf %1122, %1123 : vector<8x32xf32>
    %1125 = math.tanh %1120 : vector<8x32xf32>
    %1126 = arith.mulf %1096, %1125 : vector<8x32xf32>
    %1127 = math.tanh %1124 : vector<8x32xf32>
    %1128 = arith.mulf %1116, %1127 : vector<8x32xf32>
    %1129 = tpu.concatenate %1126, %1128 in 1 : vector<8x32xf32>, vector<8x32xf32> -> vector<8x64xf32>
    %1130 = tpu.concatenate %1120, %1124 in 1 : vector<8x32xf32>, vector<8x32xf32> -> vector<8x64xf32>
    %c7_i32_284 = arith.constant 7 : i32
    %c0_285 = arith.constant 0 : index
    %c0_286 = arith.constant 0 : index
    %1131 = vector.load %arg5[%c0_285, %c0_286] : memref<64x256xf32, #tpu.memory_space<vmem>>, vector<64x256xf32>
    %cst_287 = arith.constant dense<0.000000e+00> : vector<8x256xf32>
    %1132 = tpu.matmul %1129, %1131, %cst_287 {dimension_numbers = #tpu.dot_dimension_numbers<[1], [0], [0], [1], [0, 0, 1, 1], [], []>} : vector<8x64xf32>, vector<64x256xf32>, vector<8x256xf32> -> vector<8x256xf32>
    %1133 = arith.index_cast %c7_i32_284 : i32 to index
    %c0_288 = arith.constant 0 : index
    %c0_289 = arith.constant 0 : index
    %1134 = vector.load %arg10[%1133, %c0_288, %c0_289] : memref<8x8x256xf32, #tpu.memory_space<vmem>>, vector<1x8x256xf32>
    %1135 = vector.shape_cast %1134 : vector<1x8x256xf32> to vector<8x256xf32>
    %c7_i32_290 = arith.constant 7 : i32
    %1136 = arith.subi %c7_i32_290, %c7_i32_284 : i32
    %1137 = arith.index_cast %1136 : i32 to index
    %c0_291 = arith.constant 0 : index
    %c0_292 = arith.constant 0 : index
    %1138 = vector.load %arg10[%1137, %c0_291, %c0_292] : memref<8x8x256xf32, #tpu.memory_space<vmem>>, vector<1x8x256xf32>
    %1139 = vector.shape_cast %1138 : vector<1x8x256xf32> to vector<8x256xf32>
    %1140 = vector.extract_strided_slice %1132 {offsets = [0, 0], sizes = [8, 128], strides = [1, 1]} : vector<8x256xf32> to vector<8x128xf32>
    %1141 = vector.extract_strided_slice %1135 {offsets = [0, 0], sizes = [8, 128], strides = [1, 1]} : vector<8x256xf32> to vector<8x128xf32>
    %1142 = arith.addf %1140, %1141 : vector<8x128xf32>
    %1143 = vector.extract_strided_slice %1132 {offsets = [0, 128], sizes = [8, 128], strides = [1, 1]} : vector<8x256xf32> to vector<8x128xf32>
    %1144 = vector.extract_strided_slice %1139 {offsets = [0, 128], sizes = [8, 128], strides = [1, 1]} : vector<8x256xf32> to vector<8x128xf32>
    %1145 = arith.addf %1143, %1144 : vector<8x128xf32>
    %1146 = vector.extract_strided_slice %1142 {offsets = [0, 0], sizes = [8, 32], strides = [1, 1]} : vector<8x128xf32> to vector<8x32xf32>
    %1147 = arith.negf %1146 : vector<8x32xf32>
    %1148 = math.exp %1147 : vector<8x32xf32>
    %cst_293 = arith.constant 1.000000e+00 : f32
    %1149 = vector.broadcast %cst_293 : f32 to vector<8x32xf32>
    %1150 = arith.addf %1149, %1148 : vector<8x32xf32>
    %1151 = arith.divf %1149, %1150 : vector<8x32xf32>
    %1152 = vector.extract_strided_slice %1142 {offsets = [0, 32], sizes = [8, 32], strides = [1, 1]} : vector<8x128xf32> to vector<8x32xf32>
    %1153 = arith.negf %1152 : vector<8x32xf32>
    %1154 = math.exp %1153 : vector<8x32xf32>
    %cst_294 = arith.constant 1.000000e+00 : f32
    %1155 = vector.broadcast %cst_294 : f32 to vector<8x32xf32>
    %1156 = arith.addf %1155, %1154 : vector<8x32xf32>
    %1157 = arith.divf %1155, %1156 : vector<8x32xf32>
    %1158 = vector.extract_strided_slice %1142 {offsets = [0, 64], sizes = [8, 32], strides = [1, 1]} : vector<8x128xf32> to vector<8x32xf32>
    %1159 = math.tanh %1158 : vector<8x32xf32>
    %1160 = vector.extract_strided_slice %1142 {offsets = [0, 96], sizes = [8, 32], strides = [1, 1]} : vector<8x128xf32> to vector<8x32xf32>
    %1161 = arith.negf %1160 : vector<8x32xf32>
    %1162 = math.exp %1161 : vector<8x32xf32>
    %cst_295 = arith.constant 1.000000e+00 : f32
    %1163 = vector.broadcast %cst_295 : f32 to vector<8x32xf32>
    %1164 = arith.addf %1163, %1162 : vector<8x32xf32>
    %1165 = arith.divf %1163, %1164 : vector<8x32xf32>
    %1166 = vector.extract_strided_slice %1145 {offsets = [0, 0], sizes = [8, 32], strides = [1, 1]} : vector<8x128xf32> to vector<8x32xf32>
    %1167 = arith.negf %1166 : vector<8x32xf32>
    %1168 = math.exp %1167 : vector<8x32xf32>
    %cst_296 = arith.constant 1.000000e+00 : f32
    %1169 = vector.broadcast %cst_296 : f32 to vector<8x32xf32>
    %1170 = arith.addf %1169, %1168 : vector<8x32xf32>
    %1171 = arith.divf %1169, %1170 : vector<8x32xf32>
    %1172 = vector.extract_strided_slice %1145 {offsets = [0, 32], sizes = [8, 32], strides = [1, 1]} : vector<8x128xf32> to vector<8x32xf32>
    %1173 = arith.negf %1172 : vector<8x32xf32>
    %1174 = math.exp %1173 : vector<8x32xf32>
    %cst_297 = arith.constant 1.000000e+00 : f32
    %1175 = vector.broadcast %cst_297 : f32 to vector<8x32xf32>
    %1176 = arith.addf %1175, %1174 : vector<8x32xf32>
    %1177 = arith.divf %1175, %1176 : vector<8x32xf32>
    %1178 = vector.extract_strided_slice %1145 {offsets = [0, 64], sizes = [8, 32], strides = [1, 1]} : vector<8x128xf32> to vector<8x32xf32>
    %1179 = math.tanh %1178 : vector<8x32xf32>
    %1180 = vector.extract_strided_slice %1145 {offsets = [0, 96], sizes = [8, 32], strides = [1, 1]} : vector<8x128xf32> to vector<8x32xf32>
    %1181 = arith.negf %1180 : vector<8x32xf32>
    %1182 = math.exp %1181 : vector<8x32xf32>
    %cst_298 = arith.constant 1.000000e+00 : f32
    %1183 = vector.broadcast %cst_298 : f32 to vector<8x32xf32>
    %1184 = arith.addf %1183, %1182 : vector<8x32xf32>
    %1185 = arith.divf %1183, %1184 : vector<8x32xf32>
    %1186 = vector.extract_strided_slice %1130 {offsets = [0, 0], sizes = [8, 32], strides = [1, 1]} : vector<8x64xf32> to vector<8x32xf32>
    %1187 = arith.mulf %1157, %1186 : vector<8x32xf32>
    %1188 = arith.mulf %1151, %1159 : vector<8x32xf32>
    %1189 = arith.addf %1187, %1188 : vector<8x32xf32>
    %1190 = vector.extract_strided_slice %1130 {offsets = [0, 32], sizes = [8, 32], strides = [1, 1]} : vector<8x64xf32> to vector<8x32xf32>
    %1191 = arith.mulf %1177, %1190 : vector<8x32xf32>
    %1192 = arith.mulf %1171, %1179 : vector<8x32xf32>
    %1193 = arith.addf %1191, %1192 : vector<8x32xf32>
    %1194 = math.tanh %1189 : vector<8x32xf32>
    %1195 = arith.mulf %1165, %1194 : vector<8x32xf32>
    %1196 = math.tanh %1193 : vector<8x32xf32>
    %1197 = arith.mulf %1185, %1196 : vector<8x32xf32>
    %1198 = tpu.concatenate %1195, %1197 in 1 : vector<8x32xf32>, vector<8x32xf32> -> vector<8x64xf32>
    %1199 = tpu.concatenate %1189, %1193 in 1 : vector<8x32xf32>, vector<8x32xf32> -> vector<8x64xf32>
    %c8_i32_299 = arith.constant 8 : i32
    %c0_300 = arith.constant 0 : index
    %c0_301 = arith.constant 0 : index
    %1200 = vector.load %arg7[%c0_300, %c0_301] : memref<64x1xf32, #tpu.memory_space<vmem>>, vector<64x1xf32>
    %cst_302 = arith.constant dense<0.000000e+00> : vector<8x1xf32>
    %1201 = tpu.matmul %1198, %1200, %cst_302 {dimension_numbers = #tpu.dot_dimension_numbers<[1], [0], [0], [1], [0, 0, 1, 1], [], []>} : vector<8x64xf32>, vector<64x1xf32>, vector<8x1xf32> -> vector<8x1xf32>
    %c0_303 = arith.constant 0 : index
    %c0_304 = arith.constant 0 : index
    %1202 = vector.load %arg8[%c0_303, %c0_304] : memref<1x1xf32, #tpu.memory_space<vmem>>, vector<1x1xf32>
    %1203 = vector.broadcast %1202 : vector<1x1xf32> to vector<8x1xf32>
    %1204 = arith.addf %1201, %1203 : vector<8x1xf32>
    %c0_305 = arith.constant 0 : index
    %c0_306 = arith.constant 0 : index
    %1205 = vector.load %arg9[%c0_305, %c0_306] : memref<8x1xf32, #tpu.memory_space<vmem>>, vector<8x1xf32>
    tpu.vector_store %arg9[%c0_305, %c0_306], %1204 {strides = array<i32>} : memref<8x1xf32, #tpu.memory_space<vmem>>, vector<8x1xf32>,
    return
  }
}

</mosaic_0001>

<llo_original>
// kernel: rnn_movie_forward.1
$region0: #{rnn_movie_forward.1}
  #allocation0 [shape = 'u32[]', space=smem, size = 0x4, offset = 0x4, fixed_abs, tag = 'smem constant byte address 0x4 - core index']
  #allocation1 [shape = 'u32[144,128]{1,0:T(1,128)}', space=vmem, size = 0x12000, scoped, tag = 'internal scratch']
  #allocation2 [shape = 'f32[8,8,256]{2,1,0:T(8,128)}', space=vmem, size = 0x10000, scoped, tag = 'scratch operand']
  #allocation3 [shape = 'f32[8,8,32]{2,1,0:T(8,128)}', space=vmem, size = 0x8000, scoped, tag = 'scratch operand']
  #allocation4 [shape = 'f32[8,8,32]{2,1,0:T(8,128)}', space=vmem, size = 0x8000, scoped, tag = 'scratch operand']
  #allocation5 [shape = 'f32[1,1]{1,0:T(1,128)S(1)}', space=vmem, size = 0x200, scoped, tag = 'scoped memory for rnn_movie_forward.1']
  %s0 = inlined_call_operand.vmem [shape: f32[8,8,32], index: 0, kind: input, shape index: {}]
  %s1 = inlined_call_operand.vmem [shape: f32[32,256], index: 1, kind: input, shape index: {}]
  %s2 = inlined_call_operand.vmem [shape: f32[64,256], index: 2, kind: input, shape index: {}]
  %s3 = inlined_call_operand.vmem [shape: f32[1,256], index: 3, kind: input, shape index: {}]
  %s4 = inlined_call_operand.vmem [shape: f32[64,256], index: 4, kind: input, shape index: {}]
  %s5 = inlined_call_operand.vmem [shape: f32[64,256], index: 5, kind: input, shape index: {}]
  %s6 = inlined_call_operand.vmem [shape: f32[1,256], index: 6, kind: input, shape index: {}]
  %s7 = inlined_call_operand.vmem [shape: f32[64,1], index: 7, kind: input, shape index: {}]
  %s8 = inlined_call_operand.<no memory space> [shape: f32[1,1], index: 8, kind: input, shape index: {}]
  %s9 = inlined_call_operand.vmem [shape: f32[8,1], index: 9, kind: output, shape index: {}]
  %s10 = sld [smem:[#allocation0]]
  $region46: #{rnn_movie_forward.1} parent=0
    _
  %s12 = ssub.s32 1, %s10
  %s13 = scalar_select 0, %s12, %s10
  %v14 = vstv %s8
  %15 = vst [vmem:[#allocation5] sm:$0x1] %v14
  // Predicated region
  $region2: #{rnn_movie_forward.1} parent=0 // pred_check
    _
  $region3: #{rnn_movie_forward.1} parent=0 // pred_check_branch
    %17 = sbr.rel (0) target = $region5
  $region4: #{rnn_movie_forward.1} parent=0 // pred_region
    _
  $region5: #{rnn_movie_forward.1} parent=0 // pred_fallthru
    _
  // Predicated region
  $region6: #{rnn_movie_forward.1} parent=0 // pred_check
    _
  $region7: #{rnn_movie_forward.1} parent=0 // pred_check_branch
    %19 = sbr.rel (0) target = $region9
  $region8: #{rnn_movie_forward.1} parent=0 // pred_region
    _
  $region9: #{rnn_movie_forward.1} parent=0 // pred_fallthru
    _
  // Predicated region
  $region10: #{rnn_movie_forward.1} parent=0 // pred_check
    _
  $region11: #{rnn_movie_forward.1} parent=0 // pred_check_branch
    %21 = sbr.rel (0) target = $region13
  $region12: #{rnn_movie_forward.1} parent=0 // pred_region
    _
  $region13: #{rnn_movie_forward.1} parent=0 // pred_fallthru
    _
  // Predicated region
  $region14: #{rnn_movie_forward.1} parent=0 // pred_check
    _
  $region15: #{rnn_movie_forward.1} parent=0 // pred_check_branch
    %23 = sbr.rel (0) target = $region17
  $region16: #{rnn_movie_forward.1} parent=0 // pred_region
    _
  $region17: #{rnn_movie_forward.1} parent=0 // pred_fallthru
    _
  // Predicated region
  $region18: #{rnn_movie_forward.1} parent=0 // pred_check
    _
  $region19: #{rnn_movie_forward.1} parent=0 // pred_check_branch
    %25 = sbr.rel (0) target = $region21
  $region20: #{rnn_movie_forward.1} parent=0 // pred_region
    _
  $region21: #{rnn_movie_forward.1} parent=0 // pred_fallthru
    _
  // Predicated region
  $region22: #{rnn_movie_forward.1} parent=0 // pred_check
    _
  $region23: #{rnn_movie_forward.1} parent=0 // pred_check_branch
    %27 = sbr.rel (0) target = $region25
  $region24: #{rnn_movie_forward.1} parent=0 // pred_region
    _
  $region25: #{rnn_movie_forward.1} parent=0 // pred_fallthru
    _
  // Predicated region
  $region26: #{rnn_movie_forward.1} parent=0 // pred_check
    _
  $region27: #{rnn_movie_forward.1} parent=0 // pred_check_branch
    %29 = sbr.rel (0) target = $region29
  $region28: #{rnn_movie_forward.1} parent=0 // pred_region
    _
  $region29: #{rnn_movie_forward.1} parent=0 // pred_fallthru
    _
  // Predicated region
  $region30: #{rnn_movie_forward.1} parent=0 // pred_check
    _
  $region31: #{rnn_movie_forward.1} parent=0 // pred_check_branch
    %31 = sbr.rel (0) target = $region33
  $region32: #{rnn_movie_forward.1} parent=0 // pred_region
    _
  $region33: #{rnn_movie_forward.1} parent=0 // pred_fallthru
    _
  // Predicated region
  $region34: #{rnn_movie_forward.1} parent=0 // pred_check
    _
  $region35: #{rnn_movie_forward.1} parent=0 // pred_check_branch
    %33 = sbr.rel (0) target = $region37
  $region36: #{rnn_movie_forward.1} parent=0 // pred_region
    _
  $region37: #{rnn_movie_forward.1} parent=0 // pred_fallthru
    _
  %v34 = vld [vmem:[%s0] sm:$0xff]
  %v35 = vld [vmem:[%s0 + $0x8] sm:$0xff]
  %v36 = vld [vmem:[%s0 + $0x10] sm:$0xff]
  %v37 = vld [vmem:[%s0 + $0x18] sm:$0xff]
  %v38 = vld [vmem:[%s0 + $0x20] sm:$0xff]
  %v39 = vld [vmem:[%s0 + $0x28] sm:$0xff]
  %v40 = vld [vmem:[%s0 + $0x30] sm:$0xff]
  %v41 = vld [vmem:[%s0 + $0x38] sm:$0xff]
  %v42 = vld [vmem:[%s1] sm:$0xff]
  %v43 = vld [vmem:[%s1 + $0x8] sm:$0xff]
  %v44 = vld [vmem:[%s1 + $0x10] sm:$0xff]
  %v45 = vld [vmem:[%s1 + $0x18] sm:$0xff]
  %v46 = vld [vmem:[%s1 + $0x20] sm:$0xff]
  %v47 = vld [vmem:[%s1 + $0x28] sm:$0xff]
  %v48 = vld [vmem:[%s1 + $0x30] sm:$0xff]
  %v49 = vld [vmem:[%s1 + $0x38] sm:$0xff]
  %v50 = vld [vmem:[%s3] sm:$0x3]
  %v52 = vlaneseq
  %v53 = vshrl.u32 %v52, 7
  %v54 = vsub.s32 0, %v53
  %v55 = vrot.slane %v50, %v54
  %v56 = vlaneseq
  %v57 = vshrl.u32 %v56, 7
  %v58 = vsub.s32 1, %v57
  %v59 = vrot.slane %v50, %v58
  %vm62 = vcmask 261120
  %v64 = vsel %vm62, %v34, 0
  %v67 = vsel %vm62, %v35, 0
  %v70 = vsel %vm62, %v36, 0
  %v73 = vsel %vm62, %v37, 0
  %v76 = vsel %vm62, %v38, 0
  %v79 = vsel %vm62, %v39, 0
  %v82 = vsel %vm62, %v40, 0
  %v85 = vsel %vm62, %v41, 0
  %87 = vmatprep.subr.mxu0 %v43
  %88 = vmatpush1.msra.mxu0 %v42
  %89 = vmatprep.subr.mxu0 %v45
  %90 = vmatpush1.msra.mxu0 %v44
  %91 = vmatprep.subr.mxu0 %v47
  %92 = vmatpush1.msra.mxu0 %v46
  %93 = vmatprep.subr.mxu0 %v49
  %94 = vmatpush1.msra.mxu0 %v48
  %95 = vmatprep.subr.mxu0 0.0
  %96 = vmatpush1.msra.mxu0 0.0
  %97 = vmatprep.subr.mxu0 0.0
  %98 = vmatpush1.msra.mxu0 0.0
  %99 = vmatprep.subr.mxu0 0.0
  %100 = vmatpush1.msra.mxu0 0.0
  %101 = vmatprep.subr.mxu0 0.0
  %102 = vmatpush1.msra.mxu0 0.0
  %103 = vmatprep.subr.mxu0 0.0
  %104 = vmatpush1.msra.mxu0 0.0
  %105 = vmatprep.subr.mxu0 0.0
  %106 = vmatpush1.msra.mxu0 0.0
  %107 = vmatprep.subr.mxu0 0.0
  %108 = vmatpush1.msra.mxu0 0.0
  %109 = vmatprep.subr.mxu0 0.0
  %110 = vmatpush1.msra.mxu0 0.0
  %111 = vmatprep.subr.mxu0 0.0
  %112 = vmatpush1.msra.mxu0 0.0
  %113 = vmatprep.subr.mxu0 0.0
  %114 = vmatpush1.msra.mxu0 0.0
  %115 = vmatprep.subr.mxu0 0.0
  %116 = vmatpush1.msra.mxu0 0.0
  %117 = vmatprep.subr.mxu0 0.0
  %118 = vmatpush1.msra.mxu0 0.0
  %119 = vmatprep.subr.mxu0 0.0
  %120 = vmatpush1.msra.mxu0 0.0
  %121 = vmatprep.subr.mxu0 0.0
  %122 = vmatpush1.msra.mxu0 0.0
  %123 = vmatprep.subr.mxu0 0.0
  %124 = vmatpush1.msra.mxu0 0.0
  %125 = vmatprep.subr.mxu0 0.0
  %126 = vmatpush1.msra.mxu0 0.0
  %127 = vmatprep.subr.mxu0 0.0
  %128 = vmatpush1.msra.mxu0 0.0
  %129 = vmatprep.subr.mxu0 0.0
  %130 = vmatpush1.msra.mxu0 0.0
  %131 = vmatprep.subr.mxu0 0.0
  %132 = vmatpush1.msra.mxu0 0.0
  %133 = vmatprep.subr.mxu0 0.0
  %134 = vmatpush1.msra.mxu0 0.0
  %135 = vmatprep.subr.mxu0 0.0
  %136 = vmatpush1.msra.mxu0 0.0
  %137 = vmatprep.subr.mxu0 0.0
  %138 = vmatpush1.msra.mxu0 0.0
  %139 = vmatprep.subr.mxu0 0.0
  %140 = vmatpush1.msra.mxu0 0.0
  %141 = vmatprep.subr.mxu0 0.0
  %142 = vmatpush1.msra.mxu0 0.0
  %143 = vmatprep.subr.mxu0 0.0
  %144 = vmatpush1.msra.mxu0 0.0
  %145 = vmatprep.subr.mxu0 0.0
  %146 = vmatpush1.msra.mxu0 0.0
  %147 = vmatprep.subr.mxu0 0.0
  %148 = vmatpush1.msra.mxu0 0.0
  %149 = vmatprep.subr.mxu0 0.0
  %150 = vmatpush1.msra.mxu0 0.0
  %151 = vmatprep.mubr.f32.mxu0 0.0
  %152 = vmatmul.mubr.f32.gmra.mrb[0].mxu0 %v64
  %v153 = vpop.f32.mrb[0].mxu0
  %v154 = vadd.f32 %v55, %v153
  %v155 = vpop.f32.mrb[0].mxu0
  %v156 = vadd.f32 %v59, %v155
  %157 = vmatprep.mubr.f32.mxu0 0.0
  %158 = vmatmul.mubr.f32.gmra.mrb[0].mxu0 %v67
  %v159 = vpop.f32.mrb[0].mxu0
  %v160 = vadd.f32 %v55, %v159
  %v161 = vpop.f32.mrb[0].mxu0
  %v162 = vadd.f32 %v59, %v161
  %163 = vmatprep.mubr.f32.mxu0 0.0
  %164 = vmatmul.mubr.f32.gmra.mrb[0].mxu0 %v70
  %v165 = vpop.f32.mrb[0].mxu0
  %v166 = vadd.f32 %v55, %v165
  %v167 = vpop.f32.mrb[0].mxu0
  %v168 = vadd.f32 %v59, %v167
  %169 = vmatprep.mubr.f32.mxu0 0.0
  %170 = vmatmul.mubr.f32.gmra.mrb[0].mxu0 %v73
  %v171 = vpop.f32.mrb[0].mxu0
  %v172 = vadd.f32 %v55, %v171
  %v173 = vpop.f32.mrb[0].mxu0
  %v174 = vadd.f32 %v59, %v173
  %175 = vmatprep.mubr.f32.mxu0 0.0
  %176 = vmatmul.mubr.f32.gmra.mrb[0].mxu0 %v76
  %v177 = vpop.f32.mrb[0].mxu0
  %v178 = vadd.f32 %v55, %v177
  %v179 = vpop.f32.mrb[0].mxu0
  %v180 = vadd.f32 %v59, %v179
  %181 = vmatprep.mubr.f32.mxu0 0.0
  %182 = vmatmul.mubr.f32.gmra.mrb[0].mxu0 %v79
  %v183 = vpop.f32.mrb[0].mxu0
  %v184 = vadd.f32 %v55, %v183
  %v185 = vpop.f32.mrb[0].mxu0
  %v186 = vadd.f32 %v59, %v185
  %187 = vmatprep.mubr.f32.mxu0 0.0
  %188 = vmatmul.mubr.f32.gmra.mrb[0].mxu0 %v82
  %v189 = vpop.f32.mrb[0].mxu0
  %v190 = vadd.f32 %v55, %v189
  %v191 = vpop.f32.mrb[0].mxu0
  %v192 = vadd.f32 %v59, %v191
  %193 = vmatprep.mubr.f32.mxu0 0.0
  %194 = vmatmul.mubr.f32.gmra.mrb[0].mxu0 %v85
  %v195 = vpop.f32.mrb[0].mxu0
  %v196 = vadd.f32 %v55, %v195
  %v197 = vpop.f32.mrb[0].mxu0
  %v198 = vadd.f32 %v59, %v197
  %199 = vdwg.mxu0
  %200 = vst [vmem:[#allocation2] sm:$0xff] %v154
  %201 = vst [vmem:[#allocation2 + $0x8] sm:$0xff] %v156
  %202 = vst [vmem:[#allocation2 + $0x10] sm:$0xff] %v160
  %203 = vst [vmem:[#allocation2 + $0x18] sm:$0xff] %v162
  %204 = vst [vmem:[#allocation2 + $0x20] sm:$0xff] %v166
  %205 = vst [vmem:[#allocation2 + $0x28] sm:$0xff] %v168
  %206 = vst [vmem:[#allocation2 + $0x30] sm:$0xff] %v172
  %207 = vst [vmem:[#allocation2 + $0x38] sm:$0xff] %v174
  %208 = vst [vmem:[#allocation2 + $0x40] sm:$0xff] %v178
  %209 = vst [vmem:[#allocation2 + $0x48] sm:$0xff] %v180
  %210 = vst [vmem:[#allocation2 + $0x50] sm:$0xff] %v184
  %211 = vst [vmem:[#allocation2 + $0x58] sm:$0xff] %v186
  %212 = vst [vmem:[#allocation2 + $0x60] sm:$0xff] %v190
  %213 = vst [vmem:[#allocation2 + $0x68] sm:$0xff] %v192
  %214 = vst [vmem:[#allocation2 + $0x70] sm:$0xff] %v196
  %215 = vst [vmem:[#allocation2 + $0x78] sm:$0xff] %v198
  %v216 = vld [vmem:[%s2] sm:$0xff]
  %v217 = vld [vmem:[%s2 + $0x8] sm:$0xff]
  %v218 = vld [vmem:[%s2 + $0x10] sm:$0xff]
  %v219 = vld [vmem:[%s2 + $0x18] sm:$0xff]
  %v220 = vld [vmem:[%s2 + $0x20] sm:$0xff]
  %v221 = vld [vmem:[%s2 + $0x28] sm:$0xff]
  %v222 = vld [vmem:[%s2 + $0x30] sm:$0xff]
  %v223 = vld [vmem:[%s2 + $0x38] sm:$0xff]
  %v224 = vld [vmem:[%s2 + $0x40] sm:$0xff]
  %v225 = vld [vmem:[%s2 + $0x48] sm:$0xff]
  %v226 = vld [vmem:[%s2 + $0x50] sm:$0xff]
  %v227 = vld [vmem:[%s2 + $0x58] sm:$0xff]
  %v228 = vld [vmem:[%s2 + $0x60] sm:$0xff]
  %v229 = vld [vmem:[%s2 + $0x68] sm:$0xff]
  %v230 = vld [vmem:[%s2 + $0x70] sm:$0xff]
  %v231 = vld [vmem:[%s2 + $0x78] sm:$0xff]
  %vm232 = vcmask 523264
  %v234 = vsel %vm232, 0.0, 0
  %236 = vmatprep.subr.mxu0 %v217
  %237 = vmatpush1.msra.mxu0 %v216
  %238 = vmatprep.subr.mxu0 %v219
  %239 = vmatpush1.msra.mxu0 %v218
  %240 = vmatprep.subr.mxu0 %v221
  %241 = vmatpush1.msra.mxu0 %v220
  %242 = vmatprep.subr.mxu0 %v223
  %243 = vmatpush1.msra.mxu0 %v222
  %244 = vmatprep.subr.mxu0 %v225
  %245 = vmatpush1.msra.mxu0 %v224
  %246 = vmatprep.subr.mxu0 %v227
  %247 = vmatpush1.msra.mxu0 %v226
  %248 = vmatprep.subr.mxu0 %v229
  %249 = vmatpush1.msra.mxu0 %v228
  %250 = vmatprep.subr.mxu0 %v231
  %251 = vmatpush1.msra.mxu0 %v230
  %252 = vmatprep.subr.mxu0 0.0
  %253 = vmatpush1.msra.mxu0 0.0
  %254 = vmatprep.subr.mxu0 0.0
  %255 = vmatpush1.msra.mxu0 0.0
  %256 = vmatprep.subr.mxu0 0.0
  %257 = vmatpush1.msra.mxu0 0.0
  %258 = vmatprep.subr.mxu0 0.0
  %259 = vmatpush1.msra.mxu0 0.0
  %260 = vmatprep.subr.mxu0 0.0
  %261 = vmatpush1.msra.mxu0 0.0
  %262 = vmatprep.subr.mxu0 0.0
  %263 = vmatpush1.msra.mxu0 0.0
  %264 = vmatprep.subr.mxu0 0.0
  %265 = vmatpush1.msra.mxu0 0.0
  %266 = vmatprep.subr.mxu0 0.0
  %267 = vmatpush1.msra.mxu0 0.0
  %268 = vmatprep.subr.mxu0 0.0
  %269 = vmatpush1.msra.mxu0 0.0
  %270 = vmatprep.subr.mxu0 0.0
  %271 = vmatpush1.msra.mxu0 0.0
  %272 = vmatprep.subr.mxu0 0.0
  %273 = vmatpush1.msra.mxu0 0.0
  %274 = vmatprep.subr.mxu0 0.0
  %275 = vmatpush1.msra.mxu0 0.0
  %276 = vmatprep.subr.mxu0 0.0
  %277 = vmatpush1.msra.mxu0 0.0
  %278 = vmatprep.subr.mxu0 0.0
  %279 = vmatpush1.msra.mxu0 0.0
  %280 = vmatprep.subr.mxu0 0.0
  %281 = vmatpush1.msra.mxu0 0.0
  %282 = vmatprep.subr.mxu0 0.0
  %283 = vmatpush1.msra.mxu0 0.0
  %284 = vmatprep.subr.mxu0 0.0
  %285 = vmatpush1.msra.mxu0 0.0
  %286 = vmatprep.subr.mxu0 0.0
  %287 = vmatpush1.msra.mxu0 0.0
  %288 = vmatprep.subr.mxu0 0.0
  %289 = vmatpush1.msra.mxu0 0.0
  %290 = vmatprep.subr.mxu0 0.0
  %291 = vmatpush1.msra.mxu0 0.0
  %292 = vmatprep.subr.mxu0 0.0
  %293 = vmatpush1.msra.mxu0 0.0
  %294 = vmatprep.subr.mxu0 0.0
  %295 = vmatpush1.msra.mxu0 0.0
  %296 = vmatprep.subr.mxu0 0.0
  %297 = vmatpush1.msra.mxu0 0.0
  %298 = vmatprep.subr.mxu0 0.0
  %299 = vmatpush1.msra.mxu0 0.0
  %300 = vmatprep.mubr.f32.mxu0 0.0
  %301 = vmatmul.mubr.f32.gmra.mrb[0].mxu0 %v234
  %v302 = vpop.f32.mrb[0].mxu0
  %v303 = vadd.f32 0.0, %v302
  %v304 = vpop.f32.mrb[0].mxu0
  %v305 = vadd.f32 0.0, %v304
  %306 = vdwg.mxu0
  %v307 = vld [vmem:[#allocation2] sm:$0xff]
  %s308 = scalar_lea.vmem [#allocation2], 112
  %v309 = vld [vmem:[%s308 + $0x8] sm:$0xff]
  %v310 = vadd.f32 %v303, %v307
  %v311 = vadd.f32 %v305, %v309
  %v312 = vxor.u32 %v310, 2147483648
  %v313 = vmul.f32 %v312, 1.442695
  %v314 = vpow.pop %v313
  %v315 = vadd.f32 %v314, 1.0
  %v316 = vrcp.pop %v315
  %v317 = vmul.f32 1.0, %v316
  %v318 = vtanh.pop %v310
  %v319 = vxor.u32 %v311, 2147483648
  %v320 = vmul.f32 %v319, 1.442695
  %v321 = vpow.pop %v320
  %v322 = vadd.f32 %v321, 1.0
  %v323 = vrcp.pop %v322
  %v324 = vmul.f32 1.0, %v323
  %v325 = vtanh.pop %v311
  %v326 = vmul.f32 %v317, 0.0
  %328 = vrot.lane.b32.xlu0 %v318, 64
  %v329 = vpop.permute.xlu0 %328
  %v331 = vmul.f32 %v317, %v329
  %333 = vrot.lane.b32.xlu0 %v331, 32
  %v334 = vpop.permute.xlu0 %333
  %v336 = vadd.f32 %v326, %v334
  %v337 = vmul.f32 %v324, 0.0
  %339 = vrot.lane.b32.xlu0 %v325, 64
  %v340 = vpop.permute.xlu0 %339
  %v342 = vmul.f32 %v324, %v340
  %344 = vrot.lane.b32.xlu0 %v342, 32
  %v345 = vpop.permute.xlu0 %344
  %v347 = vadd.f32 %v337, %v345
  %v348 = vtanh.pop %v336
  %350 = vrot.lane.b32.xlu0 %v348, 64
  %v351 = vpop.permute.xlu0 %350
  %v353 = vmul.f32 %v317, %v351
  %v354 = vtanh.pop %v347
  %356 = vrot.lane.b32.xlu0 %v354, 64
  %v357 = vpop.permute.xlu0 %356
  %v359 = vmul.f32 %v324, %v357
  %361 = vrot.lane.b32.xlu0 %v353, 32
  %v362 = vpop.permute.xlu0 %361
  %364 = vst.msk [vmem:[#allocation3] sm:$0xff] %vm62, %v362
  %366 = vrot.lane.b32.xlu0 %v359, 32
  %v367 = vpop.permute.xlu0 %366
  %s369 = scalar_lea.vmem [#allocation4], 56
  %370 = vst.msk [vmem:[%s369] sm:$0xff] %vm62, %v367
  %371 = vrot.lane.b32.xlu0 %v359, 64
  %v372 = vpop.permute.xlu0 %371
  %v374 = vsel %vm62, %v362, %v372
  %376 = vrot.lane.b32.xlu0 %v336, 96
  %v377 = vpop.permute.xlu0 %376
  %v379 = vsel %vm62, %v377, %v347
  %v380 = vld [vmem:[%s2] sm:$0xff]
  %v381 = vld [vmem:[%s2 + $0x8] sm:$0xff]
  %v382 = vld [vmem:[%s2 + $0x10] sm:$0xff]
  %v383 = vld [vmem:[%s2 + $0x18] sm:$0xff]
  %v384 = vld [vmem:[%s2 + $0x20] sm:$0xff]
  %v385 = vld [vmem:[%s2 + $0x28] sm:$0xff]
  %v386 = vld [vmem:[%s2 + $0x30] sm:$0xff]
  %v387 = vld [vmem:[%s2 + $0x38] sm:$0xff]
  %v388 = vld [vmem:[%s2 + $0x40] sm:$0xff]
  %v389 = vld [vmem:[%s2 + $0x48] sm:$0xff]
  %v390 = vld [vmem:[%s2 + $0x50] sm:$0xff]
  %v391 = vld [vmem:[%s2 + $0x58] sm:$0xff]
  %v392 = vld [vmem:[%s2 + $0x60] sm:$0xff]
  %v393 = vld [vmem:[%s2 + $0x68] sm:$0xff]
  %v394 = vld [vmem:[%s2 + $0x70] sm:$0xff]
  %v395 = vld [vmem:[%s2 + $0x78] sm:$0xff]
  %v397 = vsel %vm232, %v374, 0
  %399 = vmatprep.subr.mxu0 %v381
  %400 = vmatpush1.msra.mxu0 %v380
  %401 = vmatprep.subr.mxu0 %v383
  %402 = vmatpush1.msra.mxu0 %v382
  %403 = vmatprep.subr.mxu0 %v385
  %404 = vmatpush1.msra.mxu0 %v384
  %405 = vmatprep.subr.mxu0 %v387
  %406 = vmatpush1.msra.mxu0 %v386
  %407 = vmatprep.subr.mxu0 %v389
  %408 = vmatpush1.msra.mxu0 %v388
  %409 = vmatprep.subr.mxu0 %v391
  %410 = vmatpush1.msra.mxu0 %v390
  %411 = vmatprep.subr.mxu0 %v393
  %412 = vmatpush1.msra.mxu0 %v392
  %413 = vmatprep.subr.mxu0 %v395
  %414 = vmatpush1.msra.mxu0 %v394
  %415 = vmatprep.subr.mxu0 0.0
  %416 = vmatpush1.msra.mxu0 0.0
  %417 = vmatprep.subr.mxu0 0.0
  %418 = vmatpush1.msra.mxu0 0.0
  %419 = vmatprep.subr.mxu0 0.0
  %420 = vmatpush1.msra.mxu0 0.0
  %421 = vmatprep.subr.mxu0 0.0
  %422 = vmatpush1.msra.mxu0 0.0
  %423 = vmatprep.subr.mxu0 0.0
  %424 = vmatpush1.msra.mxu0 0.0
  %425 = vmatprep.subr.mxu0 0.0
  %426 = vmatpush1.msra.mxu0 0.0
  %427 = vmatprep.subr.mxu0 0.0
  %428 = vmatpush1.msra.mxu0 0.0
  %429 = vmatprep.subr.mxu0 0.0
  %430 = vmatpush1.msra.mxu0 0.0
  %431 = vmatprep.subr.mxu0 0.0
  %432 = vmatpush1.msra.mxu0 0.0
  %433 = vmatprep.subr.mxu0 0.0
  %434 = vmatpush1.msra.mxu0 0.0
  %435 = vmatprep.subr.mxu0 0.0
  %436 = vmatpush1.msra.mxu0 0.0
  %437 = vmatprep.subr.mxu0 0.0
  %438 = vmatpush1.msra.mxu0 0.0
  %439 = vmatprep.subr.mxu0 0.0
  %440 = vmatpush1.msra.mxu0 0.0
  %441 = vmatprep.subr.mxu0 0.0
  %442 = vmatpush1.msra.mxu0 0.0
  %443 = vmatprep.subr.mxu0 0.0
  %444 = vmatpush1.msra.mxu0 0.0
  %445 = vmatprep.subr.mxu0 0.0
  %446 = vmatpush1.msra.mxu0 0.0
  %447 = vmatprep.subr.mxu0 0.0
  %448 = vmatpush1.msra.mxu0 0.0
  %449 = vmatprep.subr.mxu0 0.0
  %450 = vmatpush1.msra.mxu0 0.0
  %451 = vmatprep.subr.mxu0 0.0
  %452 = vmatpush1.msra.mxu0 0.0
  %453 = vmatprep.subr.mxu0 0.0
  %454 = vmatpush1.msra.mxu0 0.0
  %455 = vmatprep.subr.mxu0 0.0
  %456 = vmatpush1.msra.mxu0 0.0
  %457 = vmatprep.subr.mxu0 0.0
  %458 = vmatpush1.msra.mxu0 0.0
  %459 = vmatprep.subr.mxu0 0.0
  %460 = vmatpush1.msra.mxu0 0.0
  %461 = vmatprep.subr.mxu0 0.0
  %462 = vmatpush1.msra.mxu0 0.0
  %463 = vmatprep.mubr.f32.mxu0 0.0
  %464 = vmatmul.mubr.f32.gmra.mrb[0].mxu0 %v397
  %v465 = vpop.f32.mrb[0].mxu0
  %v466 = vadd.f32 0.0, %v465
  %v467 = vpop.f32.mrb[0].mxu0
  %v468 = vadd.f32 0.0, %v467
  %469 = vdwg.mxu0
  %s470 = scalar_lea.vmem [#allocation2], 16
  %v471 = vld [vmem:[%s470] sm:$0xff]
  %s472 = scalar_lea.vmem [#allocation2], 96
  %v473 = vld [vmem:[%s472 + $0x8] sm:$0xff]
  %v474 = vadd.f32 %v466, %v471
  %v475 = vadd.f32 %v468, %v473
  %v476 = vxor.u32 %v474, 2147483648
  %v477 = vmul.f32 %v476, 1.442695
  %v478 = vpow.pop %v477
  %v479 = vadd.f32 %v478, 1.0
  %v480 = vrcp.pop %v479
  %v481 = vmul.f32 1.0, %v480
  %v482 = vtanh.pop %v474
  %v483 = vxor.u32 %v475, 2147483648
  %v484 = vmul.f32 %v483, 1.442695
  %v485 = vpow.pop %v484
  %v486 = vadd.f32 %v485, 1.0
  %v487 = vrcp.pop %v486
  %v488 = vmul.f32 1.0, %v487
  %v489 = vtanh.pop %v475
  %491 = vrot.lane.b32.xlu0 %v379, 32
  %v492 = vpop.permute.xlu0 %491
  %v494 = vmul.f32 %v481, %v492
  %496 = vrot.lane.b32.xlu0 %v482, 64
  %v497 = vpop.permute.xlu0 %496
  %v499 = vmul.f32 %v481, %v497
  %501 = vrot.lane.b32.xlu0 %v499, 32
  %v502 = vpop.permute.xlu0 %501
  %v504 = vadd.f32 %v494, %v502
  %v505 = vmul.f32 %v488, %v379
  %507 = vrot.lane.b32.xlu0 %v489, 64
  %v508 = vpop.permute.xlu0 %507
  %v510 = vmul.f32 %v488, %v508
  %512 = vrot.lane.b32.xlu0 %v510, 32
  %v513 = vpop.permute.xlu0 %512
  %v515 = vadd.f32 %v505, %v513
  %v516 = vtanh.pop %v504
  %518 = vrot.lane.b32.xlu0 %v516, 64
  %v519 = vpop.permute.xlu0 %518
  %v521 = vmul.f32 %v481, %v519
  %v522 = vtanh.pop %v515
  %524 = vrot.lane.b32.xlu0 %v522, 64
  %v525 = vpop.permute.xlu0 %524
  %v527 = vmul.f32 %v488, %v525
  %529 = vrot.lane.b32.xlu0 %v521, 32
  %v530 = vpop.permute.xlu0 %529
  %s532 = scalar_lea.vmem [#allocation3], 8
  %533 = vst.msk [vmem:[%s532] sm:$0xff] %vm62, %v530
  %535 = vrot.lane.b32.xlu0 %v527, 32
  %v536 = vpop.permute.xlu0 %535
  %s538 = scalar_lea.vmem [#allocation4], 48
  %539 = vst.msk [vmem:[%s538] sm:$0xff] %vm62, %v536
  %540 = vrot.lane.b32.xlu0 %v527, 64
  %v541 = vpop.permute.xlu0 %540
  %v543 = vsel %vm62, %v530, %v541
  %545 = vrot.lane.b32.xlu0 %v504, 96
  %v546 = vpop.permute.xlu0 %545
  %v548 = vsel %vm62, %v546, %v515
  %v549 = vld [vmem:[%s2] sm:$0xff]
  %v550 = vld [vmem:[%s2 + $0x8] sm:$0xff]
  %v551 = vld [vmem:[%s2 + $0x10] sm:$0xff]
  %v552 = vld [vmem:[%s2 + $0x18] sm:$0xff]
  %v553 = vld [vmem:[%s2 + $0x20] sm:$0xff]
  %v554 = vld [vmem:[%s2 + $0x28] sm:$0xff]
  %v555 = vld [vmem:[%s2 + $0x30] sm:$0xff]
  %v556 = vld [vmem:[%s2 + $0x38] sm:$0xff]
  %v557 = vld [vmem:[%s2 + $0x40] sm:$0xff]
  %v558 = vld [vmem:[%s2 + $0x48] sm:$0xff]
  %v559 = vld [vmem:[%s2 + $0x50] sm:$0xff]
  %v560 = vld [vmem:[%s2 + $0x58] sm:$0xff]
  %v561 = vld [vmem:[%s2 + $0x60] sm:$0xff]
  %v562 = vld [vmem:[%s2 + $0x68] sm:$0xff]
  %v563 = vld [vmem:[%s2 + $0x70] sm:$0xff]
  %v564 = vld [vmem:[%s2 + $0x78] sm:$0xff]
  %v566 = vsel %vm232, %v543, 0
  %568 = vmatprep.subr.mxu0 %v550
  %569 = vmatpush1.msra.mxu0 %v549
  %570 = vmatprep.subr.mxu0 %v552
  %571 = vmatpush1.msra.mxu0 %v551
  %572 = vmatprep.subr.mxu0 %v554
  %573 = vmatpush1.msra.mxu0 %v553
  %574 = vmatprep.subr.mxu0 %v556
  %575 = vmatpush1.msra.mxu0 %v555
  %576 = vmatprep.subr.mxu0 %v558
  %577 = vmatpush1.msra.mxu0 %v557
  %578 = vmatprep.subr.mxu0 %v560
  %579 = vmatpush1.msra.mxu0 %v559
  %580 = vmatprep.subr.mxu0 %v562
  %581 = vmatpush1.msra.mxu0 %v561
  %582 = vmatprep.subr.mxu0 %v564
  %583 = vmatpush1.msra.mxu0 %v563
  %584 = vmatprep.subr.mxu0 0.0
  %585 = vmatpush1.msra.mxu0 0.0
  %586 = vmatprep.subr.mxu0 0.0
  %587 = vmatpush1.msra.mxu0 0.0
  %588 = vmatprep.subr.mxu0 0.0
  %589 = vmatpush1.msra.mxu0 0.0
  %590 = vmatprep.subr.mxu0 0.0
  %591 = vmatpush1.msra.mxu0 0.0
  %592 = vmatprep.subr.mxu0 0.0
  %593 = vmatpush1.msra.mxu0 0.0
  %594 = vmatprep.subr.mxu0 0.0
  %595 = vmatpush1.msra.mxu0 0.0
  %596 = vmatprep.subr.mxu0 0.0
  %597 = vmatpush1.msra.mxu0 0.0
  %598 = vmatprep.subr.mxu0 0.0
  %599 = vmatpush1.msra.mxu0 0.0
  %600 = vmatprep.subr.mxu0 0.0
  %601 = vmatpush1.msra.mxu0 0.0
  %602 = vmatprep.subr.mxu0 0.0
  %603 = vmatpush1.msra.mxu0 0.0
  %604 = vmatprep.subr.mxu0 0.0
  %605 = vmatpush1.msra.mxu0 0.0
  %606 = vmatprep.subr.mxu0 0.0
  %607 = vmatpush1.msra.mxu0 0.0
  %608 = vmatprep.subr.mxu0 0.0
  %609 = vmatpush1.msra.mxu0 0.0
  %610 = vmatprep.subr.mxu0 0.0
  %611 = vmatpush1.msra.mxu0 0.0
  %612 = vmatprep.subr.mxu0 0.0
  %613 = vmatpush1.msra.mxu0 0.0
  %614 = vmatprep.subr.mxu0 0.0
  %615 = vmatpush1.msra.mxu0 0.0
  %616 = vmatprep.subr.mxu0 0.0
  %617 = vmatpush1.msra.mxu0 0.0
  %618 = vmatprep.subr.mxu0 0.0
  %619 = vmatpush1.msra.mxu0 0.0
  %620 = vmatprep.subr.mxu0 0.0
  %621 = vmatpush1.msra.mxu0 0.0
  %622 = vmatprep.subr.mxu0 0.0
  %623 = vmatpush1.msra.mxu0 0.0
  %624 = vmatprep.subr.mxu0 0.0
  %625 = vmatpush1.msra.mxu0 0.0
  %626 = vmatprep.subr.mxu0 0.0
  %627 = vmatpush1.msra.mxu0 0.0
  %628 = vmatprep.subr.mxu0 0.0
  %629 = vmatpush1.msra.mxu0 0.0
  %630 = vmatprep.subr.mxu0 0.0
  %631 = vmatpush1.msra.mxu0 0.0
  %632 = vmatprep.mubr.f32.mxu0 0.0
  %633 = vmatmul.mubr.f32.gmra.mrb[0].mxu0 %v566
  %v634 = vpop.f32.mrb[0].mxu0
  %v635 = vadd.f32 0.0, %v634
  %v636 = vpop.f32.mrb[0].mxu0
  %v637 = vadd.f32 0.0, %v636
  %638 = vdwg.mxu0
  %s639 = scalar_lea.vmem [#allocation2], 32
  %v640 = vld [vmem:[%s639] sm:$0xff]
  %s641 = scalar_lea.vmem [#allocation2], 80
  %v642 = vld [vmem:[%s641 + $0x8] sm:$0xff]
  %v643 = vadd.f32 %v635, %v640
  %v644 = vadd.f32 %v637, %v642
  %v645 = vxor.u32 %v643, 2147483648
  %v646 = vmul.f32 %v645, 1.442695
  %v647 = vpow.pop %v646
  %v648 = vadd.f32 %v647, 1.0
  %v649 = vrcp.pop %v648
  %v650 = vmul.f32 1.0, %v649
  %v651 = vtanh.pop %v643
  %v652 = vxor.u32 %v644, 2147483648
  %v653 = vmul.f32 %v652, 1.442695
  %v654 = vpow.pop %v653
  %v655 = vadd.f32 %v654, 1.0
  %v656 = vrcp.pop %v655
  %v657 = vmul.f32 1.0, %v656
  %v658 = vtanh.pop %v644
  %660 = vrot.lane.b32.xlu0 %v548, 32
  %v661 = vpop.permute.xlu0 %660
  %v663 = vmul.f32 %v650, %v661
  %665 = vrot.lane.b32.xlu0 %v651, 64
  %v666 = vpop.permute.xlu0 %665
  %v668 = vmul.f32 %v650, %v666
  %670 = vrot.lane.b32.xlu0 %v668, 32
  %v671 = vpop.permute.xlu0 %670
  %v673 = vadd.f32 %v663, %v671
  %v674 = vmul.f32 %v657, %v548
  %676 = vrot.lane.b32.xlu0 %v658, 64
  %v677 = vpop.permute.xlu0 %676
  %v679 = vmul.f32 %v657, %v677
  %681 = vrot.lane.b32.xlu0 %v679, 32
  %v682 = vpop.permute.xlu0 %681
  %v684 = vadd.f32 %v674, %v682
  %v685 = vtanh.pop %v673
  %687 = vrot.lane.b32.xlu0 %v685, 64
  %v688 = vpop.permute.xlu0 %687
  %v690 = vmul.f32 %v650, %v688
  %v691 = vtanh.pop %v684
  %693 = vrot.lane.b32.xlu0 %v691, 64
  %v694 = vpop.permute.xlu0 %693
  %v696 = vmul.f32 %v657, %v694
  %698 = vrot.lane.b32.xlu0 %v690, 32
  %v699 = vpop.permute.xlu0 %698
  %s701 = scalar_lea.vmem [#allocation3], 16
  %702 = vst.msk [vmem:[%s701] sm:$0xff] %vm62, %v699
  %704 = vrot.lane.b32.xlu0 %v696, 32
  %v705 = vpop.permute.xlu0 %704
  %s707 = scalar_lea.vmem [#allocation4], 40
  %708 = vst.msk [vmem:[%s707] sm:$0xff] %vm62, %v705
  %709 = vrot.lane.b32.xlu0 %v696, 64
  %v710 = vpop.permute.xlu0 %709
  %v712 = vsel %vm62, %v699, %v710
  %714 = vrot.lane.b32.xlu0 %v673, 96
  %v715 = vpop.permute.xlu0 %714
  %v717 = vsel %vm62, %v715, %v684
  %v718 = vld [vmem:[%s2] sm:$0xff]
  %v719 = vld [vmem:[%s2 + $0x8] sm:$0xff]
  %v720 = vld [vmem:[%s2 + $0x10] sm:$0xff]
  %v721 = vld [vmem:[%s2 + $0x18] sm:$0xff]
  %v722 = vld [vmem:[%s2 + $0x20] sm:$0xff]
  %v723 = vld [vmem:[%s2 + $0x28] sm:$0xff]
  %v724 = vld [vmem:[%s2 + $0x30] sm:$0xff]
  %v725 = vld [vmem:[%s2 + $0x38] sm:$0xff]
  %v726 = vld [vmem:[%s2 + $0x40] sm:$0xff]
  %v727 = vld [vmem:[%s2 + $0x48] sm:$0xff]
  %v728 = vld [vmem:[%s2 + $0x50] sm:$0xff]
  %v729 = vld [vmem:[%s2 + $0x58] sm:$0xff]
  %v730 = vld [vmem:[%s2 + $0x60] sm:$0xff]
  %v731 = vld [vmem:[%s2 + $0x68] sm:$0xff]
  %v732 = vld [vmem:[%s2 + $0x70] sm:$0xff]
  %v733 = vld [vmem:[%s2 + $0x78] sm:$0xff]
  %v735 = vsel %vm232, %v712, 0
  %737 = vmatprep.subr.mxu0 %v719
  %738 = vmatpush1.msra.mxu0 %v718
  %739 = vmatprep.subr.mxu0 %v721
  %740 = vmatpush1.msra.mxu0 %v720
  %741 = vmatprep.subr.mxu0 %v723
  %742 = vmatpush1.msra.mxu0 %v722
  %743 = vmatprep.subr.mxu0 %v725
  %744 = vmatpush1.msra.mxu0 %v724
  %745 = vmatprep.subr.mxu0 %v727
  %746 = vmatpush1.msra.mxu0 %v726
  %747 = vmatprep.subr.mxu0 %v729
  %748 = vmatpush1.msra.mxu0 %v728
  %749 = vmatprep.subr.mxu0 %v731
  %750 = vmatpush1.msra.mxu0 %v730
  %751 = vmatprep.subr.mxu0 %v733
  %752 = vmatpush1.msra.mxu0 %v732
  %753 = vmatprep.subr.mxu0 0.0
  %754 = vmatpush1.msra.mxu0 0.0
  %755 = vmatprep.subr.mxu0 0.0
  %756 = vmatpush1.msra.mxu0 0.0
  %757 = vmatprep.subr.mxu0 0.0
  %758 = vmatpush1.msra.mxu0 0.0
  %759 = vmatprep.subr.mxu0 0.0
  %760 = vmatpush1.msra.mxu0 0.0
  %761 = vmatprep.subr.mxu0 0.0
  %762 = vmatpush1.msra.mxu0 0.0
  %763 = vmatprep.subr.mxu0 0.0
  %764 = vmatpush1.msra.mxu0 0.0
  %765 = vmatprep.subr.mxu0 0.0
  %766 = vmatpush1.msra.mxu0 0.0
  %767 = vmatprep.subr.mxu0 0.0
  %768 = vmatpush1.msra.mxu0 0.0
  %769 = vmatprep.subr.mxu0 0.0
  %770 = vmatpush1.msra.mxu0 0.0
  %771 = vmatprep.subr.mxu0 0.0
  %772 = vmatpush1.msra.mxu0 0.0
  %773 = vmatprep.subr.mxu0 0.0
  %774 = vmatpush1.msra.mxu0 0.0
  %775 = vmatprep.subr.mxu0 0.0
  %776 = vmatpush1.msra.mxu0 0.0
  %777 = vmatprep.subr.mxu0 0.0
  %778 = vmatpush1.msra.mxu0 0.0
  %779 = vmatprep.subr.mxu0 0.0
  %780 = vmatpush1.msra.mxu0 0.0
  %781 = vmatprep.subr.mxu0 0.0
  %782 = vmatpush1.msra.mxu0 0.0
  %783 = vmatprep.subr.mxu0 0.0
  %784 = vmatpush1.msra.mxu0 0.0
  %785 = vmatprep.subr.mxu0 0.0
  %786 = vmatpush1.msra.mxu0 0.0
  %787 = vmatprep.subr.mxu0 0.0
  %788 = vmatpush1.msra.mxu0 0.0
  %789 = vmatprep.subr.mxu0 0.0
  %790 = vmatpush1.msra.mxu0 0.0
  %791 = vmatprep.subr.mxu0 0.0
  %792 = vmatpush1.msra.mxu0 0.0
  %793 = vmatprep.subr.mxu0 0.0
  %794 = vmatpush1.msra.mxu0 0.0
  %795 = vmatprep.subr.mxu0 0.0
  %796 = vmatpush1.msra.mxu0 0.0
  %797 = vmatprep.subr.mxu0 0.0
  %798 = vmatpush1.msra.mxu0 0.0
  %799 = vmatprep.subr.mxu0 0.0
  %800 = vmatpush1.msra.mxu0 0.0
  %801 = vmatprep.mubr.f32.mxu0 0.0
  %802 = vmatmul.mubr.f32.gmra.mrb[0].mxu0 %v735
  %v803 = vpop.f32.mrb[0].mxu0
  %v804 = vadd.f32 0.0, %v803
  %v805 = vpop.f32.mrb[0].mxu0
  %v806 = vadd.f32 0.0, %v805
  %807 = vdwg.mxu0
  %s808 = scalar_lea.vmem [#allocation2], 48
  %v809 = vld [vmem:[%s808] sm:$0xff]
  %s810 = scalar_lea.vmem [#allocation2], 64
  %v811 = vld [vmem:[%s810 + $0x8] sm:$0xff]
  %v812 = vadd.f32 %v804, %v809
  %v813 = vadd.f32 %v806, %v811
  %v814 = vxor.u32 %v812, 2147483648
  %v815 = vmul.f32 %v814, 1.442695
  %v816 = vpow.pop %v815
  %v817 = vadd.f32 %v816, 1.0
  %v818 = vrcp.pop %v817
  %v819 = vmul.f32 1.0, %v818
  %v820 = vtanh.pop %v812
  %v821 = vxor.u32 %v813, 2147483648
  %v822 = vmul.f32 %v821, 1.442695
  %v823 = vpow.pop %v822
  %v824 = vadd.f32 %v823, 1.0
  %v825 = vrcp.pop %v824
  %v826 = vmul.f32 1.0, %v825
  %v827 = vtanh.pop %v813
  %829 = vrot.lane.b32.xlu0 %v717, 32
  %v830 = vpop.permute.xlu0 %829
  %v832 = vmul.f32 %v819, %v830
  %834 = vrot.lane.b32.xlu0 %v820, 64
  %v835 = vpop.permute.xlu0 %834
  %v837 = vmul.f32 %v819, %v835
  %839 = vrot.lane.b32.xlu0 %v837, 32
  %v840 = vpop.permute.xlu0 %839
  %v842 = vadd.f32 %v832, %v840
  %v843 = vmul.f32 %v826, %v717
  %845 = vrot.lane.b32.xlu0 %v827, 64
  %v846 = vpop.permute.xlu0 %845
  %v848 = vmul.f32 %v826, %v846
  %850 = vrot.lane.b32.xlu0 %v848, 32
  %v851 = vpop.permute.xlu0 %850
  %v853 = vadd.f32 %v843, %v851
  %v854 = vtanh.pop %v842
  %856 = vrot.lane.b32.xlu0 %v854, 64
  %v857 = vpop.permute.xlu0 %856
  %v859 = vmul.f32 %v819, %v857
  %v860 = vtanh.pop %v853
  %862 = vrot.lane.b32.xlu0 %v860, 64
  %v863 = vpop.permute.xlu0 %862
  %v865 = vmul.f32 %v826, %v863
  %867 = vrot.lane.b32.xlu0 %v859, 32
  %v868 = vpop.permute.xlu0 %867
  %s870 = scalar_lea.vmem [#allocation3], 24
  %871 = vst.msk [vmem:[%s870] sm:$0xff] %vm62, %v868
  %873 = vrot.lane.b32.xlu0 %v865, 32
  %v874 = vpop.permute.xlu0 %873
  %s876 = scalar_lea.vmem [#allocation4], 32
  %877 = vst.msk [vmem:[%s876] sm:$0xff] %vm62, %v874
  %878 = vrot.lane.b32.xlu0 %v865, 64
  %v879 = vpop.permute.xlu0 %878
  %v881 = vsel %vm62, %v868, %v879
  %883 = vrot.lane.b32.xlu0 %v842, 96
  %v884 = vpop.permute.xlu0 %883
  %v886 = vsel %vm62, %v884, %v853
  %v887 = vld [vmem:[%s2] sm:$0xff]
  %v888 = vld [vmem:[%s2 + $0x8] sm:$0xff]
  %v889 = vld [vmem:[%s2 + $0x10] sm:$0xff]
  %v890 = vld [vmem:[%s2 + $0x18] sm:$0xff]
  %v891 = vld [vmem:[%s2 + $0x20] sm:$0xff]
  %v892 = vld [vmem:[%s2 + $0x28] sm:$0xff]
  %v893 = vld [vmem:[%s2 + $0x30] sm:$0xff]
  %v894 = vld [vmem:[%s2 + $0x38] sm:$0xff]
  %v895 = vld [vmem:[%s2 + $0x40] sm:$0xff]
  %v896 = vld [vmem:[%s2 + $0x48] sm:$0xff]
  %v897 = vld [vmem:[%s2 + $0x50] sm:$0xff]
  %v898 = vld [vmem:[%s2 + $0x58] sm:$0xff]
  %v899 = vld [vmem:[%s2 + $0x60] sm:$0xff]
  %v900 = vld [vmem:[%s2 + $0x68] sm:$0xff]
  %v901 = vld [vmem:[%s2 + $0x70] sm:$0xff]
  %v902 = vld [vmem:[%s2 + $0x78] sm:$0xff]
  %v904 = vsel %vm232, %v881, 0
  %906 = vmatprep.subr.mxu0 %v888
  %907 = vmatpush1.msra.mxu0 %v887
  %908 = vmatprep.subr.mxu0 %v890
  %909 = vmatpush1.msra.mxu0 %v889
  %910 = vmatprep.subr.mxu0 %v892
  %911 = vmatpush1.msra.mxu0 %v891
  %912 = vmatprep.subr.mxu0 %v894
  %913 = vmatpush1.msra.mxu0 %v893
  %914 = vmatprep.subr.mxu0 %v896
  %915 = vmatpush1.msra.mxu0 %v895
  %916 = vmatprep.subr.mxu0 %v898
  %917 = vmatpush1.msra.mxu0 %v897
  %918 = vmatprep.subr.mxu0 %v900
  %919 = vmatpush1.msra.mxu0 %v899
  %920 = vmatprep.subr.mxu0 %v902
  %921 = vmatpush1.msra.mxu0 %v901
  %922 = vmatprep.subr.mxu0 0.0
  %923 = vmatpush1.msra.mxu0 0.0
  %924 = vmatprep.subr.mxu0 0.0
  %925 = vmatpush1.msra.mxu0 0.0
  %926 = vmatprep.subr.mxu0 0.0
  %927 = vmatpush1.msra.mxu0 0.0
  %928 = vmatprep.subr.mxu0 0.0
  %929 = vmatpush1.msra.mxu0 0.0
  %930 = vmatprep.subr.mxu0 0.0
  %931 = vmatpush1.msra.mxu0 0.0
  %932 = vmatprep.subr.mxu0 0.0
  %933 = vmatpush1.msra.mxu0 0.0
  %934 = vmatprep.subr.mxu0 0.0
  %935 = vmatpush1.msra.mxu0 0.0
  %936 = vmatprep.subr.mxu0 0.0
  %937 = vmatpush1.msra.mxu0 0.0
  %938 = vmatprep.subr.mxu0 0.0
  %939 = vmatpush1.msra.mxu0 0.0
  %940 = vmatprep.subr.mxu0 0.0
  %941 = vmatpush1.msra.mxu0 0.0
  %942 = vmatprep.subr.mxu0 0.0
  %943 = vmatpush1.msra.mxu0 0.0
  %944 = vmatprep.subr.mxu0 0.0
  %945 = vmatpush1.msra.mxu0 0.0
  %946 = vmatprep.subr.mxu0 0.0
  %947 = vmatpush1.msra.mxu0 0.0
  %948 = vmatprep.subr.mxu0 0.0
  %949 = vmatpush1.msra.mxu0 0.0
  %950 = vmatprep.subr.mxu0 0.0
  %951 = vmatpush1.msra.mxu0 0.0
  %952 = vmatprep.subr.mxu0 0.0
  %953 = vmatpush1.msra.mxu0 0.0
  %954 = vmatprep.subr.mxu0 0.0
  %955 = vmatpush1.msra.mxu0 0.0
  %956 = vmatprep.subr.mxu0 0.0
  %957 = vmatpush1.msra.mxu0 0.0
  %958 = vmatprep.subr.mxu0 0.0
  %959 = vmatpush1.msra.mxu0 0.0
  %960 = vmatprep.subr.mxu0 0.0
  %961 = vmatpush1.msra.mxu0 0.0
  %962 = vmatprep.subr.mxu0 0.0
  %963 = vmatpush1.msra.mxu0 0.0
  %964 = vmatprep.subr.mxu0 0.0
  %965 = vmatpush1.msra.mxu0 0.0
  %966 = vmatprep.subr.mxu0 0.0
  %967 = vmatpush1.msra.mxu0 0.0
  %968 = vmatprep.subr.mxu0 0.0
  %969 = vmatpush1.msra.mxu0 0.0
  %970 = vmatprep.mubr.f32.mxu0 0.0
  %971 = vmatmul.mubr.f32.gmra.mrb[0].mxu0 %v904
  %v972 = vpop.f32.mrb[0].mxu0
  %v973 = vadd.f32 0.0, %v972
  %v974 = vpop.f32.mrb[0].mxu0
  %v975 = vadd.f32 0.0, %v974
  %976 = vdwg.mxu0
  %v977 = vld [vmem:[%s810] sm:$0xff]
  %v978 = vld [vmem:[%s808 + $0x8] sm:$0xff]
  %v979 = vadd.f32 %v973, %v977
  %v980 = vadd.f32 %v975, %v978
  %v981 = vxor.u32 %v979, 2147483648
  %v982 = vmul.f32 %v981, 1.442695
  %v983 = vpow.pop %v982
  %v984 = vadd.f32 %v983, 1.0
  %v985 = vrcp.pop %v984
  %v986 = vmul.f32 1.0, %v985
  %v987 = vtanh.pop %v979
  %v988 = vxor.u32 %v980, 2147483648
  %v989 = vmul.f32 %v988, 1.442695
  %v990 = vpow.pop %v989
  %v991 = vadd.f32 %v990, 1.0
  %v992 = vrcp.pop %v991
  %v993 = vmul.f32 1.0, %v992
  %v994 = vtanh.pop %v980
  %996 = vrot.lane.b32.xlu0 %v886, 32
  %v997 = vpop.permute.xlu0 %996
  %v999 = vmul.f32 %v986, %v997
  %1001 = vrot.lane.b32.xlu0 %v987, 64
  %v1002 = vpop.permute.xlu0 %1001
  %v1004 = vmul.f32 %v986, %v1002
  %1006 = vrot.lane.b32.xlu0 %v1004, 32
  %v1007 = vpop.permute.xlu0 %1006
  %v1009 = vadd.f32 %v999, %v1007
  %v1010 = vmul.f32 %v993, %v886
  %1012 = vrot.lane.b32.xlu0 %v994, 64
  %v1013 = vpop.permute.xlu0 %1012
  %v1015 = vmul.f32 %v993, %v1013
  %1017 = vrot.lane.b32.xlu0 %v1015, 32
  %v1018 = vpop.permute.xlu0 %1017
  %v1020 = vadd.f32 %v1010, %v1018
  %v1021 = vtanh.pop %v1009
  %1023 = vrot.lane.b32.xlu0 %v1021, 64
  %v1024 = vpop.permute.xlu0 %1023
  %v1026 = vmul.f32 %v986, %v1024
  %v1027 = vtanh.pop %v1020
  %1029 = vrot.lane.b32.xlu0 %v1027, 64
  %v1030 = vpop.permute.xlu0 %1029
  %v1032 = vmul.f32 %v993, %v1030
  %1034 = vrot.lane.b32.xlu0 %v1026, 32
  %v1035 = vpop.permute.xlu0 %1034
  %s1037 = scalar_lea.vmem [#allocation3], 32
  %1038 = vst.msk [vmem:[%s1037] sm:$0xff] %vm62, %v1035
  %1040 = vrot.lane.b32.xlu0 %v1032, 32
  %v1041 = vpop.permute.xlu0 %1040
  %s1043 = scalar_lea.vmem [#allocation4], 24
  %1044 = vst.msk [vmem:[%s1043] sm:$0xff] %vm62, %v1041
  %1045 = vrot.lane.b32.xlu0 %v1032, 64
  %v1046 = vpop.permute.xlu0 %1045
  %v1048 = vsel %vm62, %v1035, %v1046
  %1050 = vrot.lane.b32.xlu0 %v1009, 96
  %v1051 = vpop.permute.xlu0 %1050
  %v1053 = vsel %vm62, %v1051, %v1020
  %v1054 = vld [vmem:[%s2] sm:$0xff]
  %v1055 = vld [vmem:[%s2 + $0x8] sm:$0xff]
  %v1056 = vld [vmem:[%s2 + $0x10] sm:$0xff]
  %v1057 = vld [vmem:[%s2 + $0x18] sm:$0xff]
  %v1058 = vld [vmem:[%s2 + $0x20] sm:$0xff]
  %v1059 = vld [vmem:[%s2 + $0x28] sm:$0xff]
  %v1060 = vld [vmem:[%s2 + $0x30] sm:$0xff]
  %v1061 = vld [vmem:[%s2 + $0x38] sm:$0xff]
  %v1062 = vld [vmem:[%s2 + $0x40] sm:$0xff]
  %v1063 = vld [vmem:[%s2 + $0x48] sm:$0xff]
  %v1064 = vld [vmem:[%s2 + $0x50] sm:$0xff]
  %v1065 = vld [vmem:[%s2 + $0x58] sm:$0xff]
  %v1066 = vld [vmem:[%s2 + $0x60] sm:$0xff]
  %v1067 = vld [vmem:[%s2 + $0x68] sm:$0xff]
  %v1068 = vld [vmem:[%s2 + $0x70] sm:$0xff]
  %v1069 = vld [vmem:[%s2 + $0x78] sm:$0xff]
  %v1071 = vsel %vm232, %v1048, 0
  %1073 = vmatprep.subr.mxu0 %v1055
  %1074 = vmatpush1.msra.mxu0 %v1054
  %1075 = vmatprep.subr.mxu0 %v1057
  %1076 = vmatpush1.msra.mxu0 %v1056
  %1077 = vmatprep.subr.mxu0 %v1059
  %1078 = vmatpush1.msra.mxu0 %v1058
  %1079 = vmatprep.subr.mxu0 %v1061
  %1080 = vmatpush1.msra.mxu0 %v1060
  %1081 = vmatprep.subr.mxu0 %v1063
  %1082 = vmatpush1.msra.mxu0 %v1062
  %1083 = vmatprep.subr.mxu0 %v1065
  %1084 = vmatpush1.msra.mxu0 %v1064
  %1085 = vmatprep.subr.mxu0 %v1067
  %1086 = vmatpush1.msra.mxu0 %v1066
  %1087 = vmatprep.subr.mxu0 %v1069
  %1088 = vmatpush1.msra.mxu0 %v1068
  %1089 = vmatprep.subr.mxu0 0.0
  %1090 = vmatpush1.msra.mxu0 0.0
  %1091 = vmatprep.subr.mxu0 0.0
  %1092 = vmatpush1.msra.mxu0 0.0
  %1093 = vmatprep.subr.mxu0 0.0
  %1094 = vmatpush1.msra.mxu0 0.0
  %1095 = vmatprep.subr.mxu0 0.0
  %1096 = vmatpush1.msra.mxu0 0.0
  %1097 = vmatprep.subr.mxu0 0.0
  %1098 = vmatpush1.msra.mxu0 0.0
  %1099 = vmatprep.subr.mxu0 0.0
  %1100 = vmatpush1.msra.mxu0 0.0
  %1101 = vmatprep.subr.mxu0 0.0
  %1102 = vmatpush1.msra.mxu0 0.0
  %1103 = vmatprep.subr.mxu0 0.0
  %1104 = vmatpush1.msra.mxu0 0.0
  %1105 = vmatprep.subr.mxu0 0.0
  %1106 = vmatpush1.msra.mxu0 0.0
  %1107 = vmatprep.subr.mxu0 0.0
  %1108 = vmatpush1.msra.mxu0 0.0
  %1109 = vmatprep.subr.mxu0 0.0
  %1110 = vmatpush1.msra.mxu0 0.0
  %1111 = vmatprep.subr.mxu0 0.0
  %1112 = vmatpush1.msra.mxu0 0.0
  %1113 = vmatprep.subr.mxu0 0.0
  %1114 = vmatpush1.msra.mxu0 0.0
  %1115 = vmatprep.subr.mxu0 0.0
  %1116 = vmatpush1.msra.mxu0 0.0
  %1117 = vmatprep.subr.mxu0 0.0
  %1118 = vmatpush1.msra.mxu0 0.0
  %1119 = vmatprep.subr.mxu0 0.0
  %1120 = vmatpush1.msra.mxu0 0.0
  %1121 = vmatprep.subr.mxu0 0.0
  %1122 = vmatpush1.msra.mxu0 0.0
  %1123 = vmatprep.subr.mxu0 0.0
  %1124 = vmatpush1.msra.mxu0 0.0
  %1125 = vmatprep.subr.mxu0 0.0
  %1126 = vmatpush1.msra.mxu0 0.0
  %1127 = vmatprep.subr.mxu0 0.0
  %1128 = vmatpush1.msra.mxu0 0.0
  %1129 = vmatprep.subr.mxu0 0.0
  %1130 = vmatpush1.msra.mxu0 0.0
  %1131 = vmatprep.subr.mxu0 0.0
  %1132 = vmatpush1.msra.mxu0 0.0
  %1133 = vmatprep.subr.mxu0 0.0
  %1134 = vmatpush1.msra.mxu0 0.0
  %1135 = vmatprep.subr.mxu0 0.0
  %1136 = vmatpush1.msra.mxu0 0.0
  %1137 = vmatprep.mubr.f32.mxu0 0.0
  %1138 = vmatmul.mubr.f32.gmra.mrb[0].mxu0 %v1071
  %v1139 = vpop.f32.mrb[0].mxu0
  %v1140 = vadd.f32 0.0, %v1139
  %v1141 = vpop.f32.mrb[0].mxu0
  %v1142 = vadd.f32 0.0, %v1141
  %1143 = vdwg.mxu0
  %v1144 = vld [vmem:[%s641] sm:$0xff]
  %v1145 = vld [vmem:[%s639 + $0x8] sm:$0xff]
  %v1146 = vadd.f32 %v1140, %v1144
  %v1147 = vadd.f32 %v1142, %v1145
  %v1148 = vxor.u32 %v1146, 2147483648
  %v1149 = vmul.f32 %v1148, 1.442695
  %v1150 = vpow.pop %v1149
  %v1151 = vadd.f32 %v1150, 1.0
  %v1152 = vrcp.pop %v1151
  %v1153 = vmul.f32 1.0, %v1152
  %v1154 = vtanh.pop %v1146
  %v1155 = vxor.u32 %v1147, 2147483648
  %v1156 = vmul.f32 %v1155, 1.442695
  %v1157 = vpow.pop %v1156
  %v1158 = vadd.f32 %v1157, 1.0
  %v1159 = vrcp.pop %v1158
  %v1160 = vmul.f32 1.0, %v1159
  %v1161 = vtanh.pop %v1147
  %1163 = vrot.lane.b32.xlu0 %v1053, 32
  %v1164 = vpop.permute.xlu0 %1163
  %v1166 = vmul.f32 %v1153, %v1164
  %1168 = vrot.lane.b32.xlu0 %v1154, 64
  %v1169 = vpop.permute.xlu0 %1168
  %v1171 = vmul.f32 %v1153, %v1169
  %1173 = vrot.lane.b32.xlu0 %v1171, 32
  %v1174 = vpop.permute.xlu0 %1173
  %v1176 = vadd.f32 %v1166, %v1174
  %v1177 = vmul.f32 %v1160, %v1053
  %1179 = vrot.lane.b32.xlu0 %v1161, 64
  %v1180 = vpop.permute.xlu0 %1179
  %v1182 = vmul.f32 %v1160, %v1180
  %1184 = vrot.lane.b32.xlu0 %v1182, 32
  %v1185 = vpop.permute.xlu0 %1184
  %v1187 = vadd.f32 %v1177, %v1185
  %v1188 = vtanh.pop %v1176
  %1190 = vrot.lane.b32.xlu0 %v1188, 64
  %v1191 = vpop.permute.xlu0 %1190
  %v1193 = vmul.f32 %v1153, %v1191
  %v1194 = vtanh.pop %v1187
  %1196 = vrot.lane.b32.xlu0 %v1194, 64
  %v1197 = vpop.permute.xlu0 %1196
  %v1199 = vmul.f32 %v1160, %v1197
  %1201 = vrot.lane.b32.xlu0 %v1193, 32
  %v1202 = vpop.permute.xlu0 %1201
  %s1204 = scalar_lea.vmem [#allocation3], 40
  %1205 = vst.msk [vmem:[%s1204] sm:$0xff] %vm62, %v1202
  %1207 = vrot.lane.b32.xlu0 %v1199, 32
  %v1208 = vpop.permute.xlu0 %1207
  %s1210 = scalar_lea.vmem [#allocation4], 16
  %1211 = vst.msk [vmem:[%s1210] sm:$0xff] %vm62, %v1208
  %1212 = vrot.lane.b32.xlu0 %v1199, 64
  %v1213 = vpop.permute.xlu0 %1212
  %v1215 = vsel %vm62, %v1202, %v1213
  %1217 = vrot.lane.b32.xlu0 %v1176, 96
  %v1218 = vpop.permute.xlu0 %1217
  %v1220 = vsel %vm62, %v1218, %v1187
  %v1221 = vld [vmem:[%s2] sm:$0xff]
  %v1222 = vld [vmem:[%s2 + $0x8] sm:$0xff]
  %v1223 = vld [vmem:[%s2 + $0x10] sm:$0xff]
  %v1224 = vld [vmem:[%s2 + $0x18] sm:$0xff]
  %v1225 = vld [vmem:[%s2 + $0x20] sm:$0xff]
  %v1226 = vld [vmem:[%s2 + $0x28] sm:$0xff]
  %v1227 = vld [vmem:[%s2 + $0x30] sm:$0xff]
  %v1228 = vld [vmem:[%s2 + $0x38] sm:$0xff]
  %v1229 = vld [vmem:[%s2 + $0x40] sm:$0xff]
  %v1230 = vld [vmem:[%s2 + $0x48] sm:$0xff]
  %v1231 = vld [vmem:[%s2 + $0x50] sm:$0xff]
  %v1232 = vld [vmem:[%s2 + $0x58] sm:$0xff]
  %v1233 = vld [vmem:[%s2 + $0x60] sm:$0xff]
  %v1234 = vld [vmem:[%s2 + $0x68] sm:$0xff]
  %v1235 = vld [vmem:[%s2 + $0x70] sm:$0xff]
  %v1236 = vld [vmem:[%s2 + $0x78] sm:$0xff]
  %v1238 = vsel %vm232, %v1215, 0
  %1240 = vmatprep.subr.mxu0 %v1222
  %1241 = vmatpush1.msra.mxu0 %v1221
  %1242 = vmatprep.subr.mxu0 %v1224
  %1243 = vmatpush1.msra.mxu0 %v1223
  %1244 = vmatprep.subr.mxu0 %v1226
  %1245 = vmatpush1.msra.mxu0 %v1225
  %1246 = vmatprep.subr.mxu0 %v1228
  %1247 = vmatpush1.msra.mxu0 %v1227
  %1248 = vmatprep.subr.mxu0 %v1230
  %1249 = vmatpush1.msra.mxu0 %v1229
  %1250 = vmatprep.subr.mxu0 %v1232
  %1251 = vmatpush1.msra.mxu0 %v1231
  %1252 = vmatprep.subr.mxu0 %v1234
  %1253 = vmatpush1.msra.mxu0 %v1233
  %1254 = vmatprep.subr.mxu0 %v1236
  %1255 = vmatpush1.msra.mxu0 %v1235
  %1256 = vmatprep.subr.mxu0 0.0
  %1257 = vmatpush1.msra.mxu0 0.0
  %1258 = vmatprep.subr.mxu0 0.0
  %1259 = vmatpush1.msra.mxu0 0.0
  %1260 = vmatprep.subr.mxu0 0.0
  %1261 = vmatpush1.msra.mxu0 0.0
  %1262 = vmatprep.subr.mxu0 0.0
  %1263 = vmatpush1.msra.mxu0 0.0
  %1264 = vmatprep.subr.mxu0 0.0
  %1265 = vmatpush1.msra.mxu0 0.0
  %1266 = vmatprep.subr.mxu0 0.0
  %1267 = vmatpush1.msra.mxu0 0.0
  %1268 = vmatprep.subr.mxu0 0.0
  %1269 = vmatpush1.msra.mxu0 0.0
  %1270 = vmatprep.subr.mxu0 0.0
  %1271 = vmatpush1.msra.mxu0 0.0
  %1272 = vmatprep.subr.mxu0 0.0
  %1273 = vmatpush1.msra.mxu0 0.0
  %1274 = vmatprep.subr.mxu0 0.0
  %1275 = vmatpush1.msra.mxu0 0.0
  %1276 = vmatprep.subr.mxu0 0.0
  %1277 = vmatpush1.msra.mxu0 0.0
  %1278 = vmatprep.subr.mxu0 0.0
  %1279 = vmatpush1.msra.mxu0 0.0
  %1280 = vmatprep.subr.mxu0 0.0
  %1281 = vmatpush1.msra.mxu0 0.0
  %1282 = vmatprep.subr.mxu0 0.0
  %1283 = vmatpush1.msra.mxu0 0.0
  %1284 = vmatprep.subr.mxu0 0.0
  %1285 = vmatpush1.msra.mxu0 0.0
  %1286 = vmatprep.subr.mxu0 0.0
  %1287 = vmatpush1.msra.mxu0 0.0
  %1288 = vmatprep.subr.mxu0 0.0
  %1289 = vmatpush1.msra.mxu0 0.0
  %1290 = vmatprep.subr.mxu0 0.0
  %1291 = vmatpush1.msra.mxu0 0.0
  %1292 = vmatprep.subr.mxu0 0.0
  %1293 = vmatpush1.msra.mxu0 0.0
  %1294 = vmatprep.subr.mxu0 0.0
  %1295 = vmatpush1.msra.mxu0 0.0
  %1296 = vmatprep.subr.mxu0 0.0
  %1297 = vmatpush1.msra.mxu0 0.0
  %1298 = vmatprep.subr.mxu0 0.0
  %1299 = vmatpush1.msra.mxu0 0.0
  %1300 = vmatprep.subr.mxu0 0.0
  %1301 = vmatpush1.msra.mxu0 0.0
  %1302 = vmatprep.subr.mxu0 0.0
  %1303 = vmatpush1.msra.mxu0 0.0
  %1304 = vmatprep.mubr.f32.mxu0 0.0
  %1305 = vmatmul.mubr.f32.gmra.mrb[0].mxu0 %v1238
  %v1306 = vpop.f32.mrb[0].mxu0
  %v1307 = vadd.f32 0.0, %v1306
  %v1308 = vpop.f32.mrb[0].mxu0
  %v1309 = vadd.f32 0.0, %v1308
  %1310 = vdwg.mxu0
  %v1311 = vld [vmem:[%s472] sm:$0xff]
  %v1312 = vld [vmem:[%s470 + $0x8] sm:$0xff]
  %v1313 = vadd.f32 %v1307, %v1311
  %v1314 = vadd.f32 %v1309, %v1312
  %v1315 = vxor.u32 %v1313, 2147483648
  %v1316 = vmul.f32 %v1315, 1.442695
  %v1317 = vpow.pop %v1316
  %v1318 = vadd.f32 %v1317, 1.0
  %v1319 = vrcp.pop %v1318
  %v1320 = vmul.f32 1.0, %v1319
  %v1321 = vtanh.pop %v1313
  %v1322 = vxor.u32 %v1314, 2147483648
  %v1323 = vmul.f32 %v1322, 1.442695
  %v1324 = vpow.pop %v1323
  %v1325 = vadd.f32 %v1324, 1.0
  %v1326 = vrcp.pop %v1325
  %v1327 = vmul.f32 1.0, %v1326
  %v1328 = vtanh.pop %v1314
  %1330 = vrot.lane.b32.xlu0 %v1220, 32
  %v1331 = vpop.permute.xlu0 %1330
  %v1333 = vmul.f32 %v1320, %v1331
  %1335 = vrot.lane.b32.xlu0 %v1321, 64
  %v1336 = vpop.permute.xlu0 %1335
  %v1338 = vmul.f32 %v1320, %v1336
  %1340 = vrot.lane.b32.xlu0 %v1338, 32
  %v1341 = vpop.permute.xlu0 %1340
  %v1343 = vadd.f32 %v1333, %v1341
  %v1344 = vmul.f32 %v1327, %v1220
  %1346 = vrot.lane.b32.xlu0 %v1328, 64
  %v1347 = vpop.permute.xlu0 %1346
  %v1349 = vmul.f32 %v1327, %v1347
  %1351 = vrot.lane.b32.xlu0 %v1349, 32
  %v1352 = vpop.permute.xlu0 %1351
  %v1354 = vadd.f32 %v1344, %v1352
  %v1355 = vtanh.pop %v1343
  %1357 = vrot.lane.b32.xlu0 %v1355, 64
  %v1358 = vpop.permute.xlu0 %1357
  %v1360 = vmul.f32 %v1320, %v1358
  %v1361 = vtanh.pop %v1354
  %1363 = vrot.lane.b32.xlu0 %v1361, 64
  %v1364 = vpop.permute.xlu0 %1363
  %v1366 = vmul.f32 %v1327, %v1364
  %1368 = vrot.lane.b32.xlu0 %v1360, 32
  %v1369 = vpop.permute.xlu0 %1368
  %s1371 = scalar_lea.vmem [#allocation3], 48
  %1372 = vst.msk [vmem:[%s1371] sm:$0xff] %vm62, %v1369
  %1374 = vrot.lane.b32.xlu0 %v1366, 32
  %v1375 = vpop.permute.xlu0 %1374
  %s1377 = scalar_lea.vmem [#allocation4], 8
  %1378 = vst.msk [vmem:[%s1377] sm:$0xff] %vm62, %v1375
  %1379 = vrot.lane.b32.xlu0 %v1366, 64
  %v1380 = vpop.permute.xlu0 %1379
  %v1382 = vsel %vm62, %v1369, %v1380
  %1384 = vrot.lane.b32.xlu0 %v1343, 96
  %v1385 = vpop.permute.xlu0 %1384
  %v1387 = vsel %vm62, %v1385, %v1354
  %v1388 = vld [vmem:[%s2] sm:$0xff]
  %v1389 = vld [vmem:[%s2 + $0x8] sm:$0xff]
  %v1390 = vld [vmem:[%s2 + $0x10] sm:$0xff]
  %v1391 = vld [vmem:[%s2 + $0x18] sm:$0xff]
  %v1392 = vld [vmem:[%s2 + $0x20] sm:$0xff]
  %v1393 = vld [vmem:[%s2 + $0x28] sm:$0xff]
  %v1394 = vld [vmem:[%s2 + $0x30] sm:$0xff]
  %v1395 = vld [vmem:[%s2 + $0x38] sm:$0xff]
  %v1396 = vld [vmem:[%s2 + $0x40] sm:$0xff]
  %v1397 = vld [vmem:[%s2 + $0x48] sm:$0xff]
  %v1398 = vld [vmem:[%s2 + $0x50] sm:$0xff]
  %v1399 = vld [vmem:[%s2 + $0x58] sm:$0xff]
  %v1400 = vld [vmem:[%s2 + $0x60] sm:$0xff]
  %v1401 = vld [vmem:[%s2 + $0x68] sm:$0xff]
  %v1402 = vld [vmem:[%s2 + $0x70] sm:$0xff]
  %v1403 = vld [vmem:[%s2 + $0x78] sm:$0xff]
  %v1405 = vsel %vm232, %v1382, 0
  %1407 = vmatprep.subr.mxu0 %v1389
  %1408 = vmatpush1.msra.mxu0 %v1388
  %1409 = vmatprep.subr.mxu0 %v1391
  %1410 = vmatpush1.msra.mxu0 %v1390
  %1411 = vmatprep.subr.mxu0 %v1393
  %1412 = vmatpush1.msra.mxu0 %v1392
  %1413 = vmatprep.subr.mxu0 %v1395
  %1414 = vmatpush1.msra.mxu0 %v1394
  %1415 = vmatprep.subr.mxu0 %v1397
  %1416 = vmatpush1.msra.mxu0 %v1396
  %1417 = vmatprep.subr.mxu0 %v1399
  %1418 = vmatpush1.msra.mxu0 %v1398
  %1419 = vmatprep.subr.mxu0 %v1401
  %1420 = vmatpush1.msra.mxu0 %v1400
  %1421 = vmatprep.subr.mxu0 %v1403
  %1422 = vmatpush1.msra.mxu0 %v1402
  %1423 = vmatprep.subr.mxu0 0.0
  %1424 = vmatpush1.msra.mxu0 0.0
  %1425 = vmatprep.subr.mxu0 0.0
  %1426 = vmatpush1.msra.mxu0 0.0
  %1427 = vmatprep.subr.mxu0 0.0
  %1428 = vmatpush1.msra.mxu0 0.0
  %1429 = vmatprep.subr.mxu0 0.0
  %1430 = vmatpush1.msra.mxu0 0.0
  %1431 = vmatprep.subr.mxu0 0.0
  %1432 = vmatpush1.msra.mxu0 0.0
  %1433 = vmatprep.subr.mxu0 0.0
  %1434 = vmatpush1.msra.mxu0 0.0
  %1435 = vmatprep.subr.mxu0 0.0
  %1436 = vmatpush1.msra.mxu0 0.0
  %1437 = vmatprep.subr.mxu0 0.0
  %1438 = vmatpush1.msra.mxu0 0.0
  %1439 = vmatprep.subr.mxu0 0.0
  %1440 = vmatpush1.msra.mxu0 0.0
  %1441 = vmatprep.subr.mxu0 0.0
  %1442 = vmatpush1.msra.mxu0 0.0
  %1443 = vmatprep.subr.mxu0 0.0
  %1444 = vmatpush1.msra.mxu0 0.0
  %1445 = vmatprep.subr.mxu0 0.0
  %1446 = vmatpush1.msra.mxu0 0.0
  %1447 = vmatprep.subr.mxu0 0.0
  %1448 = vmatpush1.msra.mxu0 0.0
  %1449 = vmatprep.subr.mxu0 0.0
  %1450 = vmatpush1.msra.mxu0 0.0
  %1451 = vmatprep.subr.mxu0 0.0
  %1452 = vmatpush1.msra.mxu0 0.0
  %1453 = vmatprep.subr.mxu0 0.0
  %1454 = vmatpush1.msra.mxu0 0.0
  %1455 = vmatprep.subr.mxu0 0.0
  %1456 = vmatpush1.msra.mxu0 0.0
  %1457 = vmatprep.subr.mxu0 0.0
  %1458 = vmatpush1.msra.mxu0 0.0
  %1459 = vmatprep.subr.mxu0 0.0
  %1460 = vmatpush1.msra.mxu0 0.0
  %1461 = vmatprep.subr.mxu0 0.0
  %1462 = vmatpush1.msra.mxu0 0.0
  %1463 = vmatprep.subr.mxu0 0.0
  %1464 = vmatpush1.msra.mxu0 0.0
  %1465 = vmatprep.subr.mxu0 0.0
  %1466 = vmatpush1.msra.mxu0 0.0
  %1467 = vmatprep.subr.mxu0 0.0
  %1468 = vmatpush1.msra.mxu0 0.0
  %1469 = vmatprep.subr.mxu0 0.0
  %1470 = vmatpush1.msra.mxu0 0.0
  %1471 = vmatprep.mubr.f32.mxu0 0.0
  %1472 = vmatmul.mubr.f32.gmra.mrb[0].mxu0 %v1405
  %v1473 = vpop.f32.mrb[0].mxu0
  %v1474 = vadd.f32 0.0, %v1473
  %v1475 = vpop.f32.mrb[0].mxu0
  %v1476 = vadd.f32 0.0, %v1475
  %1477 = vdwg.mxu0
  %v1478 = vld [vmem:[%s308] sm:$0xff]
  %v1479 = vld [vmem:[#allocation2 + $0x8] sm:$0xff]
  %v1480 = vadd.f32 %v1474, %v1478
  %v1481 = vadd.f32 %v1476, %v1479
  %v1482 = vxor.u32 %v1480, 2147483648
  %v1483 = vmul.f32 %v1482, 1.442695
  %v1484 = vpow.pop %v1483
  %v1485 = vadd.f32 %v1484, 1.0
  %v1486 = vrcp.pop %v1485
  %v1487 = vmul.f32 1.0, %v1486
  %v1488 = vtanh.pop %v1480
  %v1489 = vxor.u32 %v1481, 2147483648
  %v1490 = vmul.f32 %v1489, 1.442695
  %v1491 = vpow.pop %v1490
  %v1492 = vadd.f32 %v1491, 1.0
  %v1493 = vrcp.pop %v1492
  %v1494 = vmul.f32 1.0, %v1493
  %v1495 = vtanh.pop %v1481
  %1497 = vrot.lane.b32.xlu0 %v1387, 32
  %v1498 = vpop.permute.xlu0 %1497
  %v1500 = vmul.f32 %v1487, %v1498
  %1502 = vrot.lane.b32.xlu0 %v1488, 64
  %v1503 = vpop.permute.xlu0 %1502
  %v1505 = vmul.f32 %v1487, %v1503
  %1507 = vrot.lane.b32.xlu0 %v1505, 32
  %v1508 = vpop.permute.xlu0 %1507
  %v1510 = vadd.f32 %v1500, %v1508
  %v1511 = vmul.f32 %v1494, %v1387
  %1513 = vrot.lane.b32.xlu0 %v1495, 64
  %v1514 = vpop.permute.xlu0 %1513
  %v1516 = vmul.f32 %v1494, %v1514
  %1518 = vrot.lane.b32.xlu0 %v1516, 32
  %v1519 = vpop.permute.xlu0 %1518
  %v1521 = vadd.f32 %v1511, %v1519
  %v1522 = vtanh.pop %v1510
  %1524 = vrot.lane.b32.xlu0 %v1522, 64
  %v1525 = vpop.permute.xlu0 %1524
  %v1527 = vmul.f32 %v1487, %v1525
  %v1528 = vtanh.pop %v1521
  %1530 = vrot.lane.b32.xlu0 %v1528, 64
  %v1531 = vpop.permute.xlu0 %1530
  %v1533 = vmul.f32 %v1494, %v1531
  %1535 = vrot.lane.b32.xlu0 %v1527, 32
  %v1536 = vpop.permute.xlu0 %1535
  %s1538 = scalar_lea.vmem [#allocation3], 56
  %1539 = vst.msk [vmem:[%s1538] sm:$0xff] %vm62, %v1536
  %1541 = vrot.lane.b32.xlu0 %v1533, 32
  %v1542 = vpop.permute.xlu0 %1541
  %1544 = vst.msk [vmem:[#allocation4] sm:$0xff] %vm62, %v1542
  %v1545 = vld [vmem:[#allocation3] sm:$0xff]
  %v1546 = vld [vmem:[#allocation3 + $0x8] sm:$0xff]
  %v1547 = vld [vmem:[#allocation3 + $0x10] sm:$0xff]
  %v1548 = vld [vmem:[#allocation3 + $0x18] sm:$0xff]
  %v1549 = vld [vmem:[#allocation3 + $0x20] sm:$0xff]
  %v1550 = vld [vmem:[#allocation3 + $0x28] sm:$0xff]
  %v1551 = vld [vmem:[#allocation3 + $0x30] sm:$0xff]
  %v1552 = vld [vmem:[#allocation3 + $0x38] sm:$0xff]
  %v1553 = vld [vmem:[#allocation4] sm:$0xff]
  %v1554 = vld [vmem:[#allocation4 + $0x8] sm:$0xff]
  %v1555 = vld [vmem:[#allocation4 + $0x10] sm:$0xff]
  %v1556 = vld [vmem:[#allocation4 + $0x18] sm:$0xff]
  %v1557 = vld [vmem:[#allocation4 + $0x20] sm:$0xff]
  %v1558 = vld [vmem:[#allocation4 + $0x28] sm:$0xff]
  %v1559 = vld [vmem:[#allocation4 + $0x30] sm:$0xff]
  %v1560 = vld [vmem:[#allocation4 + $0x38] sm:$0xff]
  %1569 = vrot.lane.b32.xlu0 %v1553, 32
  %v1570 = vpop.permute.xlu0 %1569
  %1571 = vrot.lane.b32.xlu0 %v1554, 32
  %v1572 = vpop.permute.xlu0 %1571
  %1573 = vrot.lane.b32.xlu0 %v1555, 32
  %v1574 = vpop.permute.xlu0 %1573
  %1575 = vrot.lane.b32.xlu0 %v1556, 32
  %v1576 = vpop.permute.xlu0 %1575
  %1577 = vrot.lane.b32.xlu0 %v1557, 32
  %v1578 = vpop.permute.xlu0 %1577
  %1579 = vrot.lane.b32.xlu0 %v1558, 32
  %v1580 = vpop.permute.xlu0 %1579
  %1581 = vrot.lane.b32.xlu0 %v1559, 32
  %v1582 = vpop.permute.xlu0 %1581
  %1583 = vrot.lane.b32.xlu0 %v1560, 32
  %v1584 = vpop.permute.xlu0 %1583
  %v1593 = vsel %vm62, %v1545, %v1570
  %v1594 = vsel %vm62, %v1546, %v1572
  %v1595 = vsel %vm62, %v1547, %v1574
  %v1596 = vsel %vm62, %v1548, %v1576
  %v1597 = vsel %vm62, %v1549, %v1578
  %v1598 = vsel %vm62, %v1550, %v1580
  %v1599 = vsel %vm62, %v1551, %v1582
  %v1600 = vsel %vm62, %v1552, %v1584
  %v1601 = vld [vmem:[%s4] sm:$0xff]
  %v1602 = vld [vmem:[%s4 + $0x8] sm:$0xff]
  %v1603 = vld [vmem:[%s4 + $0x10] sm:$0xff]
  %v1604 = vld [vmem:[%s4 + $0x18] sm:$0xff]
  %v1605 = vld [vmem:[%s4 + $0x20] sm:$0xff]
  %v1606 = vld [vmem:[%s4 + $0x28] sm:$0xff]
  %v1607 = vld [vmem:[%s4 + $0x30] sm:$0xff]
  %v1608 = vld [vmem:[%s4 + $0x38] sm:$0xff]
  %v1609 = vld [vmem:[%s4 + $0x40] sm:$0xff]
  %v1610 = vld [vmem:[%s4 + $0x48] sm:$0xff]
  %v1611 = vld [vmem:[%s4 + $0x50] sm:$0xff]
  %v1612 = vld [vmem:[%s4 + $0x58] sm:$0xff]
  %v1613 = vld [vmem:[%s4 + $0x60] sm:$0xff]
  %v1614 = vld [vmem:[%s4 + $0x68] sm:$0xff]
  %v1615 = vld [vmem:[%s4 + $0x70] sm:$0xff]
  %v1616 = vld [vmem:[%s4 + $0x78] sm:$0xff]
  %v1617 = vld [vmem:[%s6] sm:$0x3]
  %v1619 = vlaneseq
  %v1620 = vshrl.u32 %v1619, 7
  %v1621 = vsub.s32 0, %v1620
  %v1622 = vrot.slane %v1617, %v1621
  %v1623 = vlaneseq
  %v1624 = vshrl.u32 %v1623, 7
  %v1625 = vsub.s32 1, %v1624
  %v1626 = vrot.slane %v1617, %v1625
  %v1630 = vsel %vm232, %v1593, 0
  %v1633 = vsel %vm232, %v1594, 0
  %v1636 = vsel %vm232, %v1595, 0
  %v1639 = vsel %vm232, %v1596, 0
  %v1642 = vsel %vm232, %v1597, 0
  %v1645 = vsel %vm232, %v1598, 0
  %v1648 = vsel %vm232, %v1599, 0
  %v1651 = vsel %vm232, %v1600, 0
  %1653 = vmatprep.subr.mxu0 %v1602
  %1654 = vmatpush1.msra.mxu0 %v1601
  %1655 = vmatprep.subr.mxu0 %v1604
  %1656 = vmatpush1.msra.mxu0 %v1603
  %1657 = vmatprep.subr.mxu0 %v1606
  %1658 = vmatpush1.msra.mxu0 %v1605
  %1659 = vmatprep.subr.mxu0 %v1608
  %1660 = vmatpush1.msra.mxu0 %v1607
  %1661 = vmatprep.subr.mxu0 %v1610
  %1662 = vmatpush1.msra.mxu0 %v1609
  %1663 = vmatprep.subr.mxu0 %v1612
  %1664 = vmatpush1.msra.mxu0 %v1611
  %1665 = vmatprep.subr.mxu0 %v1614
  %1666 = vmatpush1.msra.mxu0 %v1613
  %1667 = vmatprep.subr.mxu0 %v1616
  %1668 = vmatpush1.msra.mxu0 %v1615
  %1669 = vmatprep.subr.mxu0 0.0
  %1670 = vmatpush1.msra.mxu0 0.0
  %1671 = vmatprep.subr.mxu0 0.0
  %1672 = vmatpush1.msra.mxu0 0.0
  %1673 = vmatprep.subr.mxu0 0.0
  %1674 = vmatpush1.msra.mxu0 0.0
  %1675 = vmatprep.subr.mxu0 0.0
  %1676 = vmatpush1.msra.mxu0 0.0
  %1677 = vmatprep.subr.mxu0 0.0
  %1678 = vmatpush1.msra.mxu0 0.0
  %1679 = vmatprep.subr.mxu0 0.0
  %1680 = vmatpush1.msra.mxu0 0.0
  %1681 = vmatprep.subr.mxu0 0.0
  %1682 = vmatpush1.msra.mxu0 0.0
  %1683 = vmatprep.subr.mxu0 0.0
  %1684 = vmatpush1.msra.mxu0 0.0
  %1685 = vmatprep.subr.mxu0 0.0
  %1686 = vmatpush1.msra.mxu0 0.0
  %1687 = vmatprep.subr.mxu0 0.0
  %1688 = vmatpush1.msra.mxu0 0.0
  %1689 = vmatprep.subr.mxu0 0.0
  %1690 = vmatpush1.msra.mxu0 0.0
  %1691 = vmatprep.subr.mxu0 0.0
  %1692 = vmatpush1.msra.mxu0 0.0
  %1693 = vmatprep.subr.mxu0 0.0
  %1694 = vmatpush1.msra.mxu0 0.0
  %1695 = vmatprep.subr.mxu0 0.0
  %1696 = vmatpush1.msra.mxu0 0.0
  %1697 = vmatprep.subr.mxu0 0.0
  %1698 = vmatpush1.msra.mxu0 0.0
  %1699 = vmatprep.subr.mxu0 0.0
  %1700 = vmatpush1.msra.mxu0 0.0
  %1701 = vmatprep.subr.mxu0 0.0
  %1702 = vmatpush1.msra.mxu0 0.0
  %1703 = vmatprep.subr.mxu0 0.0
  %1704 = vmatpush1.msra.mxu0 0.0
  %1705 = vmatprep.subr.mxu0 0.0
  %1706 = vmatpush1.msra.mxu0 0.0
  %1707 = vmatprep.subr.mxu0 0.0
  %1708 = vmatpush1.msra.mxu0 0.0
  %1709 = vmatprep.subr.mxu0 0.0
  %1710 = vmatpush1.msra.mxu0 0.0
  %1711 = vmatprep.subr.mxu0 0.0
  %1712 = vmatpush1.msra.mxu0 0.0
  %1713 = vmatprep.subr.mxu0 0.0
  %1714 = vmatpush1.msra.mxu0 0.0
  %1715 = vmatprep.subr.mxu0 0.0
  %1716 = vmatpush1.msra.mxu0 0.0
  %1717 = vmatprep.mubr.f32.mxu0 0.0
  %1718 = vmatmul.mubr.f32.gmra.mrb[0].mxu0 %v1630
  %v1719 = vpop.f32.mrb[0].mxu0
  %v1720 = vadd.f32 %v1622, %v1719
  %v1721 = vpop.f32.mrb[0].mxu0
  %v1722 = vadd.f32 %v1626, %v1721
  %1723 = vmatprep.mubr.f32.mxu0 0.0
  %1724 = vmatmul.mubr.f32.gmra.mrb[0].mxu0 %v1633
  %v1725 = vpop.f32.mrb[0].mxu0
  %v1726 = vadd.f32 %v1622, %v1725
  %v1727 = vpop.f32.mrb[0].mxu0
  %v1728 = vadd.f32 %v1626, %v1727
  %1729 = vmatprep.mubr.f32.mxu0 0.0
  %1730 = vmatmul.mubr.f32.gmra.mrb[0].mxu0 %v1636
  %v1731 = vpop.f32.mrb[0].mxu0
  %v1732 = vadd.f32 %v1622, %v1731
  %v1733 = vpop.f32.mrb[0].mxu0
  %v1734 = vadd.f32 %v1626, %v1733
  %1735 = vmatprep.mubr.f32.mxu0 0.0
  %1736 = vmatmul.mubr.f32.gmra.mrb[0].mxu0 %v1639
  %v1737 = vpop.f32.mrb[0].mxu0
  %v1738 = vadd.f32 %v1622, %v1737
  %v1739 = vpop.f32.mrb[0].mxu0
  %v1740 = vadd.f32 %v1626, %v1739
  %1741 = vmatprep.mubr.f32.mxu0 0.0
  %1742 = vmatmul.mubr.f32.gmra.mrb[0].mxu0 %v1642
  %v1743 = vpop.f32.mrb[0].mxu0
  %v1744 = vadd.f32 %v1622, %v1743
  %v1745 = vpop.f32.mrb[0].mxu0
  %v1746 = vadd.f32 %v1626, %v1745
  %1747 = vmatprep.mubr.f32.mxu0 0.0
  %1748 = vmatmul.mubr.f32.gmra.mrb[0].mxu0 %v1645
  %v1749 = vpop.f32.mrb[0].mxu0
  %v1750 = vadd.f32 %v1622, %v1749
  %v1751 = vpop.f32.mrb[0].mxu0
  %v1752 = vadd.f32 %v1626, %v1751
  %1753 = vmatprep.mubr.f32.mxu0 0.0
  %1754 = vmatmul.mubr.f32.gmra.mrb[0].mxu0 %v1648
  %v1755 = vpop.f32.mrb[0].mxu0
  %v1756 = vadd.f32 %v1622, %v1755
  %v1757 = vpop.f32.mrb[0].mxu0
  %v1758 = vadd.f32 %v1626, %v1757
  %1759 = vmatprep.mubr.f32.mxu0 0.0
  %1760 = vmatmul.mubr.f32.gmra.mrb[0].mxu0 %v1651
  %v1761 = vpop.f32.mrb[0].mxu0
  %v1762 = vadd.f32 %v1622, %v1761
  %v1763 = vpop.f32.mrb[0].mxu0
  %v1764 = vadd.f32 %v1626, %v1763
  %1765 = vdwg.mxu0
  %1766 = vst [vmem:[#allocation2] sm:$0xff] %v1720
  %1767 = vst [vmem:[#allocation2 + $0x8] sm:$0xff] %v1722
  %1768 = vst [vmem:[#allocation2 + $0x10] sm:$0xff] %v1726
  %1769 = vst [vmem:[#allocation2 + $0x18] sm:$0xff] %v1728
  %1770 = vst [vmem:[#allocation2 + $0x20] sm:$0xff] %v1732
  %1771 = vst [vmem:[#allocation2 + $0x28] sm:$0xff] %v1734
  %1772 = vst [vmem:[#allocation2 + $0x30] sm:$0xff] %v1738
  %1773 = vst [vmem:[#allocation2 + $0x38] sm:$0xff] %v1740
  %1774 = vst [vmem:[#allocation2 + $0x40] sm:$0xff] %v1744
  %1775 = vst [vmem:[#allocation2 + $0x48] sm:$0xff] %v1746
  %1776 = vst [vmem:[#allocation2 + $0x50] sm:$0xff] %v1750
  %1777 = vst [vmem:[#allocation2 + $0x58] sm:$0xff] %v1752
  %1778 = vst [vmem:[#allocation2 + $0x60] sm:$0xff] %v1756
  %1779 = vst [vmem:[#allocation2 + $0x68] sm:$0xff] %v1758
  %1780 = vst [vmem:[#allocation2 + $0x70] sm:$0xff] %v1762
  %1781 = vst [vmem:[#allocation2 + $0x78] sm:$0xff] %v1764
  %v1782 = vld [vmem:[%s5] sm:$0xff]
  %v1783 = vld [vmem:[%s5 + $0x8] sm:$0xff]
  %v1784 = vld [vmem:[%s5 + $0x10] sm:$0xff]
  %v1785 = vld [vmem:[%s5 + $0x18] sm:$0xff]
  %v1786 = vld [vmem:[%s5 + $0x20] sm:$0xff]
  %v1787 = vld [vmem:[%s5 + $0x28] sm:$0xff]
  %v1788 = vld [vmem:[%s5 + $0x30] sm:$0xff]
  %v1789 = vld [vmem:[%s5 + $0x38] sm:$0xff]
  %v1790 = vld [vmem:[%s5 + $0x40] sm:$0xff]
  %v1791 = vld [vmem:[%s5 + $0x48] sm:$0xff]
  %v1792 = vld [vmem:[%s5 + $0x50] sm:$0xff]
  %v1793 = vld [vmem:[%s5 + $0x58] sm:$0xff]
  %v1794 = vld [vmem:[%s5 + $0x60] sm:$0xff]
  %v1795 = vld [vmem:[%s5 + $0x68] sm:$0xff]
  %v1796 = vld [vmem:[%s5 + $0x70] sm:$0xff]
  %v1797 = vld [vmem:[%s5 + $0x78] sm:$0xff]
  %1798 = vmatprep.subr.mxu0 %v1783
  %1799 = vmatpush1.msra.mxu0 %v1782
  %1800 = vmatprep.subr.mxu0 %v1785
  %1801 = vmatpush1.msra.mxu0 %v1784
  %1802 = vmatprep.subr.mxu0 %v1787
  %1803 = vmatpush1.msra.mxu0 %v1786
  %1804 = vmatprep.subr.mxu0 %v1789
  %1805 = vmatpush1.msra.mxu0 %v1788
  %1806 = vmatprep.subr.mxu0 %v1791
  %1807 = vmatpush1.msra.mxu0 %v1790
  %1808 = vmatprep.subr.mxu0 %v1793
  %1809 = vmatpush1.msra.mxu0 %v1792
  %1810 = vmatprep.subr.mxu0 %v1795
  %1811 = vmatpush1.msra.mxu0 %v1794
  %1812 = vmatprep.subr.mxu0 %v1797
  %1813 = vmatpush1.msra.mxu0 %v1796
  %1814 = vmatprep.subr.mxu0 0.0
  %1815 = vmatpush1.msra.mxu0 0.0
  %1816 = vmatprep.subr.mxu0 0.0
  %1817 = vmatpush1.msra.mxu0 0.0
  %1818 = vmatprep.subr.mxu0 0.0
  %1819 = vmatpush1.msra.mxu0 0.0
  %1820 = vmatprep.subr.mxu0 0.0
  %1821 = vmatpush1.msra.mxu0 0.0
  %1822 = vmatprep.subr.mxu0 0.0
  %1823 = vmatpush1.msra.mxu0 0.0
  %1824 = vmatprep.subr.mxu0 0.0
  %1825 = vmatpush1.msra.mxu0 0.0
  %1826 = vmatprep.subr.mxu0 0.0
  %1827 = vmatpush1.msra.mxu0 0.0
  %1828 = vmatprep.subr.mxu0 0.0
  %1829 = vmatpush1.msra.mxu0 0.0
  %1830 = vmatprep.subr.mxu0 0.0
  %1831 = vmatpush1.msra.mxu0 0.0
  %1832 = vmatprep.subr.mxu0 0.0
  %1833 = vmatpush1.msra.mxu0 0.0
  %1834 = vmatprep.subr.mxu0 0.0
  %1835 = vmatpush1.msra.mxu0 0.0
  %1836 = vmatprep.subr.mxu0 0.0
  %1837 = vmatpush1.msra.mxu0 0.0
  %1838 = vmatprep.subr.mxu0 0.0
  %1839 = vmatpush1.msra.mxu0 0.0
  %1840 = vmatprep.subr.mxu0 0.0
  %1841 = vmatpush1.msra.mxu0 0.0
  %1842 = vmatprep.subr.mxu0 0.0
  %1843 = vmatpush1.msra.mxu0 0.0
  %1844 = vmatprep.subr.mxu0 0.0
  %1845 = vmatpush1.msra.mxu0 0.0
  %1846 = vmatprep.subr.mxu0 0.0
  %1847 = vmatpush1.msra.mxu0 0.0
  %1848 = vmatprep.subr.mxu0 0.0
  %1849 = vmatpush1.msra.mxu0 0.0
  %1850 = vmatprep.subr.mxu0 0.0
  %1851 = vmatpush1.msra.mxu0 0.0
  %1852 = vmatprep.subr.mxu0 0.0
  %1853 = vmatpush1.msra.mxu0 0.0
  %1854 = vmatprep.subr.mxu0 0.0
  %1855 = vmatpush1.msra.mxu0 0.0
  %1856 = vmatprep.subr.mxu0 0.0
  %1857 = vmatpush1.msra.mxu0 0.0
  %1858 = vmatprep.subr.mxu0 0.0
  %1859 = vmatpush1.msra.mxu0 0.0
  %1860 = vmatprep.subr.mxu0 0.0
  %1861 = vmatpush1.msra.mxu0 0.0
  %1862 = vmatprep.mubr.f32.mxu0 0.0
  %1863 = vmatmul.mubr.f32.gmra.mrb[0].mxu0 %v234
  %v1864 = vpop.f32.mrb[0].mxu0
  %v1865 = vadd.f32 0.0, %v1864
  %v1866 = vpop.f32.mrb[0].mxu0
  %v1867 = vadd.f32 0.0, %v1866
  %1868 = vdwg.mxu0
  %v1869 = vld [vmem:[#allocation2] sm:$0xff]
  %v1870 = vld [vmem:[#allocation2 + $0x8] sm:$0xff]
  %v1871 = vld [vmem:[%s308] sm:$0xff]
  %v1872 = vld [vmem:[%s308 + $0x8] sm:$0xff]
  %v1873 = vadd.f32 %v1865, %v1869
  %v1874 = vadd.f32 %v1867, %v1872
  %v1875 = vxor.u32 %v1873, 2147483648
  %v1876 = vmul.f32 %v1875, 1.442695
  %v1877 = vpow.pop %v1876
  %v1878 = vadd.f32 %v1877, 1.0
  %v1879 = vrcp.pop %v1878
  %v1880 = vmul.f32 1.0, %v1879
  %v1881 = vtanh.pop %v1873
  %v1882 = vxor.u32 %v1874, 2147483648
  %v1883 = vmul.f32 %v1882, 1.442695
  %v1884 = vpow.pop %v1883
  %v1885 = vadd.f32 %v1884, 1.0
  %v1886 = vrcp.pop %v1885
  %v1887 = vmul.f32 1.0, %v1886
  %v1888 = vtanh.pop %v1874
  %v1889 = vmul.f32 %v1880, 0.0
  %1891 = vrot.lane.b32.xlu0 %v1881, 64
  %v1892 = vpop.permute.xlu0 %1891
  %v1894 = vmul.f32 %v1880, %v1892
  %1896 = vrot.lane.b32.xlu0 %v1894, 32
  %v1897 = vpop.permute.xlu0 %1896
  %v1899 = vadd.f32 %v1889, %v1897
  %v1900 = vmul.f32 %v1887, 0.0
  %1902 = vrot.lane.b32.xlu0 %v1888, 64
  %v1903 = vpop.permute.xlu0 %1902
  %v1905 = vmul.f32 %v1887, %v1903
  %1907 = vrot.lane.b32.xlu0 %v1905, 32
  %v1908 = vpop.permute.xlu0 %1907
  %v1910 = vadd.f32 %v1900, %v1908
  %v1911 = vtanh.pop %v1899
  %1913 = vrot.lane.b32.xlu0 %v1911, 64
  %v1914 = vpop.permute.xlu0 %1913
  %v1916 = vmul.f32 %v1880, %v1914
  %v1917 = vtanh.pop %v1910
  %1919 = vrot.lane.b32.xlu0 %v1917, 64
  %v1920 = vpop.permute.xlu0 %1919
  %v1922 = vmul.f32 %v1887, %v1920
  %1924 = vrot.lane.b32.xlu0 %v1916, 32
  %v1925 = vpop.permute.xlu0 %1924
  %1928 = vrot.lane.b32.xlu0 %v1922, 64
  %v1929 = vpop.permute.xlu0 %1928
  %v1931 = vsel %vm62, %v1925, %v1929
  %1933 = vrot.lane.b32.xlu0 %v1899, 96
  %v1934 = vpop.permute.xlu0 %1933
  %v1936 = vsel %vm62, %v1934, %v1910
  %v1938 = vsel %vm232, %v1931, 0
  %1940 = vmatprep.subr.mxu0 %v1783
  %1941 = vmatpush1.msra.mxu0 %v1782
  %1942 = vmatprep.subr.mxu0 %v1785
  %1943 = vmatpush1.msra.mxu0 %v1784
  %1944 = vmatprep.subr.mxu0 %v1787
  %1945 = vmatpush1.msra.mxu0 %v1786
  %1946 = vmatprep.subr.mxu0 %v1789
  %1947 = vmatpush1.msra.mxu0 %v1788
  %1948 = vmatprep.subr.mxu0 %v1791
  %1949 = vmatpush1.msra.mxu0 %v1790
  %1950 = vmatprep.subr.mxu0 %v1793
  %1951 = vmatpush1.msra.mxu0 %v1792
  %1952 = vmatprep.subr.mxu0 %v1795
  %1953 = vmatpush1.msra.mxu0 %v1794
  %1954 = vmatprep.subr.mxu0 %v1797
  %1955 = vmatpush1.msra.mxu0 %v1796
  %1956 = vmatprep.subr.mxu0 0.0
  %1957 = vmatpush1.msra.mxu0 0.0
  %1958 = vmatprep.subr.mxu0 0.0
  %1959 = vmatpush1.msra.mxu0 0.0
  %1960 = vmatprep.subr.mxu0 0.0
  %1961 = vmatpush1.msra.mxu0 0.0
  %1962 = vmatprep.subr.mxu0 0.0
  %1963 = vmatpush1.msra.mxu0 0.0
  %1964 = vmatprep.subr.mxu0 0.0
  %1965 = vmatpush1.msra.mxu0 0.0
  %1966 = vmatprep.subr.mxu0 0.0
  %1967 = vmatpush1.msra.mxu0 0.0
  %1968 = vmatprep.subr.mxu0 0.0
  %1969 = vmatpush1.msra.mxu0 0.0
  %1970 = vmatprep.subr.mxu0 0.0
  %1971 = vmatpush1.msra.mxu0 0.0
  %1972 = vmatprep.subr.mxu0 0.0
  %1973 = vmatpush1.msra.mxu0 0.0
  %1974 = vmatprep.subr.mxu0 0.0
  %1975 = vmatpush1.msra.mxu0 0.0
  %1976 = vmatprep.subr.mxu0 0.0
  %1977 = vmatpush1.msra.mxu0 0.0
  %1978 = vmatprep.subr.mxu0 0.0
  %1979 = vmatpush1.msra.mxu0 0.0
  %1980 = vmatprep.subr.mxu0 0.0
  %1981 = vmatpush1.msra.mxu0 0.0
  %1982 = vmatprep.subr.mxu0 0.0
  %1983 = vmatpush1.msra.mxu0 0.0
  %1984 = vmatprep.subr.mxu0 0.0
  %1985 = vmatpush1.msra.mxu0 0.0
  %1986 = vmatprep.subr.mxu0 0.0
  %1987 = vmatpush1.msra.mxu0 0.0
  %1988 = vmatprep.subr.mxu0 0.0
  %1989 = vmatpush1.msra.mxu0 0.0
  %1990 = vmatprep.subr.mxu0 0.0
  %1991 = vmatpush1.msra.mxu0 0.0
  %1992 = vmatprep.subr.mxu0 0.0
  %1993 = vmatpush1.msra.mxu0 0.0
  %1994 = vmatprep.subr.mxu0 0.0
  %1995 = vmatpush1.msra.mxu0 0.0
  %1996 = vmatprep.subr.mxu0 0.0
  %1997 = vmatpush1.msra.mxu0 0.0
  %1998 = vmatprep.subr.mxu0 0.0
  %1999 = vmatpush1.msra.mxu0 0.0
  %2000 = vmatprep.subr.mxu0 0.0
  %2001 = vmatpush1.msra.mxu0 0.0
  %2002 = vmatprep.subr.mxu0 0.0
  %2003 = vmatpush1.msra.mxu0 0.0
  %2004 = vmatprep.mubr.f32.mxu0 0.0
  %2005 = vmatmul.mubr.f32.gmra.mrb[0].mxu0 %v1938
  %v2006 = vpop.f32.mrb[0].mxu0
  %v2007 = vadd.f32 0.0, %v2006
  %v2008 = vpop.f32.mrb[0].mxu0
  %v2009 = vadd.f32 0.0, %v2008
  %2010 = vdwg.mxu0
  %v2011 = vld [vmem:[%s470] sm:$0xff]
  %v2012 = vld [vmem:[%s470 + $0x8] sm:$0xff]
  %v2013 = vld [vmem:[%s472] sm:$0xff]
  %v2014 = vld [vmem:[%s472 + $0x8] sm:$0xff]
  %v2015 = vadd.f32 %v2007, %v2011
  %v2016 = vadd.f32 %v2009, %v2014
  %v2017 = vxor.u32 %v2015, 2147483648
  %v2018 = vmul.f32 %v2017, 1.442695
  %v2019 = vpow.pop %v2018
  %v2020 = vadd.f32 %v2019, 1.0
  %v2021 = vrcp.pop %v2020
  %v2022 = vmul.f32 1.0, %v2021
  %v2023 = vtanh.pop %v2015
  %v2024 = vxor.u32 %v2016, 2147483648
  %v2025 = vmul.f32 %v2024, 1.442695
  %v2026 = vpow.pop %v2025
  %v2027 = vadd.f32 %v2026, 1.0
  %v2028 = vrcp.pop %v2027
  %v2029 = vmul.f32 1.0, %v2028
  %v2030 = vtanh.pop %v2016
  %2032 = vrot.lane.b32.xlu0 %v1936, 32
  %v2033 = vpop.permute.xlu0 %2032
  %v2035 = vmul.f32 %v2022, %v2033
  %2037 = vrot.lane.b32.xlu0 %v2023, 64
  %v2038 = vpop.permute.xlu0 %2037
  %v2040 = vmul.f32 %v2022, %v2038
  %2042 = vrot.lane.b32.xlu0 %v2040, 32
  %v2043 = vpop.permute.xlu0 %2042
  %v2045 = vadd.f32 %v2035, %v2043
  %v2046 = vmul.f32 %v2029, %v1936
  %2048 = vrot.lane.b32.xlu0 %v2030, 64
  %v2049 = vpop.permute.xlu0 %2048
  %v2051 = vmul.f32 %v2029, %v2049
  %2053 = vrot.lane.b32.xlu0 %v2051, 32
  %v2054 = vpop.permute.xlu0 %2053
  %v2056 = vadd.f32 %v2046, %v2054
  %v2057 = vtanh.pop %v2045
  %2059 = vrot.lane.b32.xlu0 %v2057, 64
  %v2060 = vpop.permute.xlu0 %2059
  %v2062 = vmul.f32 %v2022, %v2060
  %v2063 = vtanh.pop %v2056
  %2065 = vrot.lane.b32.xlu0 %v2063, 64
  %v2066 = vpop.permute.xlu0 %2065
  %v2068 = vmul.f32 %v2029, %v2066
  %2070 = vrot.lane.b32.xlu0 %v2062, 32
  %v2071 = vpop.permute.xlu0 %2070
  %2074 = vrot.lane.b32.xlu0 %v2068, 64
  %v2075 = vpop.permute.xlu0 %2074
  %v2077 = vsel %vm62, %v2071, %v2075
  %2079 = vrot.lane.b32.xlu0 %v2045, 96
  %v2080 = vpop.permute.xlu0 %2079
  %v2082 = vsel %vm62, %v2080, %v2056
  %v2084 = vsel %vm232, %v2077, 0
  %2086 = vmatprep.subr.mxu0 %v1783
  %2087 = vmatpush1.msra.mxu0 %v1782
  %2088 = vmatprep.subr.mxu0 %v1785
  %2089 = vmatpush1.msra.mxu0 %v1784
  %2090 = vmatprep.subr.mxu0 %v1787
  %2091 = vmatpush1.msra.mxu0 %v1786
  %2092 = vmatprep.subr.mxu0 %v1789
  %2093 = vmatpush1.msra.mxu0 %v1788
  %2094 = vmatprep.subr.mxu0 %v1791
  %2095 = vmatpush1.msra.mxu0 %v1790
  %2096 = vmatprep.subr.mxu0 %v1793
  %2097 = vmatpush1.msra.mxu0 %v1792
  %2098 = vmatprep.subr.mxu0 %v1795
  %2099 = vmatpush1.msra.mxu0 %v1794
  %2100 = vmatprep.subr.mxu0 %v1797
  %2101 = vmatpush1.msra.mxu0 %v1796
  %2102 = vmatprep.subr.mxu0 0.0
  %2103 = vmatpush1.msra.mxu0 0.0
  %2104 = vmatprep.subr.mxu0 0.0
  %2105 = vmatpush1.msra.mxu0 0.0
  %2106 = vmatprep.subr.mxu0 0.0
  %2107 = vmatpush1.msra.mxu0 0.0
  %2108 = vmatprep.subr.mxu0 0.0
  %2109 = vmatpush1.msra.mxu0 0.0
  %2110 = vmatprep.subr.mxu0 0.0
  %2111 = vmatpush1.msra.mxu0 0.0
  %2112 = vmatprep.subr.mxu0 0.0
  %2113 = vmatpush1.msra.mxu0 0.0
  %2114 = vmatprep.subr.mxu0 0.0
  %2115 = vmatpush1.msra.mxu0 0.0
  %2116 = vmatprep.subr.mxu0 0.0
  %2117 = vmatpush1.msra.mxu0 0.0
  %2118 = vmatprep.subr.mxu0 0.0
  %2119 = vmatpush1.msra.mxu0 0.0
  %2120 = vmatprep.subr.mxu0 0.0
  %2121 = vmatpush1.msra.mxu0 0.0
  %2122 = vmatprep.subr.mxu0 0.0
  %2123 = vmatpush1.msra.mxu0 0.0
  %2124 = vmatprep.subr.mxu0 0.0
  %2125 = vmatpush1.msra.mxu0 0.0
  %2126 = vmatprep.subr.mxu0 0.0
  %2127 = vmatpush1.msra.mxu0 0.0
  %2128 = vmatprep.subr.mxu0 0.0
  %2129 = vmatpush1.msra.mxu0 0.0
  %2130 = vmatprep.subr.mxu0 0.0
  %2131 = vmatpush1.msra.mxu0 0.0
  %2132 = vmatprep.subr.mxu0 0.0
  %2133 = vmatpush1.msra.mxu0 0.0
  %2134 = vmatprep.subr.mxu0 0.0
  %2135 = vmatpush1.msra.mxu0 0.0
  %2136 = vmatprep.subr.mxu0 0.0
  %2137 = vmatpush1.msra.mxu0 0.0
  %2138 = vmatprep.subr.mxu0 0.0
  %2139 = vmatpush1.msra.mxu0 0.0
  %2140 = vmatprep.subr.mxu0 0.0
  %2141 = vmatpush1.msra.mxu0 0.0
  %2142 = vmatprep.subr.mxu0 0.0
  %2143 = vmatpush1.msra.mxu0 0.0
  %2144 = vmatprep.subr.mxu0 0.0
  %2145 = vmatpush1.msra.mxu0 0.0
  %2146 = vmatprep.subr.mxu0 0.0
  %2147 = vmatpush1.msra.mxu0 0.0
  %2148 = vmatprep.subr.mxu0 0.0
  %2149 = vmatpush1.msra.mxu0 0.0
  %2150 = vmatprep.mubr.f32.mxu0 0.0
  %2151 = vmatmul.mubr.f32.gmra.mrb[0].mxu0 %v2084
  %v2152 = vpop.f32.mrb[0].mxu0
  %v2153 = vadd.f32 0.0, %v2152
  %v2154 = vpop.f32.mrb[0].mxu0
  %v2155 = vadd.f32 0.0, %v2154
  %2156 = vdwg.mxu0
  %v2157 = vld [vmem:[%s639] sm:$0xff]
  %v2158 = vld [vmem:[%s639 + $0x8] sm:$0xff]
  %v2159 = vld [vmem:[%s641] sm:$0xff]
  %v2160 = vld [vmem:[%s641 + $0x8] sm:$0xff]
  %v2161 = vadd.f32 %v2153, %v2157
  %v2162 = vadd.f32 %v2155, %v2160
  %v2163 = vxor.u32 %v2161, 2147483648
  %v2164 = vmul.f32 %v2163, 1.442695
  %v2165 = vpow.pop %v2164
  %v2166 = vadd.f32 %v2165, 1.0
  %v2167 = vrcp.pop %v2166
  %v2168 = vmul.f32 1.0, %v2167
  %v2169 = vtanh.pop %v2161
  %v2170 = vxor.u32 %v2162, 2147483648
  %v2171 = vmul.f32 %v2170, 1.442695
  %v2172 = vpow.pop %v2171
  %v2173 = vadd.f32 %v2172, 1.0
  %v2174 = vrcp.pop %v2173
  %v2175 = vmul.f32 1.0, %v2174
  %v2176 = vtanh.pop %v2162
  %2178 = vrot.lane.b32.xlu0 %v2082, 32
  %v2179 = vpop.permute.xlu0 %2178
  %v2181 = vmul.f32 %v2168, %v2179
  %2183 = vrot.lane.b32.xlu0 %v2169, 64
  %v2184 = vpop.permute.xlu0 %2183
  %v2186 = vmul.f32 %v2168, %v2184
  %2188 = vrot.lane.b32.xlu0 %v2186, 32
  %v2189 = vpop.permute.xlu0 %2188
  %v2191 = vadd.f32 %v2181, %v2189
  %v2192 = vmul.f32 %v2175, %v2082
  %2194 = vrot.lane.b32.xlu0 %v2176, 64
  %v2195 = vpop.permute.xlu0 %2194
  %v2197 = vmul.f32 %v2175, %v2195
  %2199 = vrot.lane.b32.xlu0 %v2197, 32
  %v2200 = vpop.permute.xlu0 %2199
  %v2202 = vadd.f32 %v2192, %v2200
  %v2203 = vtanh.pop %v2191
  %2205 = vrot.lane.b32.xlu0 %v2203, 64
  %v2206 = vpop.permute.xlu0 %2205
  %v2208 = vmul.f32 %v2168, %v2206
  %v2209 = vtanh.pop %v2202
  %2211 = vrot.lane.b32.xlu0 %v2209, 64
  %v2212 = vpop.permute.xlu0 %2211
  %v2214 = vmul.f32 %v2175, %v2212
  %2216 = vrot.lane.b32.xlu0 %v2208, 32
  %v2217 = vpop.permute.xlu0 %2216
  %2220 = vrot.lane.b32.xlu0 %v2214, 64
  %v2221 = vpop.permute.xlu0 %2220
  %v2223 = vsel %vm62, %v2217, %v2221
  %2225 = vrot.lane.b32.xlu0 %v2191, 96
  %v2226 = vpop.permute.xlu0 %2225
  %v2228 = vsel %vm62, %v2226, %v2202
  %v2230 = vsel %vm232, %v2223, 0
  %2232 = vmatprep.subr.mxu0 %v1783
  %2233 = vmatpush1.msra.mxu0 %v1782
  %2234 = vmatprep.subr.mxu0 %v1785
  %2235 = vmatpush1.msra.mxu0 %v1784
  %2236 = vmatprep.subr.mxu0 %v1787
  %2237 = vmatpush1.msra.mxu0 %v1786
  %2238 = vmatprep.subr.mxu0 %v1789
  %2239 = vmatpush1.msra.mxu0 %v1788
  %2240 = vmatprep.subr.mxu0 %v1791
  %2241 = vmatpush1.msra.mxu0 %v1790
  %2242 = vmatprep.subr.mxu0 %v1793
  %2243 = vmatpush1.msra.mxu0 %v1792
  %2244 = vmatprep.subr.mxu0 %v1795
  %2245 = vmatpush1.msra.mxu0 %v1794
  %2246 = vmatprep.subr.mxu0 %v1797
  %2247 = vmatpush1.msra.mxu0 %v1796
  %2248 = vmatprep.subr.mxu0 0.0
  %2249 = vmatpush1.msra.mxu0 0.0
  %2250 = vmatprep.subr.mxu0 0.0
  %2251 = vmatpush1.msra.mxu0 0.0
  %2252 = vmatprep.subr.mxu0 0.0
  %2253 = vmatpush1.msra.mxu0 0.0
  %2254 = vmatprep.subr.mxu0 0.0
  %2255 = vmatpush1.msra.mxu0 0.0
  %2256 = vmatprep.subr.mxu0 0.0
  %2257 = vmatpush1.msra.mxu0 0.0
  %2258 = vmatprep.subr.mxu0 0.0
  %2259 = vmatpush1.msra.mxu0 0.0
  %2260 = vmatprep.subr.mxu0 0.0
  %2261 = vmatpush1.msra.mxu0 0.0
  %2262 = vmatprep.subr.mxu0 0.0
  %2263 = vmatpush1.msra.mxu0 0.0
  %2264 = vmatprep.subr.mxu0 0.0
  %2265 = vmatpush1.msra.mxu0 0.0
  %2266 = vmatprep.subr.mxu0 0.0
  %2267 = vmatpush1.msra.mxu0 0.0
  %2268 = vmatprep.subr.mxu0 0.0
  %2269 = vmatpush1.msra.mxu0 0.0
  %2270 = vmatprep.subr.mxu0 0.0
  %2271 = vmatpush1.msra.mxu0 0.0
  %2272 = vmatprep.subr.mxu0 0.0
  %2273 = vmatpush1.msra.mxu0 0.0
  %2274 = vmatprep.subr.mxu0 0.0
  %2275 = vmatpush1.msra.mxu0 0.0
  %2276 = vmatprep.subr.mxu0 0.0
  %2277 = vmatpush1.msra.mxu0 0.0
  %2278 = vmatprep.subr.mxu0 0.0
  %2279 = vmatpush1.msra.mxu0 0.0
  %2280 = vmatprep.subr.mxu0 0.0
  %2281 = vmatpush1.msra.mxu0 0.0
  %2282 = vmatprep.subr.mxu0 0.0
  %2283 = vmatpush1.msra.mxu0 0.0
  %2284 = vmatprep.subr.mxu0 0.0
  %2285 = vmatpush1.msra.mxu0 0.0
  %2286 = vmatprep.subr.mxu0 0.0
  %2287 = vmatpush1.msra.mxu0 0.0
  %2288 = vmatprep.subr.mxu0 0.0
  %2289 = vmatpush1.msra.mxu0 0.0
  %2290 = vmatprep.subr.mxu0 0.0
  %2291 = vmatpush1.msra.mxu0 0.0
  %2292 = vmatprep.subr.mxu0 0.0
  %2293 = vmatpush1.msra.mxu0 0.0
  %2294 = vmatprep.subr.mxu0 0.0
  %2295 = vmatpush1.msra.mxu0 0.0
  %2296 = vmatprep.mubr.f32.mxu0 0.0
  %2297 = vmatmul.mubr.f32.gmra.mrb[0].mxu0 %v2230
  %v2298 = vpop.f32.mrb[0].mxu0
  %v2299 = vadd.f32 0.0, %v2298
  %v2300 = vpop.f32.mrb[0].mxu0
  %v2301 = vadd.f32 0.0, %v2300
  %2302 = vdwg.mxu0
  %v2303 = vld [vmem:[%s808] sm:$0xff]
  %v2304 = vld [vmem:[%s808 + $0x8] sm:$0xff]
  %v2305 = vld [vmem:[%s810] sm:$0xff]
  %v2306 = vld [vmem:[%s810 + $0x8] sm:$0xff]
  %v2307 = vadd.f32 %v2299, %v2303
  %v2308 = vadd.f32 %v2301, %v2306
  %v2309 = vxor.u32 %v2307, 2147483648
  %v2310 = vmul.f32 %v2309, 1.442695
  %v2311 = vpow.pop %v2310
  %v2312 = vadd.f32 %v2311, 1.0
  %v2313 = vrcp.pop %v2312
  %v2314 = vmul.f32 1.0, %v2313
  %v2315 = vtanh.pop %v2307
  %v2316 = vxor.u32 %v2308, 2147483648
  %v2317 = vmul.f32 %v2316, 1.442695
  %v2318 = vpow.pop %v2317
  %v2319 = vadd.f32 %v2318, 1.0
  %v2320 = vrcp.pop %v2319
  %v2321 = vmul.f32 1.0, %v2320
  %v2322 = vtanh.pop %v2308
  %2324 = vrot.lane.b32.xlu0 %v2228, 32
  %v2325 = vpop.permute.xlu0 %2324
  %v2327 = vmul.f32 %v2314, %v2325
  %2329 = vrot.lane.b32.xlu0 %v2315, 64
  %v2330 = vpop.permute.xlu0 %2329
  %v2332 = vmul.f32 %v2314, %v2330
  %2334 = vrot.lane.b32.xlu0 %v2332, 32
  %v2335 = vpop.permute.xlu0 %2334
  %v2337 = vadd.f32 %v2327, %v2335
  %v2338 = vmul.f32 %v2321, %v2228
  %2340 = vrot.lane.b32.xlu0 %v2322, 64
  %v2341 = vpop.permute.xlu0 %2340
  %v2343 = vmul.f32 %v2321, %v2341
  %2345 = vrot.lane.b32.xlu0 %v2343, 32
  %v2346 = vpop.permute.xlu0 %2345
  %v2348 = vadd.f32 %v2338, %v2346
  %v2349 = vtanh.pop %v2337
  %2351 = vrot.lane.b32.xlu0 %v2349, 64
  %v2352 = vpop.permute.xlu0 %2351
  %v2354 = vmul.f32 %v2314, %v2352
  %v2355 = vtanh.pop %v2348
  %2357 = vrot.lane.b32.xlu0 %v2355, 64
  %v2358 = vpop.permute.xlu0 %2357
  %v2360 = vmul.f32 %v2321, %v2358
  %2362 = vrot.lane.b32.xlu0 %v2354, 32
  %v2363 = vpop.permute.xlu0 %2362
  %2366 = vrot.lane.b32.xlu0 %v2360, 64
  %v2367 = vpop.permute.xlu0 %2366
  %v2369 = vsel %vm62, %v2363, %v2367
  %2371 = vrot.lane.b32.xlu0 %v2337, 96
  %v2372 = vpop.permute.xlu0 %2371
  %v2374 = vsel %vm62, %v2372, %v2348
  %v2376 = vsel %vm232, %v2369, 0
  %2378 = vmatprep.subr.mxu0 %v1783
  %2379 = vmatpush1.msra.mxu0 %v1782
  %2380 = vmatprep.subr.mxu0 %v1785
  %2381 = vmatpush1.msra.mxu0 %v1784
  %2382 = vmatprep.subr.mxu0 %v1787
  %2383 = vmatpush1.msra.mxu0 %v1786
  %2384 = vmatprep.subr.mxu0 %v1789
  %2385 = vmatpush1.msra.mxu0 %v1788
  %2386 = vmatprep.subr.mxu0 %v1791
  %2387 = vmatpush1.msra.mxu0 %v1790
  %2388 = vmatprep.subr.mxu0 %v1793
  %2389 = vmatpush1.msra.mxu0 %v1792
  %2390 = vmatprep.subr.mxu0 %v1795
  %2391 = vmatpush1.msra.mxu0 %v1794
  %2392 = vmatprep.subr.mxu0 %v1797
  %2393 = vmatpush1.msra.mxu0 %v1796
  %2394 = vmatprep.subr.mxu0 0.0
  %2395 = vmatpush1.msra.mxu0 0.0
  %2396 = vmatprep.subr.mxu0 0.0
  %2397 = vmatpush1.msra.mxu0 0.0
  %2398 = vmatprep.subr.mxu0 0.0
  %2399 = vmatpush1.msra.mxu0 0.0
  %2400 = vmatprep.subr.mxu0 0.0
  %2401 = vmatpush1.msra.mxu0 0.0
  %2402 = vmatprep.subr.mxu0 0.0
  %2403 = vmatpush1.msra.mxu0 0.0
  %2404 = vmatprep.subr.mxu0 0.0
  %2405 = vmatpush1.msra.mxu0 0.0
  %2406 = vmatprep.subr.mxu0 0.0
  %2407 = vmatpush1.msra.mxu0 0.0
  %2408 = vmatprep.subr.mxu0 0.0
  %2409 = vmatpush1.msra.mxu0 0.0
  %2410 = vmatprep.subr.mxu0 0.0
  %2411 = vmatpush1.msra.mxu0 0.0
  %2412 = vmatprep.subr.mxu0 0.0
  %2413 = vmatpush1.msra.mxu0 0.0
  %2414 = vmatprep.subr.mxu0 0.0
  %2415 = vmatpush1.msra.mxu0 0.0
  %2416 = vmatprep.subr.mxu0 0.0
  %2417 = vmatpush1.msra.mxu0 0.0
  %2418 = vmatprep.subr.mxu0 0.0
  %2419 = vmatpush1.msra.mxu0 0.0
  %2420 = vmatprep.subr.mxu0 0.0
  %2421 = vmatpush1.msra.mxu0 0.0
  %2422 = vmatprep.subr.mxu0 0.0
  %2423 = vmatpush1.msra.mxu0 0.0
  %2424 = vmatprep.subr.mxu0 0.0
  %2425 = vmatpush1.msra.mxu0 0.0
  %2426 = vmatprep.subr.mxu0 0.0
  %2427 = vmatpush1.msra.mxu0 0.0
  %2428 = vmatprep.subr.mxu0 0.0
  %2429 = vmatpush1.msra.mxu0 0.0
  %2430 = vmatprep.subr.mxu0 0.0
  %2431 = vmatpush1.msra.mxu0 0.0
  %2432 = vmatprep.subr.mxu0 0.0
  %2433 = vmatpush1.msra.mxu0 0.0
  %2434 = vmatprep.subr.mxu0 0.0
  %2435 = vmatpush1.msra.mxu0 0.0
  %2436 = vmatprep.subr.mxu0 0.0
  %2437 = vmatpush1.msra.mxu0 0.0
  %2438 = vmatprep.subr.mxu0 0.0
  %2439 = vmatpush1.msra.mxu0 0.0
  %2440 = vmatprep.subr.mxu0 0.0
  %2441 = vmatpush1.msra.mxu0 0.0
  %2442 = vmatprep.mubr.f32.mxu0 0.0
  %2443 = vmatmul.mubr.f32.gmra.mrb[0].mxu0 %v2376
  %v2444 = vpop.f32.mrb[0].mxu0
  %v2445 = vadd.f32 0.0, %v2444
  %v2446 = vpop.f32.mrb[0].mxu0
  %v2447 = vadd.f32 0.0, %v2446
  %2448 = vdwg.mxu0
  %v2449 = vadd.f32 %v2445, %v2305
  %v2450 = vadd.f32 %v2447, %v2304
  %v2451 = vxor.u32 %v2449, 2147483648
  %v2452 = vmul.f32 %v2451, 1.442695
  %v2453 = vpow.pop %v2452
  %v2454 = vadd.f32 %v2453, 1.0
  %v2455 = vrcp.pop %v2454
  %v2456 = vmul.f32 1.0, %v2455
  %v2457 = vtanh.pop %v2449
  %v2458 = vxor.u32 %v2450, 2147483648
  %v2459 = vmul.f32 %v2458, 1.442695
  %v2460 = vpow.pop %v2459
  %v2461 = vadd.f32 %v2460, 1.0
  %v2462 = vrcp.pop %v2461
  %v2463 = vmul.f32 1.0, %v2462
  %v2464 = vtanh.pop %v2450
  %2466 = vrot.lane.b32.xlu0 %v2374, 32
  %v2467 = vpop.permute.xlu0 %2466
  %v2469 = vmul.f32 %v2456, %v2467
  %2471 = vrot.lane.b32.xlu0 %v2457, 64
  %v2472 = vpop.permute.xlu0 %2471
  %v2474 = vmul.f32 %v2456, %v2472
  %2476 = vrot.lane.b32.xlu0 %v2474, 32
  %v2477 = vpop.permute.xlu0 %2476
  %v2479 = vadd.f32 %v2469, %v2477
  %v2480 = vmul.f32 %v2463, %v2374
  %2482 = vrot.lane.b32.xlu0 %v2464, 64
  %v2483 = vpop.permute.xlu0 %2482
  %v2485 = vmul.f32 %v2463, %v2483
  %2487 = vrot.lane.b32.xlu0 %v2485, 32
  %v2488 = vpop.permute.xlu0 %2487
  %v2490 = vadd.f32 %v2480, %v2488
  %v2491 = vtanh.pop %v2479
  %2493 = vrot.lane.b32.xlu0 %v2491, 64
  %v2494 = vpop.permute.xlu0 %2493
  %v2496 = vmul.f32 %v2456, %v2494
  %v2497 = vtanh.pop %v2490
  %2499 = vrot.lane.b32.xlu0 %v2497, 64
  %v2500 = vpop.permute.xlu0 %2499
  %v2502 = vmul.f32 %v2463, %v2500
  %2504 = vrot.lane.b32.xlu0 %v2496, 32
  %v2505 = vpop.permute.xlu0 %2504
  %2508 = vrot.lane.b32.xlu0 %v2502, 64
  %v2509 = vpop.permute.xlu0 %2508
  %v2511 = vsel %vm62, %v2505, %v2509
  %2513 = vrot.lane.b32.xlu0 %v2479, 96
  %v2514 = vpop.permute.xlu0 %2513
  %v2516 = vsel %vm62, %v2514, %v2490
  %v2518 = vsel %vm232, %v2511, 0
  %2520 = vmatprep.subr.mxu0 %v1783
  %2521 = vmatpush1.msra.mxu0 %v1782
  %2522 = vmatprep.subr.mxu0 %v1785
  %2523 = vmatpush1.msra.mxu0 %v1784
  %2524 = vmatprep.subr.mxu0 %v1787
  %2525 = vmatpush1.msra.mxu0 %v1786
  %2526 = vmatprep.subr.mxu0 %v1789
  %2527 = vmatpush1.msra.mxu0 %v1788
  %2528 = vmatprep.subr.mxu0 %v1791
  %2529 = vmatpush1.msra.mxu0 %v1790
  %2530 = vmatprep.subr.mxu0 %v1793
  %2531 = vmatpush1.msra.mxu0 %v1792
  %2532 = vmatprep.subr.mxu0 %v1795
  %2533 = vmatpush1.msra.mxu0 %v1794
  %2534 = vmatprep.subr.mxu0 %v1797
  %2535 = vmatpush1.msra.mxu0 %v1796
  %2536 = vmatprep.subr.mxu0 0.0
  %2537 = vmatpush1.msra.mxu0 0.0
  %2538 = vmatprep.subr.mxu0 0.0
  %2539 = vmatpush1.msra.mxu0 0.0
  %2540 = vmatprep.subr.mxu0 0.0
  %2541 = vmatpush1.msra.mxu0 0.0
  %2542 = vmatprep.subr.mxu0 0.0
  %2543 = vmatpush1.msra.mxu0 0.0
  %2544 = vmatprep.subr.mxu0 0.0
  %2545 = vmatpush1.msra.mxu0 0.0
  %2546 = vmatprep.subr.mxu0 0.0
  %2547 = vmatpush1.msra.mxu0 0.0
  %2548 = vmatprep.subr.mxu0 0.0
  %2549 = vmatpush1.msra.mxu0 0.0
  %2550 = vmatprep.subr.mxu0 0.0
  %2551 = vmatpush1.msra.mxu0 0.0
  %2552 = vmatprep.subr.mxu0 0.0
  %2553 = vmatpush1.msra.mxu0 0.0
  %2554 = vmatprep.subr.mxu0 0.0
  %2555 = vmatpush1.msra.mxu0 0.0
  %2556 = vmatprep.subr.mxu0 0.0
  %2557 = vmatpush1.msra.mxu0 0.0
  %2558 = vmatprep.subr.mxu0 0.0
  %2559 = vmatpush1.msra.mxu0 0.0
  %2560 = vmatprep.subr.mxu0 0.0
  %2561 = vmatpush1.msra.mxu0 0.0
  %2562 = vmatprep.subr.mxu0 0.0
  %2563 = vmatpush1.msra.mxu0 0.0
  %2564 = vmatprep.subr.mxu0 0.0
  %2565 = vmatpush1.msra.mxu0 0.0
  %2566 = vmatprep.subr.mxu0 0.0
  %2567 = vmatpush1.msra.mxu0 0.0
  %2568 = vmatprep.subr.mxu0 0.0
  %2569 = vmatpush1.msra.mxu0 0.0
  %2570 = vmatprep.subr.mxu0 0.0
  %2571 = vmatpush1.msra.mxu0 0.0
  %2572 = vmatprep.subr.mxu0 0.0
  %2573 = vmatpush1.msra.mxu0 0.0
  %2574 = vmatprep.subr.mxu0 0.0
  %2575 = vmatpush1.msra.mxu0 0.0
  %2576 = vmatprep.subr.mxu0 0.0
  %2577 = vmatpush1.msra.mxu0 0.0
  %2578 = vmatprep.subr.mxu0 0.0
  %2579 = vmatpush1.msra.mxu0 0.0
  %2580 = vmatprep.subr.mxu0 0.0
  %2581 = vmatpush1.msra.mxu0 0.0
  %2582 = vmatprep.subr.mxu0 0.0
  %2583 = vmatpush1.msra.mxu0 0.0
  %2584 = vmatprep.mubr.f32.mxu0 0.0
  %2585 = vmatmul.mubr.f32.gmra.mrb[0].mxu0 %v2518
  %v2586 = vpop.f32.mrb[0].mxu0
  %v2587 = vadd.f32 0.0, %v2586
  %v2588 = vpop.f32.mrb[0].mxu0
  %v2589 = vadd.f32 0.0, %v2588
  %2590 = vdwg.mxu0
  %v2591 = vadd.f32 %v2587, %v2159
  %v2592 = vadd.f32 %v2589, %v2158
  %v2593 = vxor.u32 %v2591, 2147483648
  %v2594 = vmul.f32 %v2593, 1.442695
  %v2595 = vpow.pop %v2594
  %v2596 = vadd.f32 %v2595, 1.0
  %v2597 = vrcp.pop %v2596
  %v2598 = vmul.f32 1.0, %v2597
  %v2599 = vtanh.pop %v2591
  %v2600 = vxor.u32 %v2592, 2147483648
  %v2601 = vmul.f32 %v2600, 1.442695
  %v2602 = vpow.pop %v2601
  %v2603 = vadd.f32 %v2602, 1.0
  %v2604 = vrcp.pop %v2603
  %v2605 = vmul.f32 1.0, %v2604
  %v2606 = vtanh.pop %v2592
  %2608 = vrot.lane.b32.xlu0 %v2516, 32
  %v2609 = vpop.permute.xlu0 %2608
  %v2611 = vmul.f32 %v2598, %v2609
  %2613 = vrot.lane.b32.xlu0 %v2599, 64
  %v2614 = vpop.permute.xlu0 %2613
  %v2616 = vmul.f32 %v2598, %v2614
  %2618 = vrot.lane.b32.xlu0 %v2616, 32
  %v2619 = vpop.permute.xlu0 %2618
  %v2621 = vadd.f32 %v2611, %v2619
  %v2622 = vmul.f32 %v2605, %v2516
  %2624 = vrot.lane.b32.xlu0 %v2606, 64
  %v2625 = vpop.permute.xlu0 %2624
  %v2627 = vmul.f32 %v2605, %v2625
  %2629 = vrot.lane.b32.xlu0 %v2627, 32
  %v2630 = vpop.permute.xlu0 %2629
  %v2632 = vadd.f32 %v2622, %v2630
  %v2633 = vtanh.pop %v2621
  %2635 = vrot.lane.b32.xlu0 %v2633, 64
  %v2636 = vpop.permute.xlu0 %2635
  %v2638 = vmul.f32 %v2598, %v2636
  %v2639 = vtanh.pop %v2632
  %2641 = vrot.lane.b32.xlu0 %v2639, 64
  %v2642 = vpop.permute.xlu0 %2641
  %v2644 = vmul.f32 %v2605, %v2642
  %2646 = vrot.lane.b32.xlu0 %v2638, 32
  %v2647 = vpop.permute.xlu0 %2646
  %2650 = vrot.lane.b32.xlu0 %v2644, 64
  %v2651 = vpop.permute.xlu0 %2650
  %v2653 = vsel %vm62, %v2647, %v2651
  %2655 = vrot.lane.b32.xlu0 %v2621, 96
  %v2656 = vpop.permute.xlu0 %2655
  %v2658 = vsel %vm62, %v2656, %v2632
  %v2660 = vsel %vm232, %v2653, 0
  %2662 = vmatprep.subr.mxu0 %v1783
  %2663 = vmatpush1.msra.mxu0 %v1782
  %2664 = vmatprep.subr.mxu0 %v1785
  %2665 = vmatpush1.msra.mxu0 %v1784
  %2666 = vmatprep.subr.mxu0 %v1787
  %2667 = vmatpush1.msra.mxu0 %v1786
  %2668 = vmatprep.subr.mxu0 %v1789
  %2669 = vmatpush1.msra.mxu0 %v1788
  %2670 = vmatprep.subr.mxu0 %v1791
  %2671 = vmatpush1.msra.mxu0 %v1790
  %2672 = vmatprep.subr.mxu0 %v1793
  %2673 = vmatpush1.msra.mxu0 %v1792
  %2674 = vmatprep.subr.mxu0 %v1795
  %2675 = vmatpush1.msra.mxu0 %v1794
  %2676 = vmatprep.subr.mxu0 %v1797
  %2677 = vmatpush1.msra.mxu0 %v1796
  %2678 = vmatprep.subr.mxu0 0.0
  %2679 = vmatpush1.msra.mxu0 0.0
  %2680 = vmatprep.subr.mxu0 0.0
  %2681 = vmatpush1.msra.mxu0 0.0
  %2682 = vmatprep.subr.mxu0 0.0
  %2683 = vmatpush1.msra.mxu0 0.0
  %2684 = vmatprep.subr.mxu0 0.0
  %2685 = vmatpush1.msra.mxu0 0.0
  %2686 = vmatprep.subr.mxu0 0.0
  %2687 = vmatpush1.msra.mxu0 0.0
  %2688 = vmatprep.subr.mxu0 0.0
  %2689 = vmatpush1.msra.mxu0 0.0
  %2690 = vmatprep.subr.mxu0 0.0
  %2691 = vmatpush1.msra.mxu0 0.0
  %2692 = vmatprep.subr.mxu0 0.0
  %2693 = vmatpush1.msra.mxu0 0.0
  %2694 = vmatprep.subr.mxu0 0.0
  %2695 = vmatpush1.msra.mxu0 0.0
  %2696 = vmatprep.subr.mxu0 0.0
  %2697 = vmatpush1.msra.mxu0 0.0
  %2698 = vmatprep.subr.mxu0 0.0
  %2699 = vmatpush1.msra.mxu0 0.0
  %2700 = vmatprep.subr.mxu0 0.0
  %2701 = vmatpush1.msra.mxu0 0.0
  %2702 = vmatprep.subr.mxu0 0.0
  %2703 = vmatpush1.msra.mxu0 0.0
  %2704 = vmatprep.subr.mxu0 0.0
  %2705 = vmatpush1.msra.mxu0 0.0
  %2706 = vmatprep.subr.mxu0 0.0
  %2707 = vmatpush1.msra.mxu0 0.0
  %2708 = vmatprep.subr.mxu0 0.0
  %2709 = vmatpush1.msra.mxu0 0.0
  %2710 = vmatprep.subr.mxu0 0.0
  %2711 = vmatpush1.msra.mxu0 0.0
  %2712 = vmatprep.subr.mxu0 0.0
  %2713 = vmatpush1.msra.mxu0 0.0
  %2714 = vmatprep.subr.mxu0 0.0
  %2715 = vmatpush1.msra.mxu0 0.0
  %2716 = vmatprep.subr.mxu0 0.0
  %2717 = vmatpush1.msra.mxu0 0.0
  %2718 = vmatprep.subr.mxu0 0.0
  %2719 = vmatpush1.msra.mxu0 0.0
  %2720 = vmatprep.subr.mxu0 0.0
  %2721 = vmatpush1.msra.mxu0 0.0
  %2722 = vmatprep.subr.mxu0 0.0
  %2723 = vmatpush1.msra.mxu0 0.0
  %2724 = vmatprep.subr.mxu0 0.0
  %2725 = vmatpush1.msra.mxu0 0.0
  %2726 = vmatprep.mubr.f32.mxu0 0.0
  %2727 = vmatmul.mubr.f32.gmra.mrb[0].mxu0 %v2660
  %v2728 = vpop.f32.mrb[0].mxu0
  %v2729 = vadd.f32 0.0, %v2728
  %v2730 = vpop.f32.mrb[0].mxu0
  %v2731 = vadd.f32 0.0, %v2730
  %2732 = vdwg.mxu0
  %v2733 = vadd.f32 %v2729, %v2013
  %v2734 = vadd.f32 %v2731, %v2012
  %v2735 = vxor.u32 %v2733, 2147483648
  %v2736 = vmul.f32 %v2735, 1.442695
  %v2737 = vpow.pop %v2736
  %v2738 = vadd.f32 %v2737, 1.0
  %v2739 = vrcp.pop %v2738
  %v2740 = vmul.f32 1.0, %v2739
  %v2741 = vtanh.pop %v2733
  %v2742 = vxor.u32 %v2734, 2147483648
  %v2743 = vmul.f32 %v2742, 1.442695
  %v2744 = vpow.pop %v2743
  %v2745 = vadd.f32 %v2744, 1.0
  %v2746 = vrcp.pop %v2745
  %v2747 = vmul.f32 1.0, %v2746
  %v2748 = vtanh.pop %v2734
  %2750 = vrot.lane.b32.xlu0 %v2658, 32
  %v2751 = vpop.permute.xlu0 %2750
  %v2753 = vmul.f32 %v2740, %v2751
  %2755 = vrot.lane.b32.xlu0 %v2741, 64
  %v2756 = vpop.permute.xlu0 %2755
  %v2758 = vmul.f32 %v2740, %v2756
  %2760 = vrot.lane.b32.xlu0 %v2758, 32
  %v2761 = vpop.permute.xlu0 %2760
  %v2763 = vadd.f32 %v2753, %v2761
  %v2764 = vmul.f32 %v2747, %v2658
  %2766 = vrot.lane.b32.xlu0 %v2748, 64
  %v2767 = vpop.permute.xlu0 %2766
  %v2769 = vmul.f32 %v2747, %v2767
  %2771 = vrot.lane.b32.xlu0 %v2769, 32
  %v2772 = vpop.permute.xlu0 %2771
  %v2774 = vadd.f32 %v2764, %v2772
  %v2775 = vtanh.pop %v2763
  %2777 = vrot.lane.b32.xlu0 %v2775, 64
  %v2778 = vpop.permute.xlu0 %2777
  %v2780 = vmul.f32 %v2740, %v2778
  %v2781 = vtanh.pop %v2774
  %2783 = vrot.lane.b32.xlu0 %v2781, 64
  %v2784 = vpop.permute.xlu0 %2783
  %v2786 = vmul.f32 %v2747, %v2784
  %2788 = vrot.lane.b32.xlu0 %v2780, 32
  %v2789 = vpop.permute.xlu0 %2788
  %2792 = vrot.lane.b32.xlu0 %v2786, 64
  %v2793 = vpop.permute.xlu0 %2792
  %v2795 = vsel %vm62, %v2789, %v2793
  %2797 = vrot.lane.b32.xlu0 %v2763, 96
  %v2798 = vpop.permute.xlu0 %2797
  %v2800 = vsel %vm62, %v2798, %v2774
  %v2802 = vsel %vm232, %v2795, 0
  %2804 = vmatprep.subr.mxu0 %v1783
  %2805 = vmatpush1.msra.mxu0 %v1782
  %2806 = vmatprep.subr.mxu0 %v1785
  %2807 = vmatpush1.msra.mxu0 %v1784
  %2808 = vmatprep.subr.mxu0 %v1787
  %2809 = vmatpush1.msra.mxu0 %v1786
  %2810 = vmatprep.subr.mxu0 %v1789
  %2811 = vmatpush1.msra.mxu0 %v1788
  %2812 = vmatprep.subr.mxu0 %v1791
  %2813 = vmatpush1.msra.mxu0 %v1790
  %2814 = vmatprep.subr.mxu0 %v1793
  %2815 = vmatpush1.msra.mxu0 %v1792
  %2816 = vmatprep.subr.mxu0 %v1795
  %2817 = vmatpush1.msra.mxu0 %v1794
  %2818 = vmatprep.subr.mxu0 %v1797
  %2819 = vmatpush1.msra.mxu0 %v1796
  %2820 = vmatprep.subr.mxu0 0.0
  %2821 = vmatpush1.msra.mxu0 0.0
  %2822 = vmatprep.subr.mxu0 0.0
  %2823 = vmatpush1.msra.mxu0 0.0
  %2824 = vmatprep.subr.mxu0 0.0
  %2825 = vmatpush1.msra.mxu0 0.0
  %2826 = vmatprep.subr.mxu0 0.0
  %2827 = vmatpush1.msra.mxu0 0.0
  %2828 = vmatprep.subr.mxu0 0.0
  %2829 = vmatpush1.msra.mxu0 0.0
  %2830 = vmatprep.subr.mxu0 0.0
  %2831 = vmatpush1.msra.mxu0 0.0
  %2832 = vmatprep.subr.mxu0 0.0
  %2833 = vmatpush1.msra.mxu0 0.0
  %2834 = vmatprep.subr.mxu0 0.0
  %2835 = vmatpush1.msra.mxu0 0.0
  %2836 = vmatprep.subr.mxu0 0.0
  %2837 = vmatpush1.msra.mxu0 0.0
  %2838 = vmatprep.subr.mxu0 0.0
  %2839 = vmatpush1.msra.mxu0 0.0
  %2840 = vmatprep.subr.mxu0 0.0
  %2841 = vmatpush1.msra.mxu0 0.0
  %2842 = vmatprep.subr.mxu0 0.0
  %2843 = vmatpush1.msra.mxu0 0.0
  %2844 = vmatprep.subr.mxu0 0.0
  %2845 = vmatpush1.msra.mxu0 0.0
  %2846 = vmatprep.subr.mxu0 0.0
  %2847 = vmatpush1.msra.mxu0 0.0
  %2848 = vmatprep.subr.mxu0 0.0
  %2849 = vmatpush1.msra.mxu0 0.0
  %2850 = vmatprep.subr.mxu0 0.0
  %2851 = vmatpush1.msra.mxu0 0.0
  %2852 = vmatprep.subr.mxu0 0.0
  %2853 = vmatpush1.msra.mxu0 0.0
  %2854 = vmatprep.subr.mxu0 0.0
  %2855 = vmatpush1.msra.mxu0 0.0
  %2856 = vmatprep.subr.mxu0 0.0
  %2857 = vmatpush1.msra.mxu0 0.0
  %2858 = vmatprep.subr.mxu0 0.0
  %2859 = vmatpush1.msra.mxu0 0.0
  %2860 = vmatprep.subr.mxu0 0.0
  %2861 = vmatpush1.msra.mxu0 0.0
  %2862 = vmatprep.subr.mxu0 0.0
  %2863 = vmatpush1.msra.mxu0 0.0
  %2864 = vmatprep.subr.mxu0 0.0
  %2865 = vmatpush1.msra.mxu0 0.0
  %2866 = vmatprep.subr.mxu0 0.0
  %2867 = vmatpush1.msra.mxu0 0.0
  %2868 = vmatprep.mubr.f32.mxu0 0.0
  %2869 = vmatmul.mubr.f32.gmra.mrb[0].mxu0 %v2802
  %v2870 = vpop.f32.mrb[0].mxu0
  %v2871 = vadd.f32 0.0, %v2870
  %v2872 = vpop.f32.mrb[0].mxu0
  %v2873 = vadd.f32 0.0, %v2872
  %2874 = vdwg.mxu0
  %v2875 = vadd.f32 %v2871, %v1871
  %v2876 = vadd.f32 %v2873, %v1870
  %v2877 = vxor.u32 %v2875, 2147483648
  %v2878 = vmul.f32 %v2877, 1.442695
  %v2879 = vpow.pop %v2878
  %v2880 = vadd.f32 %v2879, 1.0
  %v2881 = vrcp.pop %v2880
  %v2882 = vmul.f32 1.0, %v2881
  %v2883 = vtanh.pop %v2875
  %v2884 = vxor.u32 %v2876, 2147483648
  %v2885 = vmul.f32 %v2884, 1.442695
  %v2886 = vpow.pop %v2885
  %v2887 = vadd.f32 %v2886, 1.0
  %v2888 = vrcp.pop %v2887
  %v2889 = vmul.f32 1.0, %v2888
  %v2890 = vtanh.pop %v2876
  %2892 = vrot.lane.b32.xlu0 %v2800, 32
  %v2893 = vpop.permute.xlu0 %2892
  %v2895 = vmul.f32 %v2882, %v2893
  %2897 = vrot.lane.b32.xlu0 %v2883, 64
  %v2898 = vpop.permute.xlu0 %2897
  %v2900 = vmul.f32 %v2882, %v2898
  %2902 = vrot.lane.b32.xlu0 %v2900, 32
  %v2903 = vpop.permute.xlu0 %2902
  %v2905 = vadd.f32 %v2895, %v2903
  %v2906 = vmul.f32 %v2889, %v2800
  %2908 = vrot.lane.b32.xlu0 %v2890, 64
  %v2909 = vpop.permute.xlu0 %2908
  %v2911 = vmul.f32 %v2889, %v2909
  %2913 = vrot.lane.b32.xlu0 %v2911, 32
  %v2914 = vpop.permute.xlu0 %2913
  %v2916 = vadd.f32 %v2906, %v2914
  %v2917 = vtanh.pop %v2905
  %2919 = vrot.lane.b32.xlu0 %v2917, 64
  %v2920 = vpop.permute.xlu0 %2919
  %v2922 = vmul.f32 %v2882, %v2920
  %v2923 = vtanh.pop %v2916
  %2925 = vrot.lane.b32.xlu0 %v2923, 64
  %v2926 = vpop.permute.xlu0 %2925
  %v2928 = vmul.f32 %v2889, %v2926
  %2930 = vrot.lane.b32.xlu0 %v2922, 32
  %v2931 = vpop.permute.xlu0 %2930
  %2934 = vrot.lane.b32.xlu0 %v2928, 64
  %v2935 = vpop.permute.xlu0 %2934
  %v2937 = vsel %vm62, %v2931, %v2935
  %v2938 = vld [vmem:[%s7] sm:$0xff]
  %v2939 = vld [vmem:[%s7 + $0x8] sm:$0xff]
  %v2940 = vld [vmem:[%s7 + $0x10] sm:$0xff]
  %v2941 = vld [vmem:[%s7 + $0x18] sm:$0xff]
  %v2942 = vld [vmem:[%s7 + $0x20] sm:$0xff]
  %v2943 = vld [vmem:[%s7 + $0x28] sm:$0xff]
  %v2944 = vld [vmem:[%s7 + $0x30] sm:$0xff]
  %v2945 = vld [vmem:[%s7 + $0x38] sm:$0xff]
  %v2946 = vld [vmem:[#allocation5] sm:$0x1]
  %v2948 = vlaneseq
  %v2949 = vshrl.u32 %v2948, 7
  %v2950 = vsub.s32 0, %v2949
  %v2951 = vrot.slane %v2946, %v2950
  %v2954 = vsel %vm232, %v2937, 0
  %2956 = vmatprep.subr.mxu0 0.0
  %2957 = vmatpush1.msra.mxu0 %v2938
  %2958 = vmatprep.subr.mxu0 0.0
  %2959 = vmatpush1.msra.mxu0 %v2939
  %2960 = vmatprep.subr.mxu0 0.0
  %2961 = vmatpush1.msra.mxu0 %v2940
  %2962 = vmatprep.subr.mxu0 0.0
  %2963 = vmatpush1.msra.mxu0 %v2941
  %2964 = vmatprep.subr.mxu0 0.0
  %2965 = vmatpush1.msra.mxu0 %v2942
  %2966 = vmatprep.subr.mxu0 0.0
  %2967 = vmatpush1.msra.mxu0 %v2943
  %2968 = vmatprep.subr.mxu0 0.0
  %2969 = vmatpush1.msra.mxu0 %v2944
  %2970 = vmatprep.subr.mxu0 0.0
  %2971 = vmatpush1.msra.mxu0 %v2945
  %2972 = vmatprep.subr.mxu0 0.0
  %2973 = vmatpush1.msra.mxu0 0.0
  %2974 = vmatprep.subr.mxu0 0.0
  %2975 = vmatpush1.msra.mxu0 0.0
  %2976 = vmatprep.subr.mxu0 0.0
  %2977 = vmatpush1.msra.mxu0 0.0
  %2978 = vmatprep.subr.mxu0 0.0
  %2979 = vmatpush1.msra.mxu0 0.0
  %2980 = vmatprep.subr.mxu0 0.0
  %2981 = vmatpush1.msra.mxu0 0.0
  %2982 = vmatprep.subr.mxu0 0.0
  %2983 = vmatpush1.msra.mxu0 0.0
  %2984 = vmatprep.subr.mxu0 0.0
  %2985 = vmatpush1.msra.mxu0 0.0
  %2986 = vmatprep.subr.mxu0 0.0
  %2987 = vmatpush1.msra.mxu0 0.0
  %2988 = vmatprep.subr.mxu0 0.0
  %2989 = vmatpush1.msra.mxu0 0.0
  %2990 = vmatprep.subr.mxu0 0.0
  %2991 = vmatpush1.msra.mxu0 0.0
  %2992 = vmatprep.subr.mxu0 0.0
  %2993 = vmatpush1.msra.mxu0 0.0
  %2994 = vmatprep.subr.mxu0 0.0
  %2995 = vmatpush1.msra.mxu0 0.0
  %2996 = vmatprep.subr.mxu0 0.0
  %2997 = vmatpush1.msra.mxu0 0.0
  %2998 = vmatprep.subr.mxu0 0.0
  %2999 = vmatpush1.msra.mxu0 0.0
  %3000 = vmatprep.subr.mxu0 0.0
  %3001 = vmatpush1.msra.mxu0 0.0
  %3002 = vmatprep.subr.mxu0 0.0
  %3003 = vmatpush1.msra.mxu0 0.0
  %3004 = vmatprep.subr.mxu0 0.0
  %3005 = vmatpush1.msra.mxu0 0.0
  %3006 = vmatprep.subr.mxu0 0.0
  %3007 = vmatpush1.msra.mxu0 0.0
  %3008 = vmatprep.subr.mxu0 0.0
  %3009 = vmatpush1.msra.mxu0 0.0
  %3010 = vmatprep.subr.mxu0 0.0
  %3011 = vmatpush1.msra.mxu0 0.0
  %3012 = vmatprep.subr.mxu0 0.0
  %3013 = vmatpush1.msra.mxu0 0.0
  %3014 = vmatprep.subr.mxu0 0.0
  %3015 = vmatpush1.msra.mxu0 0.0
  %3016 = vmatprep.subr.mxu0 0.0
  %3017 = vmatpush1.msra.mxu0 0.0
  %3018 = vmatprep.subr.mxu0 0.0
  %3019 = vmatpush1.msra.mxu0 0.0
  %3020 = vmatprep.mubr.f32.mxu0 0.0
  %3021 = vmatmul.mubr.f32.gmra.mrb[0].mxu0 %v2954
  %v3022 = vpop.f32.mrb[0].mxu0
  %v3023 = vadd.f32 %v2951, %v3022
  %v3024 = vpop.f32.mrb[0].mxu0
  %3025 = vdwg.mxu0
  %vm3026 = vcmask 7168
  %3027 = vst.msk [vmem:[%s9] sm:$0xff] %vm3026, %v3023
  // Predicated region
  $region38: #{rnn_movie_forward.1} parent=0 // pred_check
    _
  $region39: #{rnn_movie_forward.1} parent=0 // pred_check_branch
    %3029 = sbr.rel (0) target = $region41
  $region40: #{rnn_movie_forward.1} parent=0 // pred_region
    _
  $region41: #{rnn_movie_forward.1} parent=0 // pred_fallthru
    _
  // Predicated region
  $region42: #{rnn_movie_forward.1} parent=0 // pred_check
    _
  $region43: #{rnn_movie_forward.1} parent=0 // pred_check_branch
    %3031 = sbr.rel (0) target = $region45
  $region44: #{rnn_movie_forward.1} parent=0 // pred_region
    _
  $region45: #{rnn_movie_forward.1} parent=0 // pred_fallthru
    _

</llo_original>
